<compile_context>
chip_gen: v7x
topology: tpu7x:2x2x1
jax: 0.10.0
libtpu: 0.0.40
codegen_flags: <defaults>
</compile_context>

<pallas_src>
import jax
import jax.numpy as jnp
from jax.experimental import pallas as pl
from jax.experimental.pallas import tpu as pltpu

# ---- small, MXU/VPU-friendly configuration consistent with the module's structure ----
VOCAB = 256       # vocab_size
HIDDEN = 128      # hidden_size
LAYERS = 2        # num_layers
HEADS = 4         # num_heads
HEAD_DIM = HIDDEN // HEADS
FF = 4 * HIDDEN
MAX_POS = 64      # position_embedding table size (>= seq_len)
EPS = 1e-5        # nn.LayerNorm default eps

BATCH = 2
SEQ = 16
ROWS = BATCH * SEQ

_SQRT_HALF = 0.7071067811865476
_NEG_BIG = -1e9   # cross-batch block mask; exp() underflows to exactly 0 in f32


def _layernorm(x, w, b):
    mu = jnp.mean(x, axis=-1, keepdims=True)
    var = jnp.mean((x - mu) ** 2, axis=-1, keepdims=True)   # biased variance (PyTorch LN)
    return (x - mu) * jax.lax.rsqrt(var + EPS) * w + b


def fused_forward_kernel(x_emb_ref, mask_ref,
                         ln1w_ref, ln1b_ref, wqkv_ref, bqkv_ref,
                         wo_ref, bo_ref, ln2w_ref, ln2b_ref,
                         w1_ref, b1_ref, w2_ref, b2_ref,
                         fln_w_ref, fln_b_ref, wlm_ref,
                         o_ref):
    x = x_emb_ref[...]                 # (ROWS, H) running activation
    add_mask = mask_ref[...]           # (ROWS, ROWS) precombined additive mask

    for l in range(LAYERS):            # static unroll; full stack resident in VMEM
        # ---- attention block (pre-norm) ----
        xn = _layernorm(x, ln1w_ref[l], ln1b_ref[l])
        # fused QKV projection: (ROWS, H) @ (H, 3H); 1/sqrt(head_dim) already folded into Wq/bq
        qkv = jnp.dot(xn, wqkv_ref[l], preferred_element_type=jnp.float32) + bqkv_ref[l]

        ctx_parts = []
        for h in range(HEADS):         # static loop over heads, all rows at once
            q_h = qkv[:, h * HEAD_DIM:(h + 1) * HEAD_DIM]
            k_h = qkv[:, HIDDEN + h * HEAD_DIM:HIDDEN + (h + 1) * HEAD_DIM]
            v_h = qkv[:, 2 * HIDDEN + h * HEAD_DIM:2 * HIDDEN + (h + 1) * HEAD_DIM]
            # scores over ALL rows; block-diagonal mask handles batch separation + padding
            s = jax.lax.dot_general(q_h, k_h, (((1,), (1,)), ((), ())),
                                    preferred_element_type=jnp.float32)
            s = s + add_mask
            s = s - jnp.max(s, axis=-1, keepdims=True)
            p = jnp.exp(s)
            p = p / jnp.sum(p, axis=-1, keepdims=True)     # exact softmax (fp32 parity)
            ctx_parts.append(jnp.dot(p, v_h, preferred_element_type=jnp.float32))
        # lane-axis concat of head contexts, then one full-depth K=128 Wo matmul
        ctx = jnp.concatenate(ctx_parts, axis=-1)          # (ROWS, H)
        attn_out = jnp.dot(ctx, wo_ref[l], preferred_element_type=jnp.float32) + bo_ref[l]
        # TODO(synk): dropout omitted (identity / eval-mode semantics).
        x = x + attn_out

        # ---- feed-forward block (pre-norm) ----
        xn2 = _layernorm(x, ln2w_ref[l], ln2b_ref[l])
        h1 = jnp.dot(xn2, w1_ref[l], preferred_element_type=jnp.float32) + b1_ref[l]
        h1 = 0.5 * h1 * (1.0 + jax.lax.erf(h1 * _SQRT_HALF))   # exact (erf) GELU
        h2 = jnp.dot(h1, w2_ref[l], preferred_element_type=jnp.float32) + b2_ref[l]
        x = x + h2

    # ---- final LayerNorm + lm_head ----
    xf = _layernorm(x, fln_w_ref[...], fln_b_ref[...])
    o_ref[...] = jnp.dot(xf, wlm_ref[...], preferred_element_type=jnp.float32)


def fused_forward(x_emb2d, add_mask, lp, final_ln_w, final_ln_b, w_lm):
    BS, _ = x_emb2d.shape
    V = w_lm.shape[1]
    operands = (x_emb2d, add_mask,
                lp["ln1_w"], lp["ln1_b"], lp["wqkv"], lp["bqkv"],
                lp["wo"], lp["bo"], lp["ln2_w"], lp["ln2_b"],
                lp["w1"], lp["b1"], lp["w2"], lp["b2"],
                final_ln_w, final_ln_b, w_lm)
    # Single invocation: every operand is a whole-array VMEM block (total footprint ~2 MiB,
    # fits every generation including v7x's 64 MiB VMEM).
    vmem_spec = lambda: pl.BlockSpec(memory_space=pltpu.MemorySpace.VMEM)
    return pl.pallas_call(
        fused_forward_kernel,
        out_shape=jax.ShapeDtypeStruct((BS, V), jnp.float32),
        in_specs=[vmem_spec() for _ in operands],
        out_specs=vmem_spec(),
    )(*operands)


def init_params(key):
    keys = iter(jax.random.split(key, 8))

    def nrm(shape):
        return jax.random.normal(next(keys), shape, jnp.float32) * 0.02

    # Linear weights stored transposed (in_features, out_features); per-layer weights stacked
    # along a leading LAYERS axis; Q/K/V packed into one (H, 3H) weight.
    wqkv = nrm((LAYERS, HIDDEN, 3 * HIDDEN))
    bqkv = jnp.zeros((LAYERS, 1, 3 * HIDDEN), jnp.float32)
    # Fold the 1/sqrt(head_dim) attention scale into the Q projection at weight-prep time.
    qkv_scale = jnp.concatenate([
        jnp.full((HIDDEN,), 1.0 / (HEAD_DIM ** 0.5), jnp.float32),
        jnp.ones((2 * HIDDEN,), jnp.float32),
    ])
    wqkv = wqkv * qkv_scale
    bqkv = bqkv * qkv_scale

    return {
        "tok_emb": nrm((VOCAB, HIDDEN)),
        "pos_emb": nrm((MAX_POS, HIDDEN)),
        "final_ln_w": jnp.ones((1, HIDDEN), jnp.float32),
        "final_ln_b": jnp.zeros((1, HIDDEN), jnp.float32),
        "w_lm": nrm((HIDDEN, VOCAB)),                         # lm_head (no bias)
        "layers": {
            "ln1_w": jnp.ones((LAYERS, 1, HIDDEN), jnp.float32),
            "ln1_b": jnp.zeros((LAYERS, 1, HIDDEN), jnp.float32),
            "wqkv": wqkv,
            "bqkv": bqkv,
            "wo": nrm((LAYERS, HIDDEN, HIDDEN)),
            "bo": jnp.zeros((LAYERS, 1, HIDDEN), jnp.float32),
            "ln2_w": jnp.ones((LAYERS, 1, HIDDEN), jnp.float32),
            "ln2_b": jnp.zeros((LAYERS, 1, HIDDEN), jnp.float32),
            "w1": nrm((LAYERS, HIDDEN, FF)),
            "b1": jnp.zeros((LAYERS, 1, FF), jnp.float32),
            "w2": nrm((LAYERS, FF, HIDDEN)),
            "b2": jnp.zeros((LAYERS, 1, HIDDEN), jnp.float32),
        },
    }


@jax.jit
def simple_transformer_forward(params, input_ids, attention_mask):
    B, S = input_ids.shape
    # --- embeddings (gather glue, plain JAX) ---
    position_ids = jnp.arange(S, dtype=jnp.int32)
    tok = jnp.take(params["tok_emb"], input_ids, axis=0)           # (B, S, H)
    pos = jnp.take(params["pos_emb"], position_ids, axis=0)[None]  # (1, S, H)
    x = (tok + pos).reshape(B * S, HIDDEN)                         # fold batch into rows
    # --- block-diagonal additive mask, built once per call (not per layer/head) ---
    # within-batch entries: (mask_key - 1) * 10000 (reference convention, broadcast over queries)
    # cross-batch entries:  -1e9 (softmax contribution underflows to exactly 0 in f32)
    key_pad = ((attention_mask.astype(jnp.float32) - 1.0) * 10000.0).reshape(B * S)
    batch_ids = jnp.repeat(jnp.arange(B, dtype=jnp.int32), S)
    same_batch = batch_ids[:, None] == batch_ids[None, :]
    add_mask = jnp.where(same_batch, key_pad[None, :], _NEG_BIG)   # (B*S, B*S)
    # --- whole transformer stack + final LN + lm_head: one fused Pallas kernel ---
    logits2d = fused_forward(x, add_mask, params["layers"],
                             params["final_ln_w"], params["final_ln_b"], params["w_lm"])
    return logits2d.reshape(B, S, VOCAB)


if __name__ == "__main__":
    key = jax.random.PRNGKey(0)
    k_params, k_ids = jax.random.split(key)
    params = init_params(k_params)
    input_ids = jax.random.randint(k_ids, (BATCH, SEQ), 0, VOCAB, dtype=jnp.int32)
    attention_mask = jnp.ones((BATCH, SEQ), jnp.float32)

    logits = simple_transformer_forward(params, input_ids, attention_mask)
    jax.block_until_ready(logits)
    assert logits.shape == (BATCH, SEQ, VOCAB) and logits.dtype == jnp.float32
    assert bool(jnp.all(jnp.isfinite(logits)))
    print("KERNEL_OK")
</pallas_src>

<mosaic_0001>
module attributes {stable_mosaic.version = 11 : i64} {
  func.func @fused_forward_kernel(%arg0: memref<32x128xf32, #tpu.memory_space<vmem>>, %arg1: memref<32x32xf32, #tpu.memory_space<vmem>>, %arg2: memref<2x1x128xf32, #tpu.memory_space<vmem>>, %arg3: memref<2x1x128xf32, #tpu.memory_space<vmem>>, %arg4: memref<2x128x384xf32, #tpu.memory_space<vmem>>, %arg5: memref<2x1x384xf32, #tpu.memory_space<vmem>>, %arg6: memref<2x128x128xf32, #tpu.memory_space<vmem>>, %arg7: memref<2x1x128xf32, #tpu.memory_space<vmem>>, %arg8: memref<2x1x128xf32, #tpu.memory_space<vmem>>, %arg9: memref<2x1x128xf32, #tpu.memory_space<vmem>>, %arg10: memref<2x128x512xf32, #tpu.memory_space<vmem>>, %arg11: memref<2x1x512xf32, #tpu.memory_space<vmem>>, %arg12: memref<2x512x128xf32, #tpu.memory_space<vmem>>, %arg13: memref<2x1x128xf32, #tpu.memory_space<vmem>>, %arg14: memref<1x128xf32, #tpu.memory_space<vmem>>, %arg15: memref<1x128xf32, #tpu.memory_space<vmem>>, %arg16: memref<128x256xf32, #tpu.memory_space<vmem>>, %arg17: memref<32x256xf32, #tpu.memory_space<vmem>>) attributes {dimension_semantics = [], scalar_prefetch = 0 : i64, scratch_operands = 0 : i64, tpu.core_type = #tpu.core_type<tc>} {
    %c0 = arith.constant 0 : index
    %c0_0 = arith.constant 0 : index
    %0 = vector.load %arg0[%c0, %c0_0] : memref<32x128xf32, #tpu.memory_space<vmem>>, vector<32x128xf32>
    %c0_1 = arith.constant 0 : index
    %c0_2 = arith.constant 0 : index
    %1 = vector.load %arg1[%c0_1, %c0_2] : memref<32x32xf32, #tpu.memory_space<vmem>>, vector<32x32xf32>
    %c0_3 = arith.constant 0 : index
    %c0_4 = arith.constant 0 : index
    %c0_5 = arith.constant 0 : index
    %2 = vector.load %arg2[%c0_3, %c0_4, %c0_5] : memref<2x1x128xf32, #tpu.memory_space<vmem>>, vector<1x1x128xf32>
    %3 = vector.shape_cast %2 : vector<1x1x128xf32> to vector<1x128xf32>
    %c0_6 = arith.constant 0 : index
    %c0_7 = arith.constant 0 : index
    %c0_8 = arith.constant 0 : index
    %4 = vector.load %arg3[%c0_6, %c0_7, %c0_8] : memref<2x1x128xf32, #tpu.memory_space<vmem>>, vector<1x1x128xf32>
    %5 = vector.shape_cast %4 : vector<1x1x128xf32> to vector<1x128xf32>
    %cst = arith.constant dense<0.000000e+00> : vector<32xf32>
    %6 = vector.multi_reduction <add>, %0, %cst [1] : vector<32x128xf32> to vector<32xf32>
    %7 = vector.shape_cast %6 : vector<32xf32> to vector<32x1xf32>
    %cst_9 = arith.constant 1.280000e+02 : f32
    %8 = vector.broadcast %cst_9 : f32 to vector<32x1xf32>
    %9 = arith.divf %7, %8 : vector<32x1xf32>
    %10 = vector.broadcast %9 : vector<32x1xf32> to vector<32x128xf32>
    %11 = arith.subf %0, %10 : vector<32x128xf32>
    %12 = arith.mulf %11, %11 : vector<32x128xf32>
    %cst_10 = arith.constant dense<0.000000e+00> : vector<32xf32>
    %13 = vector.multi_reduction <add>, %12, %cst_10 [1] : vector<32x128xf32> to vector<32xf32>
    %14 = vector.shape_cast %13 : vector<32xf32> to vector<32x1xf32>
    %cst_11 = arith.constant 1.280000e+02 : f32
    %15 = vector.broadcast %cst_11 : f32 to vector<32x1xf32>
    %16 = arith.divf %14, %15 : vector<32x1xf32>
    %17 = vector.broadcast %9 : vector<32x1xf32> to vector<32x128xf32>
    %18 = arith.subf %0, %17 : vector<32x128xf32>
    %cst_12 = arith.constant 9.99999974E-6 : f32
    %19 = vector.broadcast %cst_12 : f32 to vector<32x1xf32>
    %20 = arith.addf %16, %19 : vector<32x1xf32>
    %21 = math.rsqrt %20 : vector<32x1xf32>
    %22 = vector.broadcast %21 : vector<32x1xf32> to vector<32x128xf32>
    %23 = arith.mulf %18, %22 : vector<32x128xf32>
    %24 = vector.broadcast %3 : vector<1x128xf32> to vector<32x128xf32>
    %25 = arith.mulf %23, %24 : vector<32x128xf32>
    %26 = vector.broadcast %5 : vector<1x128xf32> to vector<32x128xf32>
    %27 = arith.addf %25, %26 : vector<32x128xf32>
    %c0_13 = arith.constant 0 : index
    %c0_14 = arith.constant 0 : index
    %c0_15 = arith.constant 0 : index
    %28 = vector.load %arg4[%c0_13, %c0_14, %c0_15] : memref<2x128x384xf32, #tpu.memory_space<vmem>>, vector<1x128x384xf32>
    %29 = vector.shape_cast %28 : vector<1x128x384xf32> to vector<128x384xf32>
    %cst_16 = arith.constant dense<0.000000e+00> : vector<32x384xf32>
    %30 = tpu.matmul %27, %29, %cst_16 {dimension_numbers = #tpu.dot_dimension_numbers<[1], [0], [0], [1], [0, 0, 1, 1], [], []>} : vector<32x128xf32>, vector<128x384xf32>, vector<32x384xf32> -> vector<32x384xf32>
    %c0_17 = arith.constant 0 : index
    %c0_18 = arith.constant 0 : index
    %c0_19 = arith.constant 0 : index
    %31 = vector.load %arg5[%c0_17, %c0_18, %c0_19] : memref<2x1x384xf32, #tpu.memory_space<vmem>>, vector<1x1x384xf32>
    %32 = vector.shape_cast %31 : vector<1x1x384xf32> to vector<1x384xf32>
    %33 = vector.broadcast %32 : vector<1x384xf32> to vector<32x384xf32>
    %34 = arith.addf %30, %33 : vector<32x384xf32>
    %35 = vector.extract_strided_slice %34 {offsets = [0, 0], sizes = [32, 32], strides = [1, 1]} : vector<32x384xf32> to vector<32x32xf32>
    %36 = vector.extract_strided_slice %34 {offsets = [0, 128], sizes = [32, 32], strides = [1, 1]} : vector<32x384xf32> to vector<32x32xf32>
    %37 = vector.extract_strided_slice %34 {offsets = [0, 256], sizes = [32, 32], strides = [1, 1]} : vector<32x384xf32> to vector<32x32xf32>
    %cst_20 = arith.constant dense<0.000000e+00> : vector<32x32xf32>
    %38 = tpu.matmul %35, %36, %cst_20 {dimension_numbers = #tpu.dot_dimension_numbers<[1], [1], [0], [0], [0, 0, 1, 0], [], []>} : vector<32x32xf32>, vector<32x32xf32>, vector<32x32xf32> -> vector<32x32xf32>
    %39 = arith.addf %38, %1 : vector<32x32xf32>
    %cst_21 = arith.constant dense<0xFF800000> : vector<32xf32>
    %40 = vector.multi_reduction <maximumf>, %39, %cst_21 [1] : vector<32x32xf32> to vector<32xf32>
    %41 = vector.shape_cast %40 : vector<32xf32> to vector<32x1xf32>
    %42 = vector.broadcast %41 : vector<32x1xf32> to vector<32x32xf32>
    %43 = arith.subf %39, %42 : vector<32x32xf32>
    %44 = math.exp %43 : vector<32x32xf32>
    %cst_22 = arith.constant dense<0.000000e+00> : vector<32xf32>
    %45 = vector.multi_reduction <add>, %44, %cst_22 [1] : vector<32x32xf32> to vector<32xf32>
    %46 = vector.shape_cast %45 : vector<32xf32> to vector<32x1xf32>
    %47 = vector.broadcast %46 : vector<32x1xf32> to vector<32x32xf32>
    %48 = arith.divf %44, %47 : vector<32x32xf32>
    %cst_23 = arith.constant dense<0.000000e+00> : vector<32x32xf32>
    %49 = tpu.matmul %48, %37, %cst_23 {dimension_numbers = #tpu.dot_dimension_numbers<[1], [0], [0], [1], [0, 0, 1, 1], [], []>} : vector<32x32xf32>, vector<32x32xf32>, vector<32x32xf32> -> vector<32x32xf32>
    %50 = vector.extract_strided_slice %34 {offsets = [0, 32], sizes = [32, 32], strides = [1, 1]} : vector<32x384xf32> to vector<32x32xf32>
    %51 = vector.extract_strided_slice %34 {offsets = [0, 160], sizes = [32, 32], strides = [1, 1]} : vector<32x384xf32> to vector<32x32xf32>
    %52 = vector.extract_strided_slice %34 {offsets = [0, 288], sizes = [32, 32], strides = [1, 1]} : vector<32x384xf32> to vector<32x32xf32>
    %cst_24 = arith.constant dense<0.000000e+00> : vector<32x32xf32>
    %53 = tpu.matmul %50, %51, %cst_24 {dimension_numbers = #tpu.dot_dimension_numbers<[1], [1], [0], [0], [0, 0, 1, 0], [], []>} : vector<32x32xf32>, vector<32x32xf32>, vector<32x32xf32> -> vector<32x32xf32>
    %54 = arith.addf %53, %1 : vector<32x32xf32>
    %cst_25 = arith.constant dense<0xFF800000> : vector<32xf32>
    %55 = vector.multi_reduction <maximumf>, %54, %cst_25 [1] : vector<32x32xf32> to vector<32xf32>
    %56 = vector.shape_cast %55 : vector<32xf32> to vector<32x1xf32>
    %57 = vector.broadcast %56 : vector<32x1xf32> to vector<32x32xf32>
    %58 = arith.subf %54, %57 : vector<32x32xf32>
    %59 = math.exp %58 : vector<32x32xf32>
    %cst_26 = arith.constant dense<0.000000e+00> : vector<32xf32>
    %60 = vector.multi_reduction <add>, %59, %cst_26 [1] : vector<32x32xf32> to vector<32xf32>
    %61 = vector.shape_cast %60 : vector<32xf32> to vector<32x1xf32>
    %62 = vector.broadcast %61 : vector<32x1xf32> to vector<32x32xf32>
    %63 = arith.divf %59, %62 : vector<32x32xf32>
    %cst_27 = arith.constant dense<0.000000e+00> : vector<32x32xf32>
    %64 = tpu.matmul %63, %52, %cst_27 {dimension_numbers = #tpu.dot_dimension_numbers<[1], [0], [0], [1], [0, 0, 1, 1], [], []>} : vector<32x32xf32>, vector<32x32xf32>, vector<32x32xf32> -> vector<32x32xf32>
    %65 = vector.extract_strided_slice %34 {offsets = [0, 64], sizes = [32, 32], strides = [1, 1]} : vector<32x384xf32> to vector<32x32xf32>
    %66 = vector.extract_strided_slice %34 {offsets = [0, 192], sizes = [32, 32], strides = [1, 1]} : vector<32x384xf32> to vector<32x32xf32>
    %67 = vector.extract_strided_slice %34 {offsets = [0, 320], sizes = [32, 32], strides = [1, 1]} : vector<32x384xf32> to vector<32x32xf32>
    %cst_28 = arith.constant dense<0.000000e+00> : vector<32x32xf32>
    %68 = tpu.matmul %65, %66, %cst_28 {dimension_numbers = #tpu.dot_dimension_numbers<[1], [1], [0], [0], [0, 0, 1, 0], [], []>} : vector<32x32xf32>, vector<32x32xf32>, vector<32x32xf32> -> vector<32x32xf32>
    %69 = arith.addf %68, %1 : vector<32x32xf32>
    %cst_29 = arith.constant dense<0xFF800000> : vector<32xf32>
    %70 = vector.multi_reduction <maximumf>, %69, %cst_29 [1] : vector<32x32xf32> to vector<32xf32>
    %71 = vector.shape_cast %70 : vector<32xf32> to vector<32x1xf32>
    %72 = vector.broadcast %71 : vector<32x1xf32> to vector<32x32xf32>
    %73 = arith.subf %69, %72 : vector<32x32xf32>
    %74 = math.exp %73 : vector<32x32xf32>
    %cst_30 = arith.constant dense<0.000000e+00> : vector<32xf32>
    %75 = vector.multi_reduction <add>, %74, %cst_30 [1] : vector<32x32xf32> to vector<32xf32>
    %76 = vector.shape_cast %75 : vector<32xf32> to vector<32x1xf32>
    %77 = vector.broadcast %76 : vector<32x1xf32> to vector<32x32xf32>
    %78 = arith.divf %74, %77 : vector<32x32xf32>
    %cst_31 = arith.constant dense<0.000000e+00> : vector<32x32xf32>
    %79 = tpu.matmul %78, %67, %cst_31 {dimension_numbers = #tpu.dot_dimension_numbers<[1], [0], [0], [1], [0, 0, 1, 1], [], []>} : vector<32x32xf32>, vector<32x32xf32>, vector<32x32xf32> -> vector<32x32xf32>
    %80 = vector.extract_strided_slice %34 {offsets = [0, 96], sizes = [32, 32], strides = [1, 1]} : vector<32x384xf32> to vector<32x32xf32>
    %81 = vector.extract_strided_slice %34 {offsets = [0, 224], sizes = [32, 32], strides = [1, 1]} : vector<32x384xf32> to vector<32x32xf32>
    %82 = vector.extract_strided_slice %34 {offsets = [0, 352], sizes = [32, 32], strides = [1, 1]} : vector<32x384xf32> to vector<32x32xf32>
    %cst_32 = arith.constant dense<0.000000e+00> : vector<32x32xf32>
    %83 = tpu.matmul %80, %81, %cst_32 {dimension_numbers = #tpu.dot_dimension_numbers<[1], [1], [0], [0], [0, 0, 1, 0], [], []>} : vector<32x32xf32>, vector<32x32xf32>, vector<32x32xf32> -> vector<32x32xf32>
    %84 = arith.addf %83, %1 : vector<32x32xf32>
    %cst_33 = arith.constant dense<0xFF800000> : vector<32xf32>
    %85 = vector.multi_reduction <maximumf>, %84, %cst_33 [1] : vector<32x32xf32> to vector<32xf32>
    %86 = vector.shape_cast %85 : vector<32xf32> to vector<32x1xf32>
    %87 = vector.broadcast %86 : vector<32x1xf32> to vector<32x32xf32>
    %88 = arith.subf %84, %87 : vector<32x32xf32>
    %89 = math.exp %88 : vector<32x32xf32>
    %cst_34 = arith.constant dense<0.000000e+00> : vector<32xf32>
    %90 = vector.multi_reduction <add>, %89, %cst_34 [1] : vector<32x32xf32> to vector<32xf32>
    %91 = vector.shape_cast %90 : vector<32xf32> to vector<32x1xf32>
    %92 = vector.broadcast %91 : vector<32x1xf32> to vector<32x32xf32>
    %93 = arith.divf %89, %92 : vector<32x32xf32>
    %cst_35 = arith.constant dense<0.000000e+00> : vector<32x32xf32>
    %94 = tpu.matmul %93, %82, %cst_35 {dimension_numbers = #tpu.dot_dimension_numbers<[1], [0], [0], [1], [0, 0, 1, 1], [], []>} : vector<32x32xf32>, vector<32x32xf32>, vector<32x32xf32> -> vector<32x32xf32>
    %95 = tpu.concatenate %49, %64, %79, %94 in 1 : vector<32x32xf32>, vector<32x32xf32>, vector<32x32xf32>, vector<32x32xf32> -> vector<32x128xf32>
    %c0_36 = arith.constant 0 : index
    %c0_37 = arith.constant 0 : index
    %c0_38 = arith.constant 0 : index
    %96 = vector.load %arg6[%c0_36, %c0_37, %c0_38] : memref<2x128x128xf32, #tpu.memory_space<vmem>>, vector<1x128x128xf32>
    %97 = vector.shape_cast %96 : vector<1x128x128xf32> to vector<128x128xf32>
    %cst_39 = arith.constant dense<0.000000e+00> : vector<32x128xf32>
    %98 = tpu.matmul %95, %97, %cst_39 {dimension_numbers = #tpu.dot_dimension_numbers<[1], [0], [0], [1], [0, 0, 1, 1], [], []>} : vector<32x128xf32>, vector<128x128xf32>, vector<32x128xf32> -> vector<32x128xf32>
    %c0_40 = arith.constant 0 : index
    %c0_41 = arith.constant 0 : index
    %c0_42 = arith.constant 0 : index
    %99 = vector.load %arg7[%c0_40, %c0_41, %c0_42] : memref<2x1x128xf32, #tpu.memory_space<vmem>>, vector<1x1x128xf32>
    %100 = vector.shape_cast %99 : vector<1x1x128xf32> to vector<1x128xf32>
    %101 = vector.broadcast %100 : vector<1x128xf32> to vector<32x128xf32>
    %102 = arith.addf %98, %101 : vector<32x128xf32>
    %103 = arith.addf %0, %102 : vector<32x128xf32>
    %c0_43 = arith.constant 0 : index
    %c0_44 = arith.constant 0 : index
    %c0_45 = arith.constant 0 : index
    %104 = vector.load %arg8[%c0_43, %c0_44, %c0_45] : memref<2x1x128xf32, #tpu.memory_space<vmem>>, vector<1x1x128xf32>
    %105 = vector.shape_cast %104 : vector<1x1x128xf32> to vector<1x128xf32>
    %c0_46 = arith.constant 0 : index
    %c0_47 = arith.constant 0 : index
    %c0_48 = arith.constant 0 : index
    %106 = vector.load %arg9[%c0_46, %c0_47, %c0_48] : memref<2x1x128xf32, #tpu.memory_space<vmem>>, vector<1x1x128xf32>
    %107 = vector.shape_cast %106 : vector<1x1x128xf32> to vector<1x128xf32>
    %cst_49 = arith.constant dense<0.000000e+00> : vector<32xf32>
    %108 = vector.multi_reduction <add>, %103, %cst_49 [1] : vector<32x128xf32> to vector<32xf32>
    %109 = vector.shape_cast %108 : vector<32xf32> to vector<32x1xf32>
    %cst_50 = arith.constant 1.280000e+02 : f32
    %110 = vector.broadcast %cst_50 : f32 to vector<32x1xf32>
    %111 = arith.divf %109, %110 : vector<32x1xf32>
    %112 = vector.broadcast %111 : vector<32x1xf32> to vector<32x128xf32>
    %113 = arith.subf %103, %112 : vector<32x128xf32>
    %114 = arith.mulf %113, %113 : vector<32x128xf32>
    %cst_51 = arith.constant dense<0.000000e+00> : vector<32xf32>
    %115 = vector.multi_reduction <add>, %114, %cst_51 [1] : vector<32x128xf32> to vector<32xf32>
    %116 = vector.shape_cast %115 : vector<32xf32> to vector<32x1xf32>
    %cst_52 = arith.constant 1.280000e+02 : f32
    %117 = vector.broadcast %cst_52 : f32 to vector<32x1xf32>
    %118 = arith.divf %116, %117 : vector<32x1xf32>
    %119 = vector.broadcast %111 : vector<32x1xf32> to vector<32x128xf32>
    %120 = arith.subf %103, %119 : vector<32x128xf32>
    %cst_53 = arith.constant 9.99999974E-6 : f32
    %121 = vector.broadcast %cst_53 : f32 to vector<32x1xf32>
    %122 = arith.addf %118, %121 : vector<32x1xf32>
    %123 = math.rsqrt %122 : vector<32x1xf32>
    %124 = vector.broadcast %123 : vector<32x1xf32> to vector<32x128xf32>
    %125 = arith.mulf %120, %124 : vector<32x128xf32>
    %126 = vector.broadcast %105 : vector<1x128xf32> to vector<32x128xf32>
    %127 = arith.mulf %125, %126 : vector<32x128xf32>
    %128 = vector.broadcast %107 : vector<1x128xf32> to vector<32x128xf32>
    %129 = arith.addf %127, %128 : vector<32x128xf32>
    %c0_54 = arith.constant 0 : index
    %c0_55 = arith.constant 0 : index
    %c0_56 = arith.constant 0 : index
    %130 = vector.load %arg10[%c0_54, %c0_55, %c0_56] : memref<2x128x512xf32, #tpu.memory_space<vmem>>, vector<1x128x512xf32>
    %131 = vector.shape_cast %130 : vector<1x128x512xf32> to vector<128x512xf32>
    %cst_57 = arith.constant dense<0.000000e+00> : vector<32x512xf32>
    %132 = tpu.matmul %129, %131, %cst_57 {dimension_numbers = #tpu.dot_dimension_numbers<[1], [0], [0], [1], [0, 0, 1, 1], [], []>} : vector<32x128xf32>, vector<128x512xf32>, vector<32x512xf32> -> vector<32x512xf32>
    %c0_58 = arith.constant 0 : index
    %c0_59 = arith.constant 0 : index
    %c0_60 = arith.constant 0 : index
    %133 = vector.load %arg11[%c0_58, %c0_59, %c0_60] : memref<2x1x512xf32, #tpu.memory_space<vmem>>, vector<1x1x512xf32>
    %134 = vector.shape_cast %133 : vector<1x1x512xf32> to vector<1x512xf32>
    %135 = vector.broadcast %134 : vector<1x512xf32> to vector<32x512xf32>
    %136 = arith.addf %132, %135 : vector<32x512xf32>
    %cst_61 = arith.constant 5.000000e-01 : f32
    %137 = vector.broadcast %cst_61 : f32 to vector<32x512xf32>
    %138 = arith.mulf %137, %136 : vector<32x512xf32>
    %cst_62 = arith.constant 0.707106769 : f32
    %139 = vector.broadcast %cst_62 : f32 to vector<32x512xf32>
    %140 = arith.mulf %136, %139 : vector<32x512xf32>
    %141 = math.erf %140 : vector<32x512xf32>
    %cst_63 = arith.constant 1.000000e+00 : f32
    %142 = vector.broadcast %cst_63 : f32 to vector<32x512xf32>
    %143 = arith.addf %142, %141 : vector<32x512xf32>
    %144 = arith.mulf %138, %143 : vector<32x512xf32>
    %c0_64 = arith.constant 0 : index
    %c0_65 = arith.constant 0 : index
    %c0_66 = arith.constant 0 : index
    %145 = vector.load %arg12[%c0_64, %c0_65, %c0_66] : memref<2x512x128xf32, #tpu.memory_space<vmem>>, vector<1x512x128xf32>
    %146 = vector.shape_cast %145 : vector<1x512x128xf32> to vector<512x128xf32>
    %cst_67 = arith.constant dense<0.000000e+00> : vector<32x128xf32>
    %147 = tpu.matmul %144, %146, %cst_67 {dimension_numbers = #tpu.dot_dimension_numbers<[1], [0], [0], [1], [0, 0, 1, 1], [], []>} : vector<32x512xf32>, vector<512x128xf32>, vector<32x128xf32> -> vector<32x128xf32>
    %c0_68 = arith.constant 0 : index
    %c0_69 = arith.constant 0 : index
    %c0_70 = arith.constant 0 : index
    %148 = vector.load %arg13[%c0_68, %c0_69, %c0_70] : memref<2x1x128xf32, #tpu.memory_space<vmem>>, vector<1x1x128xf32>
    %149 = vector.shape_cast %148 : vector<1x1x128xf32> to vector<1x128xf32>
    %150 = vector.broadcast %149 : vector<1x128xf32> to vector<32x128xf32>
    %151 = arith.addf %147, %150 : vector<32x128xf32>
    %152 = arith.addf %103, %151 : vector<32x128xf32>
    %c1 = arith.constant 1 : index
    %c0_71 = arith.constant 0 : index
    %c0_72 = arith.constant 0 : index
    %153 = vector.load %arg2[%c1, %c0_71, %c0_72] : memref<2x1x128xf32, #tpu.memory_space<vmem>>, vector<1x1x128xf32>
    %154 = vector.shape_cast %153 : vector<1x1x128xf32> to vector<1x128xf32>
    %c1_73 = arith.constant 1 : index
    %c0_74 = arith.constant 0 : index
    %c0_75 = arith.constant 0 : index
    %155 = vector.load %arg3[%c1_73, %c0_74, %c0_75] : memref<2x1x128xf32, #tpu.memory_space<vmem>>, vector<1x1x128xf32>
    %156 = vector.shape_cast %155 : vector<1x1x128xf32> to vector<1x128xf32>
    %cst_76 = arith.constant dense<0.000000e+00> : vector<32xf32>
    %157 = vector.multi_reduction <add>, %152, %cst_76 [1] : vector<32x128xf32> to vector<32xf32>
    %158 = vector.shape_cast %157 : vector<32xf32> to vector<32x1xf32>
    %cst_77 = arith.constant 1.280000e+02 : f32
    %159 = vector.broadcast %cst_77 : f32 to vector<32x1xf32>
    %160 = arith.divf %158, %159 : vector<32x1xf32>
    %161 = vector.broadcast %160 : vector<32x1xf32> to vector<32x128xf32>
    %162 = arith.subf %152, %161 : vector<32x128xf32>
    %163 = arith.mulf %162, %162 : vector<32x128xf32>
    %cst_78 = arith.constant dense<0.000000e+00> : vector<32xf32>
    %164 = vector.multi_reduction <add>, %163, %cst_78 [1] : vector<32x128xf32> to vector<32xf32>
    %165 = vector.shape_cast %164 : vector<32xf32> to vector<32x1xf32>
    %cst_79 = arith.constant 1.280000e+02 : f32
    %166 = vector.broadcast %cst_79 : f32 to vector<32x1xf32>
    %167 = arith.divf %165, %166 : vector<32x1xf32>
    %168 = vector.broadcast %160 : vector<32x1xf32> to vector<32x128xf32>
    %169 = arith.subf %152, %168 : vector<32x128xf32>
    %cst_80 = arith.constant 9.99999974E-6 : f32
    %170 = vector.broadcast %cst_80 : f32 to vector<32x1xf32>
    %171 = arith.addf %167, %170 : vector<32x1xf32>
    %172 = math.rsqrt %171 : vector<32x1xf32>
    %173 = vector.broadcast %172 : vector<32x1xf32> to vector<32x128xf32>
    %174 = arith.mulf %169, %173 : vector<32x128xf32>
    %175 = vector.broadcast %154 : vector<1x128xf32> to vector<32x128xf32>
    %176 = arith.mulf %174, %175 : vector<32x128xf32>
    %177 = vector.broadcast %156 : vector<1x128xf32> to vector<32x128xf32>
    %178 = arith.addf %176, %177 : vector<32x128xf32>
    %c1_81 = arith.constant 1 : index
    %c0_82 = arith.constant 0 : index
    %c0_83 = arith.constant 0 : index
    %179 = vector.load %arg4[%c1_81, %c0_82, %c0_83] : memref<2x128x384xf32, #tpu.memory_space<vmem>>, vector<1x128x384xf32>
    %180 = vector.shape_cast %179 : vector<1x128x384xf32> to vector<128x384xf32>
    %cst_84 = arith.constant dense<0.000000e+00> : vector<32x384xf32>
    %181 = tpu.matmul %178, %180, %cst_84 {dimension_numbers = #tpu.dot_dimension_numbers<[1], [0], [0], [1], [0, 0, 1, 1], [], []>} : vector<32x128xf32>, vector<128x384xf32>, vector<32x384xf32> -> vector<32x384xf32>
    %c1_85 = arith.constant 1 : index
    %c0_86 = arith.constant 0 : index
    %c0_87 = arith.constant 0 : index
    %182 = vector.load %arg5[%c1_85, %c0_86, %c0_87] : memref<2x1x384xf32, #tpu.memory_space<vmem>>, vector<1x1x384xf32>
    %183 = vector.shape_cast %182 : vector<1x1x384xf32> to vector<1x384xf32>
    %184 = vector.broadcast %183 : vector<1x384xf32> to vector<32x384xf32>
    %185 = arith.addf %181, %184 : vector<32x384xf32>
    %186 = vector.extract_strided_slice %185 {offsets = [0, 0], sizes = [32, 32], strides = [1, 1]} : vector<32x384xf32> to vector<32x32xf32>
    %187 = vector.extract_strided_slice %185 {offsets = [0, 128], sizes = [32, 32], strides = [1, 1]} : vector<32x384xf32> to vector<32x32xf32>
    %188 = vector.extract_strided_slice %185 {offsets = [0, 256], sizes = [32, 32], strides = [1, 1]} : vector<32x384xf32> to vector<32x32xf32>
    %cst_88 = arith.constant dense<0.000000e+00> : vector<32x32xf32>
    %189 = tpu.matmul %186, %187, %cst_88 {dimension_numbers = #tpu.dot_dimension_numbers<[1], [1], [0], [0], [0, 0, 1, 0], [], []>} : vector<32x32xf32>, vector<32x32xf32>, vector<32x32xf32> -> vector<32x32xf32>
    %190 = arith.addf %189, %1 : vector<32x32xf32>
    %cst_89 = arith.constant dense<0xFF800000> : vector<32xf32>
    %191 = vector.multi_reduction <maximumf>, %190, %cst_89 [1] : vector<32x32xf32> to vector<32xf32>
    %192 = vector.shape_cast %191 : vector<32xf32> to vector<32x1xf32>
    %193 = vector.broadcast %192 : vector<32x1xf32> to vector<32x32xf32>
    %194 = arith.subf %190, %193 : vector<32x32xf32>
    %195 = math.exp %194 : vector<32x32xf32>
    %cst_90 = arith.constant dense<0.000000e+00> : vector<32xf32>
    %196 = vector.multi_reduction <add>, %195, %cst_90 [1] : vector<32x32xf32> to vector<32xf32>
    %197 = vector.shape_cast %196 : vector<32xf32> to vector<32x1xf32>
    %198 = vector.broadcast %197 : vector<32x1xf32> to vector<32x32xf32>
    %199 = arith.divf %195, %198 : vector<32x32xf32>
    %cst_91 = arith.constant dense<0.000000e+00> : vector<32x32xf32>
    %200 = tpu.matmul %199, %188, %cst_91 {dimension_numbers = #tpu.dot_dimension_numbers<[1], [0], [0], [1], [0, 0, 1, 1], [], []>} : vector<32x32xf32>, vector<32x32xf32>, vector<32x32xf32> -> vector<32x32xf32>
    %201 = vector.extract_strided_slice %185 {offsets = [0, 32], sizes = [32, 32], strides = [1, 1]} : vector<32x384xf32> to vector<32x32xf32>
    %202 = vector.extract_strided_slice %185 {offsets = [0, 160], sizes = [32, 32], strides = [1, 1]} : vector<32x384xf32> to vector<32x32xf32>
    %203 = vector.extract_strided_slice %185 {offsets = [0, 288], sizes = [32, 32], strides = [1, 1]} : vector<32x384xf32> to vector<32x32xf32>
    %cst_92 = arith.constant dense<0.000000e+00> : vector<32x32xf32>
    %204 = tpu.matmul %201, %202, %cst_92 {dimension_numbers = #tpu.dot_dimension_numbers<[1], [1], [0], [0], [0, 0, 1, 0], [], []>} : vector<32x32xf32>, vector<32x32xf32>, vector<32x32xf32> -> vector<32x32xf32>
    %205 = arith.addf %204, %1 : vector<32x32xf32>
    %cst_93 = arith.constant dense<0xFF800000> : vector<32xf32>
    %206 = vector.multi_reduction <maximumf>, %205, %cst_93 [1] : vector<32x32xf32> to vector<32xf32>
    %207 = vector.shape_cast %206 : vector<32xf32> to vector<32x1xf32>
    %208 = vector.broadcast %207 : vector<32x1xf32> to vector<32x32xf32>
    %209 = arith.subf %205, %208 : vector<32x32xf32>
    %210 = math.exp %209 : vector<32x32xf32>
    %cst_94 = arith.constant dense<0.000000e+00> : vector<32xf32>
    %211 = vector.multi_reduction <add>, %210, %cst_94 [1] : vector<32x32xf32> to vector<32xf32>
    %212 = vector.shape_cast %211 : vector<32xf32> to vector<32x1xf32>
    %213 = vector.broadcast %212 : vector<32x1xf32> to vector<32x32xf32>
    %214 = arith.divf %210, %213 : vector<32x32xf32>
    %cst_95 = arith.constant dense<0.000000e+00> : vector<32x32xf32>
    %215 = tpu.matmul %214, %203, %cst_95 {dimension_numbers = #tpu.dot_dimension_numbers<[1], [0], [0], [1], [0, 0, 1, 1], [], []>} : vector<32x32xf32>, vector<32x32xf32>, vector<32x32xf32> -> vector<32x32xf32>
    %216 = vector.extract_strided_slice %185 {offsets = [0, 64], sizes = [32, 32], strides = [1, 1]} : vector<32x384xf32> to vector<32x32xf32>
    %217 = vector.extract_strided_slice %185 {offsets = [0, 192], sizes = [32, 32], strides = [1, 1]} : vector<32x384xf32> to vector<32x32xf32>
    %218 = vector.extract_strided_slice %185 {offsets = [0, 320], sizes = [32, 32], strides = [1, 1]} : vector<32x384xf32> to vector<32x32xf32>
    %cst_96 = arith.constant dense<0.000000e+00> : vector<32x32xf32>
    %219 = tpu.matmul %216, %217, %cst_96 {dimension_numbers = #tpu.dot_dimension_numbers<[1], [1], [0], [0], [0, 0, 1, 0], [], []>} : vector<32x32xf32>, vector<32x32xf32>, vector<32x32xf32> -> vector<32x32xf32>
    %220 = arith.addf %219, %1 : vector<32x32xf32>
    %cst_97 = arith.constant dense<0xFF800000> : vector<32xf32>
    %221 = vector.multi_reduction <maximumf>, %220, %cst_97 [1] : vector<32x32xf32> to vector<32xf32>
    %222 = vector.shape_cast %221 : vector<32xf32> to vector<32x1xf32>
    %223 = vector.broadcast %222 : vector<32x1xf32> to vector<32x32xf32>
    %224 = arith.subf %220, %223 : vector<32x32xf32>
    %225 = math.exp %224 : vector<32x32xf32>
    %cst_98 = arith.constant dense<0.000000e+00> : vector<32xf32>
    %226 = vector.multi_reduction <add>, %225, %cst_98 [1] : vector<32x32xf32> to vector<32xf32>
    %227 = vector.shape_cast %226 : vector<32xf32> to vector<32x1xf32>
    %228 = vector.broadcast %227 : vector<32x1xf32> to vector<32x32xf32>
    %229 = arith.divf %225, %228 : vector<32x32xf32>
    %cst_99 = arith.constant dense<0.000000e+00> : vector<32x32xf32>
    %230 = tpu.matmul %229, %218, %cst_99 {dimension_numbers = #tpu.dot_dimension_numbers<[1], [0], [0], [1], [0, 0, 1, 1], [], []>} : vector<32x32xf32>, vector<32x32xf32>, vector<32x32xf32> -> vector<32x32xf32>
    %231 = vector.extract_strided_slice %185 {offsets = [0, 96], sizes = [32, 32], strides = [1, 1]} : vector<32x384xf32> to vector<32x32xf32>
    %232 = vector.extract_strided_slice %185 {offsets = [0, 224], sizes = [32, 32], strides = [1, 1]} : vector<32x384xf32> to vector<32x32xf32>
    %233 = vector.extract_strided_slice %185 {offsets = [0, 352], sizes = [32, 32], strides = [1, 1]} : vector<32x384xf32> to vector<32x32xf32>
    %cst_100 = arith.constant dense<0.000000e+00> : vector<32x32xf32>
    %234 = tpu.matmul %231, %232, %cst_100 {dimension_numbers = #tpu.dot_dimension_numbers<[1], [1], [0], [0], [0, 0, 1, 0], [], []>} : vector<32x32xf32>, vector<32x32xf32>, vector<32x32xf32> -> vector<32x32xf32>
    %235 = arith.addf %234, %1 : vector<32x32xf32>
    %cst_101 = arith.constant dense<0xFF800000> : vector<32xf32>
    %236 = vector.multi_reduction <maximumf>, %235, %cst_101 [1] : vector<32x32xf32> to vector<32xf32>
    %237 = vector.shape_cast %236 : vector<32xf32> to vector<32x1xf32>
    %238 = vector.broadcast %237 : vector<32x1xf32> to vector<32x32xf32>
    %239 = arith.subf %235, %238 : vector<32x32xf32>
    %240 = math.exp %239 : vector<32x32xf32>
    %cst_102 = arith.constant dense<0.000000e+00> : vector<32xf32>
    %241 = vector.multi_reduction <add>, %240, %cst_102 [1] : vector<32x32xf32> to vector<32xf32>
    %242 = vector.shape_cast %241 : vector<32xf32> to vector<32x1xf32>
    %243 = vector.broadcast %242 : vector<32x1xf32> to vector<32x32xf32>
    %244 = arith.divf %240, %243 : vector<32x32xf32>
    %cst_103 = arith.constant dense<0.000000e+00> : vector<32x32xf32>
    %245 = tpu.matmul %244, %233, %cst_103 {dimension_numbers = #tpu.dot_dimension_numbers<[1], [0], [0], [1], [0, 0, 1, 1], [], []>} : vector<32x32xf32>, vector<32x32xf32>, vector<32x32xf32> -> vector<32x32xf32>
    %246 = tpu.concatenate %200, %215, %230, %245 in 1 : vector<32x32xf32>, vector<32x32xf32>, vector<32x32xf32>, vector<32x32xf32> -> vector<32x128xf32>
    %c1_104 = arith.constant 1 : index
    %c0_105 = arith.constant 0 : index
    %c0_106 = arith.constant 0 : index
    %247 = vector.load %arg6[%c1_104, %c0_105, %c0_106] : memref<2x128x128xf32, #tpu.memory_space<vmem>>, vector<1x128x128xf32>
    %248 = vector.shape_cast %247 : vector<1x128x128xf32> to vector<128x128xf32>
    %cst_107 = arith.constant dense<0.000000e+00> : vector<32x128xf32>
    %249 = tpu.matmul %246, %248, %cst_107 {dimension_numbers = #tpu.dot_dimension_numbers<[1], [0], [0], [1], [0, 0, 1, 1], [], []>} : vector<32x128xf32>, vector<128x128xf32>, vector<32x128xf32> -> vector<32x128xf32>
    %c1_108 = arith.constant 1 : index
    %c0_109 = arith.constant 0 : index
    %c0_110 = arith.constant 0 : index
    %250 = vector.load %arg7[%c1_108, %c0_109, %c0_110] : memref<2x1x128xf32, #tpu.memory_space<vmem>>, vector<1x1x128xf32>
    %251 = vector.shape_cast %250 : vector<1x1x128xf32> to vector<1x128xf32>
    %252 = vector.broadcast %251 : vector<1x128xf32> to vector<32x128xf32>
    %253 = arith.addf %249, %252 : vector<32x128xf32>
    %254 = arith.addf %152, %253 : vector<32x128xf32>
    %c1_111 = arith.constant 1 : index
    %c0_112 = arith.constant 0 : index
    %c0_113 = arith.constant 0 : index
    %255 = vector.load %arg8[%c1_111, %c0_112, %c0_113] : memref<2x1x128xf32, #tpu.memory_space<vmem>>, vector<1x1x128xf32>
    %256 = vector.shape_cast %255 : vector<1x1x128xf32> to vector<1x128xf32>
    %c1_114 = arith.constant 1 : index
    %c0_115 = arith.constant 0 : index
    %c0_116 = arith.constant 0 : index
    %257 = vector.load %arg9[%c1_114, %c0_115, %c0_116] : memref<2x1x128xf32, #tpu.memory_space<vmem>>, vector<1x1x128xf32>
    %258 = vector.shape_cast %257 : vector<1x1x128xf32> to vector<1x128xf32>
    %cst_117 = arith.constant dense<0.000000e+00> : vector<32xf32>
    %259 = vector.multi_reduction <add>, %254, %cst_117 [1] : vector<32x128xf32> to vector<32xf32>
    %260 = vector.shape_cast %259 : vector<32xf32> to vector<32x1xf32>
    %cst_118 = arith.constant 1.280000e+02 : f32
    %261 = vector.broadcast %cst_118 : f32 to vector<32x1xf32>
    %262 = arith.divf %260, %261 : vector<32x1xf32>
    %263 = vector.broadcast %262 : vector<32x1xf32> to vector<32x128xf32>
    %264 = arith.subf %254, %263 : vector<32x128xf32>
    %265 = arith.mulf %264, %264 : vector<32x128xf32>
    %cst_119 = arith.constant dense<0.000000e+00> : vector<32xf32>
    %266 = vector.multi_reduction <add>, %265, %cst_119 [1] : vector<32x128xf32> to vector<32xf32>
    %267 = vector.shape_cast %266 : vector<32xf32> to vector<32x1xf32>
    %cst_120 = arith.constant 1.280000e+02 : f32
    %268 = vector.broadcast %cst_120 : f32 to vector<32x1xf32>
    %269 = arith.divf %267, %268 : vector<32x1xf32>
    %270 = vector.broadcast %262 : vector<32x1xf32> to vector<32x128xf32>
    %271 = arith.subf %254, %270 : vector<32x128xf32>
    %cst_121 = arith.constant 9.99999974E-6 : f32
    %272 = vector.broadcast %cst_121 : f32 to vector<32x1xf32>
    %273 = arith.addf %269, %272 : vector<32x1xf32>
    %274 = math.rsqrt %273 : vector<32x1xf32>
    %275 = vector.broadcast %274 : vector<32x1xf32> to vector<32x128xf32>
    %276 = arith.mulf %271, %275 : vector<32x128xf32>
    %277 = vector.broadcast %256 : vector<1x128xf32> to vector<32x128xf32>
    %278 = arith.mulf %276, %277 : vector<32x128xf32>
    %279 = vector.broadcast %258 : vector<1x128xf32> to vector<32x128xf32>
    %280 = arith.addf %278, %279 : vector<32x128xf32>
    %c1_122 = arith.constant 1 : index
    %c0_123 = arith.constant 0 : index
    %c0_124 = arith.constant 0 : index
    %281 = vector.load %arg10[%c1_122, %c0_123, %c0_124] : memref<2x128x512xf32, #tpu.memory_space<vmem>>, vector<1x128x512xf32>
    %282 = vector.shape_cast %281 : vector<1x128x512xf32> to vector<128x512xf32>
    %cst_125 = arith.constant dense<0.000000e+00> : vector<32x512xf32>
    %283 = tpu.matmul %280, %282, %cst_125 {dimension_numbers = #tpu.dot_dimension_numbers<[1], [0], [0], [1], [0, 0, 1, 1], [], []>} : vector<32x128xf32>, vector<128x512xf32>, vector<32x512xf32> -> vector<32x512xf32>
    %c1_126 = arith.constant 1 : index
    %c0_127 = arith.constant 0 : index
    %c0_128 = arith.constant 0 : index
    %284 = vector.load %arg11[%c1_126, %c0_127, %c0_128] : memref<2x1x512xf32, #tpu.memory_space<vmem>>, vector<1x1x512xf32>
    %285 = vector.shape_cast %284 : vector<1x1x512xf32> to vector<1x512xf32>
    %286 = vector.broadcast %285 : vector<1x512xf32> to vector<32x512xf32>
    %287 = arith.addf %283, %286 : vector<32x512xf32>
    %cst_129 = arith.constant 5.000000e-01 : f32
    %288 = vector.broadcast %cst_129 : f32 to vector<32x512xf32>
    %289 = arith.mulf %288, %287 : vector<32x512xf32>
    %cst_130 = arith.constant 0.707106769 : f32
    %290 = vector.broadcast %cst_130 : f32 to vector<32x512xf32>
    %291 = arith.mulf %287, %290 : vector<32x512xf32>
    %292 = math.erf %291 : vector<32x512xf32>
    %cst_131 = arith.constant 1.000000e+00 : f32
    %293 = vector.broadcast %cst_131 : f32 to vector<32x512xf32>
    %294 = arith.addf %293, %292 : vector<32x512xf32>
    %295 = arith.mulf %289, %294 : vector<32x512xf32>
    %c1_132 = arith.constant 1 : index
    %c0_133 = arith.constant 0 : index
    %c0_134 = arith.constant 0 : index
    %296 = vector.load %arg12[%c1_132, %c0_133, %c0_134] : memref<2x512x128xf32, #tpu.memory_space<vmem>>, vector<1x512x128xf32>
    %297 = vector.shape_cast %296 : vector<1x512x128xf32> to vector<512x128xf32>
    %cst_135 = arith.constant dense<0.000000e+00> : vector<32x128xf32>
    %298 = tpu.matmul %295, %297, %cst_135 {dimension_numbers = #tpu.dot_dimension_numbers<[1], [0], [0], [1], [0, 0, 1, 1], [], []>} : vector<32x512xf32>, vector<512x128xf32>, vector<32x128xf32> -> vector<32x128xf32>
    %c1_136 = arith.constant 1 : index
    %c0_137 = arith.constant 0 : index
    %c0_138 = arith.constant 0 : index
    %299 = vector.load %arg13[%c1_136, %c0_137, %c0_138] : memref<2x1x128xf32, #tpu.memory_space<vmem>>, vector<1x1x128xf32>
    %300 = vector.shape_cast %299 : vector<1x1x128xf32> to vector<1x128xf32>
    %301 = vector.broadcast %300 : vector<1x128xf32> to vector<32x128xf32>
    %302 = arith.addf %298, %301 : vector<32x128xf32>
    %303 = arith.addf %254, %302 : vector<32x128xf32>
    %c0_139 = arith.constant 0 : index
    %c0_140 = arith.constant 0 : index
    %304 = vector.load %arg14[%c0_139, %c0_140] : memref<1x128xf32, #tpu.memory_space<vmem>>, vector<1x128xf32>
    %c0_141 = arith.constant 0 : index
    %c0_142 = arith.constant 0 : index
    %305 = vector.load %arg15[%c0_141, %c0_142] : memref<1x128xf32, #tpu.memory_space<vmem>>, vector<1x128xf32>
    %cst_143 = arith.constant dense<0.000000e+00> : vector<32xf32>
    %306 = vector.multi_reduction <add>, %303, %cst_143 [1] : vector<32x128xf32> to vector<32xf32>
    %307 = vector.shape_cast %306 : vector<32xf32> to vector<32x1xf32>
    %cst_144 = arith.constant 1.280000e+02 : f32
    %308 = vector.broadcast %cst_144 : f32 to vector<32x1xf32>
    %309 = arith.divf %307, %308 : vector<32x1xf32>
    %310 = vector.broadcast %309 : vector<32x1xf32> to vector<32x128xf32>
    %311 = arith.subf %303, %310 : vector<32x128xf32>
    %312 = arith.mulf %311, %311 : vector<32x128xf32>
    %cst_145 = arith.constant dense<0.000000e+00> : vector<32xf32>
    %313 = vector.multi_reduction <add>, %312, %cst_145 [1] : vector<32x128xf32> to vector<32xf32>
    %314 = vector.shape_cast %313 : vector<32xf32> to vector<32x1xf32>
    %cst_146 = arith.constant 1.280000e+02 : f32
    %315 = vector.broadcast %cst_146 : f32 to vector<32x1xf32>
    %316 = arith.divf %314, %315 : vector<32x1xf32>
    %317 = vector.broadcast %309 : vector<32x1xf32> to vector<32x128xf32>
    %318 = arith.subf %303, %317 : vector<32x128xf32>
    %cst_147 = arith.constant 9.99999974E-6 : f32
    %319 = vector.broadcast %cst_147 : f32 to vector<32x1xf32>
    %320 = arith.addf %316, %319 : vector<32x1xf32>
    %321 = math.rsqrt %320 : vector<32x1xf32>
    %322 = vector.broadcast %321 : vector<32x1xf32> to vector<32x128xf32>
    %323 = arith.mulf %318, %322 : vector<32x128xf32>
    %324 = vector.broadcast %304 : vector<1x128xf32> to vector<32x128xf32>
    %325 = arith.mulf %323, %324 : vector<32x128xf32>
    %326 = vector.broadcast %305 : vector<1x128xf32> to vector<32x128xf32>
    %327 = arith.addf %325, %326 : vector<32x128xf32>
    %c0_148 = arith.constant 0 : index
    %c0_149 = arith.constant 0 : index
    %328 = vector.load %arg16[%c0_148, %c0_149] : memref<128x256xf32, #tpu.memory_space<vmem>>, vector<128x256xf32>
    %cst_150 = arith.constant dense<0.000000e+00> : vector<32x256xf32>
    %329 = tpu.matmul %327, %328, %cst_150 {dimension_numbers = #tpu.dot_dimension_numbers<[1], [0], [0], [1], [0, 0, 1, 1], [], []>} : vector<32x128xf32>, vector<128x256xf32>, vector<32x256xf32> -> vector<32x256xf32>
    %c0_151 = arith.constant 0 : index
    %c0_152 = arith.constant 0 : index
    %330 = vector.load %arg17[%c0_151, %c0_152] : memref<32x256xf32, #tpu.memory_space<vmem>>, vector<32x256xf32>
    tpu.vector_store %arg17[%c0_151, %c0_152], %329 {strides = array<i32>} : memref<32x256xf32, #tpu.memory_space<vmem>>, vector<32x256xf32>,
    return
  }
}

</mosaic_0001>

<llo_original>
// kernel: simple_transformer_forward.1
$region0: #{simple_transformer_forward.1}
  #allocation0 [shape = 'u32[]', space=smem, size = 0x4, offset = 0x4, fixed_abs, tag = 'smem constant byte address 0x4 - core index']
  #allocation1 [shape = 'u32[144,128]{1,0:T(1,128)}', space=vmem, size = 0x12000, scoped, tag = 'internal scratch']
  %s0 = inlined_call_operand.vmem [shape: f32[32,128], index: 0, kind: input, shape index: {}]
  %s1 = inlined_call_operand.vmem [shape: f32[32,32], index: 1, kind: input, shape index: {}]
  %s2 = inlined_call_operand.vmem [shape: f32[2,1,128], index: 2, kind: input, shape index: {}]
  %s3 = inlined_call_operand.vmem [shape: f32[2,1,128], index: 3, kind: input, shape index: {}]
  %s4 = inlined_call_operand.hbm [shape: f32[2,128,384], index: 4, kind: input, shape index: {}]
  %s5 = inlined_call_operand.vmem [shape: f32[2,1,384], index: 5, kind: input, shape index: {}]
  %s6 = inlined_call_operand.vmem [shape: f32[2,128,128], index: 6, kind: input, shape index: {}]
  %s7 = inlined_call_operand.vmem [shape: f32[2,1,128], index: 7, kind: input, shape index: {}]
  %s8 = inlined_call_operand.vmem [shape: f32[2,1,128], index: 8, kind: input, shape index: {}]
  %s9 = inlined_call_operand.vmem [shape: f32[2,1,128], index: 9, kind: input, shape index: {}]
  %s10 = inlined_call_operand.hbm [shape: f32[2,128,512], index: 10, kind: input, shape index: {}]
  %s11 = inlined_call_operand.vmem [shape: f32[2,1,512], index: 11, kind: input, shape index: {}]
  %s12 = inlined_call_operand.hbm [shape: f32[2,512,128], index: 12, kind: input, shape index: {}]
  %s13 = inlined_call_operand.vmem [shape: f32[2,1,128], index: 13, kind: input, shape index: {}]
  %s14 = inlined_call_operand.vmem [shape: f32[1,128], index: 14, kind: input, shape index: {}]
  %s15 = inlined_call_operand.vmem [shape: f32[1,128], index: 15, kind: input, shape index: {}]
  %s16 = inlined_call_operand.vmem [shape: f32[128,256], index: 16, kind: input, shape index: {}]
  %s17 = inlined_call_operand.hbm [shape: f32[32,256], index: 17, kind: output, shape index: {}]
  %s18 = sld [smem:[#allocation0]]
  $region90: #{simple_transformer_forward.1} parent=0
    _
  %s20 = ssub.s32 1, %s18
  %s21 = scalar_select 0, %s20, %s18
  $region1: #{simple_transformer_forward.1} parent=0
    #allocation2 [shape = 'u8[393216]{0}', space=vmem, size = 0x60000, scoped, tag = 'input window, operand 4, single buffered']
    #allocation3 [shape = 's32[1]{0}', space=sflag, size = 0x4, scoped, tag = 'scoped memory for simple_transformer_forward.1']
    #allocation4 [shape = 's32[1]{0}', space=sflag, size = 0x4, scoped, tag = 'scoped memory for simple_transformer_forward.1']
    #allocation5 [shape = 'u8[524288]{0}', space=vmem, size = 0x80000, scoped, tag = 'input window, operand 10, single buffered']
    #allocation6 [shape = 's32[1]{0}', space=sflag, size = 0x4, scoped, tag = 'scoped memory for simple_transformer_forward.1']
    #allocation7 [shape = 'u8[524288]{0}', space=vmem, size = 0x80000, scoped, tag = 'input window, operand 12, single buffered']
    #allocation8 [shape = 'u8[32768]{0}', space=vmem, size = 0x8000, scoped, tag = 'output window, operand 0, single buffered']
    %22 = vsyncpa [#allocation3], 0
    %23 = vsyncpa [#allocation6], 0
    %24 = vsyncpa [#allocation4], 0
    // Predicated region
    $region2: #{simple_transformer_forward.1} parent=1 // pred_check
      _
    $region3: #{simple_transformer_forward.1} parent=1 // pred_check_branch
      %26 = sbr.rel (0) target = $region5
    $region4: #{simple_transformer_forward.1} parent=1 // pred_region
      _
    $region5: #{simple_transformer_forward.1} parent=1 // pred_fallthru
      _
    // Predicated region
    $region6: #{simple_transformer_forward.1} parent=1 // pred_check
      _
    $region7: #{simple_transformer_forward.1} parent=1 // pred_check_branch
      %28 = sbr.rel (0) target = $region9
    $region8: #{simple_transformer_forward.1} parent=1 // pred_region
      _
    $region9: #{simple_transformer_forward.1} parent=1 // pred_fallthru
      _
    // Predicated region
    $region10: #{simple_transformer_forward.1} parent=1 // pred_check
      _
    $region11: #{simple_transformer_forward.1} parent=1 // pred_check_branch
      %30 = sbr.rel (0) target = $region13
    $region12: #{simple_transformer_forward.1} parent=1 // pred_region
      _
    $region13: #{simple_transformer_forward.1} parent=1 // pred_fallthru
      _
    // Predicated region
    $region14: #{simple_transformer_forward.1} parent=1 // pred_check
      _
    $region15: #{simple_transformer_forward.1} parent=1 // pred_check_branch
      %32 = sbr.rel (0) target = $region17
    $region16: #{simple_transformer_forward.1} parent=1 // pred_region
      _
    $region17: #{simple_transformer_forward.1} parent=1 // pred_fallthru
      _
    // Predicated region
    $region18: #{simple_transformer_forward.1} parent=1 // pred_check
      _
    $region19: #{simple_transformer_forward.1} parent=1 // pred_check_branch
      %34 = sbr.rel (0) target = $region21
    $region20: #{simple_transformer_forward.1} parent=1 // pred_region
      %s36 = ssub.s32 12288, 12288
      %37 = vsyncadd [#allocation3], %s36
      %s38 = sshll.u32 [#allocation2], 4
      %s39 = int_to_ptr.vmem [resolvable:$true] %s38
      %44 = dma.hbm_to_vmem [thread:$0]  %s4, 12288, %s39, [#allocation3], 384, 384, 24
    $region21: #{simple_transformer_forward.1} parent=1 // pred_fallthru
      _
    // Predicated region
    $region22: #{simple_transformer_forward.1} parent=1 // pred_check
      _
    $region23: #{simple_transformer_forward.1} parent=1 // pred_check_branch
      %46 = sbr.rel (0) target = $region25
    $region24: #{simple_transformer_forward.1} parent=1 // pred_region
      _
    $region25: #{simple_transformer_forward.1} parent=1 // pred_fallthru
      _
    // Predicated region
    $region26: #{simple_transformer_forward.1} parent=1 // pred_check
      _
    $region27: #{simple_transformer_forward.1} parent=1 // pred_check_branch
      %48 = sbr.rel (0) target = $region29
    $region28: #{simple_transformer_forward.1} parent=1 // pred_region
      _
    $region29: #{simple_transformer_forward.1} parent=1 // pred_fallthru
      _
    // Predicated region
    $region30: #{simple_transformer_forward.1} parent=1 // pred_check
      _
    $region31: #{simple_transformer_forward.1} parent=1 // pred_check_branch
      %50 = sbr.rel (0) target = $region33
    $region32: #{simple_transformer_forward.1} parent=1 // pred_region
      _
    $region33: #{simple_transformer_forward.1} parent=1 // pred_fallthru
      _
    // Predicated region
    $region34: #{simple_transformer_forward.1} parent=1 // pred_check
      _
    $region35: #{simple_transformer_forward.1} parent=1 // pred_check_branch
      %52 = sbr.rel (0) target = $region37
    $region36: #{simple_transformer_forward.1} parent=1 // pred_region
      _
    $region37: #{simple_transformer_forward.1} parent=1 // pred_fallthru
      _
    // Predicated region
    $region38: #{simple_transformer_forward.1} parent=1 // pred_check
      _
    $region39: #{simple_transformer_forward.1} parent=1 // pred_check_branch
      %54 = sbr.rel (0) target = $region41
    $region40: #{simple_transformer_forward.1} parent=1 // pred_region
      _
    $region41: #{simple_transformer_forward.1} parent=1 // pred_fallthru
      _
    // Predicated region
    $region42: #{simple_transformer_forward.1} parent=1 // pred_check
      _
    $region43: #{simple_transformer_forward.1} parent=1 // pred_check_branch
      %56 = sbr.rel (0) target = $region45
    $region44: #{simple_transformer_forward.1} parent=1 // pred_region
      %s58 = ssub.s32 16384, 16384
      %59 = vsyncadd [#allocation6], %s58
      %s60 = sshll.u32 [#allocation5], 4
      %s61 = int_to_ptr.vmem [resolvable:$true] %s60
      %66 = dma.hbm_to_vmem [thread:$0]  %s10, 16384, %s61, [#allocation6], 512, 512, 32
    $region45: #{simple_transformer_forward.1} parent=1 // pred_fallthru
      _
    // Predicated region
    $region46: #{simple_transformer_forward.1} parent=1 // pred_check
      _
    $region47: #{simple_transformer_forward.1} parent=1 // pred_check_branch
      %68 = sbr.rel (0) target = $region49
    $region48: #{simple_transformer_forward.1} parent=1 // pred_region
      _
    $region49: #{simple_transformer_forward.1} parent=1 // pred_fallthru
      _
    // Predicated region
    $region50: #{simple_transformer_forward.1} parent=1 // pred_check
      _
    $region51: #{simple_transformer_forward.1} parent=1 // pred_check_branch
      %70 = sbr.rel (0) target = $region53
    $region52: #{simple_transformer_forward.1} parent=1 // pred_region
      %s72 = ssub.s32 16384, 16384
      %73 = vsyncadd [#allocation6], %s72
      %s74 = sshll.u32 [#allocation7], 4
      %s75 = int_to_ptr.vmem [resolvable:$true] %s74
      %80 = dma.hbm_to_vmem [thread:$0]  %s12, 16384, %s75, [#allocation6], 128, 128, 8
    $region53: #{simple_transformer_forward.1} parent=1 // pred_fallthru
      _
    // Predicated region
    $region54: #{simple_transformer_forward.1} parent=1 // pred_check
      _
    $region55: #{simple_transformer_forward.1} parent=1 // pred_check_branch
      %82 = sbr.rel (0) target = $region57
    $region56: #{simple_transformer_forward.1} parent=1 // pred_region
      _
    $region57: #{simple_transformer_forward.1} parent=1 // pred_fallthru
      _
    // Predicated region
    $region58: #{simple_transformer_forward.1} parent=1 // pred_check
      _
    $region59: #{simple_transformer_forward.1} parent=1 // pred_check_branch
      %84 = sbr.rel (0) target = $region61
    $region60: #{simple_transformer_forward.1} parent=1 // pred_region
      _
    $region61: #{simple_transformer_forward.1} parent=1 // pred_fallthru
      _
    // Predicated region
    $region62: #{simple_transformer_forward.1} parent=1 // pred_check
      _
    $region63: #{simple_transformer_forward.1} parent=1 // pred_check_branch
      %86 = sbr.rel (0) target = $region65
    $region64: #{simple_transformer_forward.1} parent=1 // pred_region
      _
    $region65: #{simple_transformer_forward.1} parent=1 // pred_fallthru
      _
    // Predicated region
    $region66: #{simple_transformer_forward.1} parent=1 // pred_check
      _
    $region67: #{simple_transformer_forward.1} parent=1 // pred_check_branch
      %88 = sbr.rel (0) target = $region69
    $region68: #{simple_transformer_forward.1} parent=1 // pred_region
      _
    $region69: #{simple_transformer_forward.1} parent=1 // pred_fallthru
      _
    // Predicated region
    $region70: #{simple_transformer_forward.1} parent=1 // pred_check
      _
    $region71: #{simple_transformer_forward.1} parent=1 // pred_check_branch
      %90 = sbr.rel (0) target = $region73
    $region72: #{simple_transformer_forward.1} parent=1 // pred_region
      %91 = dma.done [#allocation3], 12288
    $region73: #{simple_transformer_forward.1} parent=1 // pred_fallthru
      _
    // Predicated region
    $region74: #{simple_transformer_forward.1} parent=1 // pred_check
      _
    $region75: #{simple_transformer_forward.1} parent=1 // pred_check_branch
      %93 = sbr.rel (0) target = $region77
    $region76: #{simple_transformer_forward.1} parent=1 // pred_region
      %94 = dma.done [#allocation6], 16384
    $region77: #{simple_transformer_forward.1} parent=1 // pred_fallthru
      _
    // Predicated region
    $region78: #{simple_transformer_forward.1} parent=1 // pred_check
      _
    $region79: #{simple_transformer_forward.1} parent=1 // pred_check_branch
      %96 = sbr.rel (0) target = $region81
    $region80: #{simple_transformer_forward.1} parent=1 // pred_region
      %97 = dma.done [#allocation6], 16384
    $region81: #{simple_transformer_forward.1} parent=1 // pred_fallthru
      _
    %v98 = vld [vmem:[%s0] sm:$0xff]
    %v99 = vld [vmem:[%s0 + $0x8] sm:$0xff]
    %v100 = vld [vmem:[%s0 + $0x10] sm:$0xff]
    %v101 = vld [vmem:[%s0 + $0x18] sm:$0xff]
    %v102 = vld [vmem:[%s1] sm:$0xff]
    %v103 = vld [vmem:[%s1 + $0x8] sm:$0xff]
    %v104 = vld [vmem:[%s1 + $0x10] sm:$0xff]
    %v105 = vld [vmem:[%s1 + $0x18] sm:$0xff]
    %v106 = vld [vmem:[%s2] sm:$0x1]
    %v107 = vld [vmem:[%s3] sm:$0x1]
    %108 = vadd.xlane.f32.xlu0 %v98
    %v109 = vpop.xlane.xlu0 %108
    %110 = vadd.xlane.f32.xlu0 %v99
    %v111 = vpop.xlane.xlu0 %110
    %112 = vadd.xlane.f32.xlu0 %v100
    %v113 = vpop.xlane.xlu0 %112
    %114 = vadd.xlane.f32.xlu0 %v101
    %v115 = vpop.xlane.xlu0 %114
    %v116 = vrcp.pop 128.0
    %v117 = vmul.f32 %v109, %v116
    %v118 = vmul.f32 %v111, %v116
    %v119 = vmul.f32 %v113, %v116
    %v120 = vmul.f32 %v115, %v116
    %v121 = vsub.f32 %v98, %v117
    %v122 = vsub.f32 %v99, %v118
    %v123 = vsub.f32 %v100, %v119
    %v124 = vsub.f32 %v101, %v120
    %v125 = vmul.f32 %v121, %v121
    %v126 = vmul.f32 %v122, %v122
    %v127 = vmul.f32 %v123, %v123
    %v128 = vmul.f32 %v124, %v124
    %129 = vadd.xlane.f32.xlu0 %v125
    %v130 = vpop.xlane.xlu0 %129
    %131 = vadd.xlane.f32.xlu0 %v126
    %v132 = vpop.xlane.xlu0 %131
    %133 = vadd.xlane.f32.xlu0 %v127
    %v134 = vpop.xlane.xlu0 %133
    %135 = vadd.xlane.f32.xlu0 %v128
    %v136 = vpop.xlane.xlu0 %135
    %v137 = vmul.f32 %v130, %v116
    %v138 = vmul.f32 %v132, %v116
    %v139 = vmul.f32 %v134, %v116
    %v140 = vmul.f32 %v136, %v116
    %v141 = vadd.f32 %v137, 1e-05
    %v142 = vadd.f32 %v138, 1e-05
    %v143 = vadd.f32 %v139, 1e-05
    %v144 = vadd.f32 %v140, 1e-05
    %v145 = vrsqrt.pop %v141
    %v146 = vrsqrt.pop %v142
    %v147 = vrsqrt.pop %v143
    %v148 = vrsqrt.pop %v144
    %v149 = vmul.f32 %v121, %v145
    %v150 = vmul.f32 %v122, %v146
    %v151 = vmul.f32 %v123, %v147
    %v152 = vmul.f32 %v124, %v148
    %v154 = vlaneseq
    %v155 = vshrl.u32 %v154, 7
    %v156 = vsub.s32 0, %v155
    %v157 = vrot.slane %v106, %v156
    %v159 = vmul.f32 %v149, %v157
    %v160 = vmul.f32 %v150, %v157
    %v161 = vmul.f32 %v151, %v157
    %v162 = vmul.f32 %v152, %v157
    %v164 = vlaneseq
    %v165 = vshrl.u32 %v164, 7
    %v166 = vsub.s32 0, %v165
    %v167 = vrot.slane %v107, %v166
    %v169 = vadd.f32 %v159, %v167
    %v170 = vadd.f32 %v160, %v167
    %v171 = vadd.f32 %v161, %v167
    %v172 = vadd.f32 %v162, %v167
    %v173 = vld [vmem:[#allocation2] sm:$0xff]
    %v174 = vld [vmem:[#allocation2 + $0x8] sm:$0xff]
    %v175 = vld [vmem:[#allocation2 + $0x10] sm:$0xff]
    %v176 = vld [vmem:[#allocation2 + $0x18] sm:$0xff]
    %v177 = vld [vmem:[#allocation2 + $0x20] sm:$0xff]
    %v178 = vld [vmem:[#allocation2 + $0x28] sm:$0xff]
    %v179 = vld [vmem:[#allocation2 + $0x30] sm:$0xff]
    %v180 = vld [vmem:[#allocation2 + $0x38] sm:$0xff]
    %v181 = vld [vmem:[#allocation2 + $0x40] sm:$0xff]
    %v182 = vld [vmem:[#allocation2 + $0x48] sm:$0xff]
    %v183 = vld [vmem:[#allocation2 + $0x50] sm:$0xff]
    %v184 = vld [vmem:[#allocation2 + $0x58] sm:$0xff]
    %v185 = vld [vmem:[#allocation2 + $0x60] sm:$0xff]
    %v186 = vld [vmem:[#allocation2 + $0x68] sm:$0xff]
    %v187 = vld [vmem:[#allocation2 + $0x70] sm:$0xff]
    %v188 = vld [vmem:[#allocation2 + $0x78] sm:$0xff]
    %v189 = vld [vmem:[#allocation2 + $0x80] sm:$0xff]
    %v190 = vld [vmem:[#allocation2 + $0x88] sm:$0xff]
    %v191 = vld [vmem:[#allocation2 + $0x90] sm:$0xff]
    %v192 = vld [vmem:[#allocation2 + $0x98] sm:$0xff]
    %v193 = vld [vmem:[#allocation2 + $0xa0] sm:$0xff]
    %v194 = vld [vmem:[#allocation2 + $0xa8] sm:$0xff]
    %v195 = vld [vmem:[#allocation2 + $0xb0] sm:$0xff]
    %v196 = vld [vmem:[#allocation2 + $0xb8] sm:$0xff]
    %v197 = vld [vmem:[#allocation2 + $0xc0] sm:$0xff]
    %v198 = vld [vmem:[#allocation2 + $0xc8] sm:$0xff]
    %v199 = vld [vmem:[#allocation2 + $0xd0] sm:$0xff]
    %v200 = vld [vmem:[#allocation2 + $0xd8] sm:$0xff]
    %v201 = vld [vmem:[#allocation2 + $0xe0] sm:$0xff]
    %v202 = vld [vmem:[#allocation2 + $0xe8] sm:$0xff]
    %v203 = vld [vmem:[#allocation2 + $0xf0] sm:$0xff]
    %v204 = vld [vmem:[#allocation2 + $0xf8] sm:$0xff]
    %v205 = vld [vmem:[#allocation2 + $0x100] sm:$0xff]
    %v206 = vld [vmem:[#allocation2 + $0x108] sm:$0xff]
    %v207 = vld [vmem:[#allocation2 + $0x110] sm:$0xff]
    %v208 = vld [vmem:[#allocation2 + $0x118] sm:$0xff]
    %v209 = vld [vmem:[#allocation2 + $0x120] sm:$0xff]
    %v210 = vld [vmem:[#allocation2 + $0x128] sm:$0xff]
    %v211 = vld [vmem:[#allocation2 + $0x130] sm:$0xff]
    %v212 = vld [vmem:[#allocation2 + $0x138] sm:$0xff]
    %v213 = vld [vmem:[#allocation2 + $0x140] sm:$0xff]
    %v214 = vld [vmem:[#allocation2 + $0x148] sm:$0xff]
    %v215 = vld [vmem:[#allocation2 + $0x150] sm:$0xff]
    %v216 = vld [vmem:[#allocation2 + $0x158] sm:$0xff]
    %v217 = vld [vmem:[#allocation2 + $0x160] sm:$0xff]
    %v218 = vld [vmem:[#allocation2 + $0x168] sm:$0xff]
    %v219 = vld [vmem:[#allocation2 + $0x170] sm:$0xff]
    %v220 = vld [vmem:[#allocation2 + $0x178] sm:$0xff]
    %v221 = vld [vmem:[%s5] sm:$0x7]
    %v223 = vlaneseq
    %v224 = vshrl.u32 %v223, 7
    %v225 = vsub.s32 0, %v224
    %v226 = vrot.slane %v221, %v225
    %v227 = vlaneseq
    %v228 = vshrl.u32 %v227, 7
    %v229 = vsub.s32 1, %v228
    %v230 = vrot.slane %v221, %v229
    %v231 = vlaneseq
    %v232 = vshrl.u32 %v231, 7
    %v233 = vsub.s32 2, %v232
    %v234 = vrot.slane %v221, %v233
    %238 = vmatprep.subr.mxu0 %v174
    %239 = vmatpush1.msra.mxu0 %v173
    %240 = vmatprep.subr.mxu0 %v177
    %241 = vmatpush1.msra.mxu0 %v176
    %242 = vmatprep.subr.mxu0 %v180
    %243 = vmatpush1.msra.mxu0 %v179
    %244 = vmatprep.subr.mxu0 %v183
    %245 = vmatpush1.msra.mxu0 %v182
    %246 = vmatprep.subr.mxu0 %v186
    %247 = vmatpush1.msra.mxu0 %v185
    %248 = vmatprep.subr.mxu0 %v189
    %249 = vmatpush1.msra.mxu0 %v188
    %250 = vmatprep.subr.mxu0 %v192
    %251 = vmatpush1.msra.mxu0 %v191
    %252 = vmatprep.subr.mxu0 %v195
    %253 = vmatpush1.msra.mxu0 %v194
    %254 = vmatprep.subr.mxu0 %v198
    %255 = vmatpush1.msra.mxu0 %v197
    %256 = vmatprep.subr.mxu0 %v201
    %257 = vmatpush1.msra.mxu0 %v200
    %258 = vmatprep.subr.mxu0 %v204
    %259 = vmatpush1.msra.mxu0 %v203
    %260 = vmatprep.subr.mxu0 %v207
    %261 = vmatpush1.msra.mxu0 %v206
    %262 = vmatprep.subr.mxu0 %v210
    %263 = vmatpush1.msra.mxu0 %v209
    %264 = vmatprep.subr.mxu0 %v213
    %265 = vmatpush1.msra.mxu0 %v212
    %266 = vmatprep.subr.mxu0 %v216
    %267 = vmatpush1.msra.mxu0 %v215
    %268 = vmatprep.subr.mxu0 %v219
    %269 = vmatpush1.msra.mxu0 %v218
    %270 = vmatprep.subr.mxu0 0.0
    %271 = vmatpush1.msra.mxu0 0.0
    %272 = vmatprep.subr.mxu0 0.0
    %273 = vmatpush1.msra.mxu0 0.0
    %274 = vmatprep.subr.mxu0 0.0
    %275 = vmatpush1.msra.mxu0 0.0
    %276 = vmatprep.subr.mxu0 0.0
    %277 = vmatpush1.msra.mxu0 0.0
    %278 = vmatprep.subr.mxu0 0.0
    %279 = vmatpush1.msra.mxu0 0.0
    %280 = vmatprep.subr.mxu0 0.0
    %281 = vmatpush1.msra.mxu0 0.0
    %282 = vmatprep.subr.mxu0 0.0
    %283 = vmatpush1.msra.mxu0 0.0
    %284 = vmatprep.subr.mxu0 0.0
    %285 = vmatpush1.msra.mxu0 0.0
    %286 = vmatprep.subr.mxu0 0.0
    %287 = vmatpush1.msra.mxu0 0.0
    %288 = vmatprep.subr.mxu0 0.0
    %289 = vmatpush1.msra.mxu0 0.0
    %290 = vmatprep.subr.mxu0 0.0
    %291 = vmatpush1.msra.mxu0 0.0
    %292 = vmatprep.subr.mxu0 0.0
    %293 = vmatpush1.msra.mxu0 0.0
    %294 = vmatprep.subr.mxu0 0.0
    %295 = vmatpush1.msra.mxu0 0.0
    %296 = vmatprep.subr.mxu0 0.0
    %297 = vmatpush1.msra.mxu0 0.0
    %298 = vmatprep.subr.mxu0 0.0
    %299 = vmatpush1.msra.mxu0 0.0
    %300 = vmatprep.subr.mxu0 0.0
    %301 = vmatpush1.msra.mxu0 0.0
    %302 = vmatprep.mubr.f32.mxu0 0.0
    %303 = vmatmul.mubr.f32.gmra.mrb[0].mxu0 %v169
    %v304 = vpop.f32.mrb[0].mxu0
    %v305 = vadd.f32 %v226, %v304
    %v306 = vpop.f32.mrb[0].mxu0
    %v307 = vadd.f32 %v230, %v306
    %308 = vmatprep.mubr.f32.mxu0 0.0
    %309 = vmatmul.mubr.f32.gmra.mrb[0].mxu0 %v170
    %v310 = vpop.f32.mrb[0].mxu0
    %v311 = vadd.f32 %v226, %v310
    %v312 = vpop.f32.mrb[0].mxu0
    %v313 = vadd.f32 %v230, %v312
    %314 = vmatprep.mubr.f32.mxu0 0.0
    %315 = vmatmul.mubr.f32.gmra.mrb[0].mxu0 %v171
    %v316 = vpop.f32.mrb[0].mxu0
    %v317 = vadd.f32 %v226, %v316
    %v318 = vpop.f32.mrb[0].mxu0
    %v319 = vadd.f32 %v230, %v318
    %320 = vmatprep.mubr.f32.mxu0 0.0
    %321 = vmatmul.mubr.f32.gmra.mrb[0].mxu0 %v172
    %v322 = vpop.f32.mrb[0].mxu0
    %v323 = vadd.f32 %v226, %v322
    %v324 = vpop.f32.mrb[0].mxu0
    %v325 = vadd.f32 %v230, %v324
    %326 = vdwg.mxu0
    %327 = vmatprep.subr.mxu0 0.0
    %328 = vmatpush1.msra.mxu0 %v175
    %329 = vmatprep.subr.mxu0 0.0
    %330 = vmatpush1.msra.mxu0 %v178
    %331 = vmatprep.subr.mxu0 0.0
    %332 = vmatpush1.msra.mxu0 %v181
    %333 = vmatprep.subr.mxu0 0.0
    %334 = vmatpush1.msra.mxu0 %v184
    %335 = vmatprep.subr.mxu0 0.0
    %336 = vmatpush1.msra.mxu0 %v187
    %337 = vmatprep.subr.mxu0 0.0
    %338 = vmatpush1.msra.mxu0 %v190
    %339 = vmatprep.subr.mxu0 0.0
    %340 = vmatpush1.msra.mxu0 %v193
    %341 = vmatprep.subr.mxu0 0.0
    %342 = vmatpush1.msra.mxu0 %v196
    %343 = vmatprep.subr.mxu0 0.0
    %344 = vmatpush1.msra.mxu0 %v199
    %345 = vmatprep.subr.mxu0 0.0
    %346 = vmatpush1.msra.mxu0 %v202
    %347 = vmatprep.subr.mxu0 0.0
    %348 = vmatpush1.msra.mxu0 %v205
    %349 = vmatprep.subr.mxu0 0.0
    %350 = vmatpush1.msra.mxu0 %v208
    %351 = vmatprep.subr.mxu0 0.0
    %352 = vmatpush1.msra.mxu0 %v211
    %353 = vmatprep.subr.mxu0 0.0
    %354 = vmatpush1.msra.mxu0 %v214
    %355 = vmatprep.subr.mxu0 0.0
    %356 = vmatpush1.msra.mxu0 %v217
    %357 = vmatprep.subr.mxu0 0.0
    %358 = vmatpush1.msra.mxu0 %v220
    %359 = vmatprep.subr.mxu0 0.0
    %360 = vmatpush1.msra.mxu0 0.0
    %361 = vmatprep.subr.mxu0 0.0
    %362 = vmatpush1.msra.mxu0 0.0
    %363 = vmatprep.subr.mxu0 0.0
    %364 = vmatpush1.msra.mxu0 0.0
    %365 = vmatprep.subr.mxu0 0.0
    %366 = vmatpush1.msra.mxu0 0.0
    %367 = vmatprep.subr.mxu0 0.0
    %368 = vmatpush1.msra.mxu0 0.0
    %369 = vmatprep.subr.mxu0 0.0
    %370 = vmatpush1.msra.mxu0 0.0
    %371 = vmatprep.subr.mxu0 0.0
    %372 = vmatpush1.msra.mxu0 0.0
    %373 = vmatprep.subr.mxu0 0.0
    %374 = vmatpush1.msra.mxu0 0.0
    %375 = vmatprep.subr.mxu0 0.0
    %376 = vmatpush1.msra.mxu0 0.0
    %377 = vmatprep.subr.mxu0 0.0
    %378 = vmatpush1.msra.mxu0 0.0
    %379 = vmatprep.subr.mxu0 0.0
    %380 = vmatpush1.msra.mxu0 0.0
    %381 = vmatprep.subr.mxu0 0.0
    %382 = vmatpush1.msra.mxu0 0.0
    %383 = vmatprep.subr.mxu0 0.0
    %384 = vmatpush1.msra.mxu0 0.0
    %385 = vmatprep.subr.mxu0 0.0
    %386 = vmatpush1.msra.mxu0 0.0
    %387 = vmatprep.subr.mxu0 0.0
    %388 = vmatpush1.msra.mxu0 0.0
    %389 = vmatprep.subr.mxu0 0.0
    %390 = vmatpush1.msra.mxu0 0.0
    %391 = vmatprep.mubr.f32.mxu0 0.0
    %392 = vmatmul.mubr.f32.gmra.mrb[0].mxu0 %v169
    %v393 = vpop.f32.mrb[0].mxu0
    %v394 = vadd.f32 %v234, %v393
    %v395 = vpop.f32.mrb[0].mxu0
    %396 = vmatprep.mubr.f32.mxu0 0.0
    %397 = vmatmul.mubr.f32.gmra.mrb[0].mxu0 %v170
    %v398 = vpop.f32.mrb[0].mxu0
    %v399 = vadd.f32 %v234, %v398
    %v400 = vpop.f32.mrb[0].mxu0
    %401 = vmatprep.mubr.f32.mxu0 0.0
    %402 = vmatmul.mubr.f32.gmra.mrb[0].mxu0 %v171
    %v403 = vpop.f32.mrb[0].mxu0
    %v404 = vadd.f32 %v234, %v403
    %v405 = vpop.f32.mrb[0].mxu0
    %406 = vmatprep.mubr.f32.mxu0 0.0
    %407 = vmatmul.mubr.f32.gmra.mrb[0].mxu0 %v172
    %v408 = vpop.f32.mrb[0].mxu0
    %v409 = vadd.f32 %v234, %v408
    %v410 = vpop.f32.mrb[0].mxu0
    %411 = vdwg.mxu0
    %vm412 = vcmask 261120
    %v414 = vsel %vm412, %v305, 0
    %v417 = vsel %vm412, %v311, 0
    %v420 = vsel %vm412, %v317, 0
    %v423 = vsel %vm412, %v323, 0
    %v426 = vsel %vm412, %v307, 0
    %v429 = vsel %vm412, %v313, 0
    %v432 = vsel %vm412, %v319, 0
    %v435 = vsel %vm412, %v325, 0
    %437 = vmatprep.subr.mxu0 0.0
    %438 = vmatpush1.xpose.msra.mxu0 %v426
    %439 = vmatprep.subr.mxu0 0.0
    %440 = vmatpush1.xpose.msra.mxu0 %v429
    %441 = vmatprep.subr.mxu0 0.0
    %442 = vmatpush1.xpose.msra.mxu0 %v432
    %443 = vmatprep.subr.mxu0 0.0
    %444 = vmatpush1.xpose.msra.mxu0 %v435
    %445 = vmatprep.subr.mxu0 0.0
    %446 = vmatpush1.xpose.msra.mxu0 0.0
    %447 = vmatprep.subr.mxu0 0.0
    %448 = vmatpush1.xpose.msra.mxu0 0.0
    %449 = vmatprep.subr.mxu0 0.0
    %450 = vmatpush1.xpose.msra.mxu0 0.0
    %451 = vmatprep.subr.mxu0 0.0
    %452 = vmatpush1.xpose.msra.mxu0 0.0
    %453 = vmatprep.subr.mxu0 0.0
    %454 = vmatpush1.xpose.msra.mxu0 0.0
    %455 = vmatprep.subr.mxu0 0.0
    %456 = vmatpush1.xpose.msra.mxu0 0.0
    %457 = vmatprep.subr.mxu0 0.0
    %458 = vmatpush1.xpose.msra.mxu0 0.0
    %459 = vmatprep.subr.mxu0 0.0
    %460 = vmatpush1.xpose.msra.mxu0 0.0
    %461 = vmatprep.subr.mxu0 0.0
    %462 = vmatpush1.xpose.msra.mxu0 0.0
    %463 = vmatprep.subr.mxu0 0.0
    %464 = vmatpush1.xpose.msra.mxu0 0.0
    %465 = vmatprep.subr.mxu0 0.0
    %466 = vmatpush1.xpose.msra.mxu0 0.0
    %467 = vmatprep.subr.mxu0 0.0
    %468 = vmatpush1.xpose.msra.mxu0 0.0
    %469 = vmatprep.subr.mxu0 0.0
    %470 = vmatpush1.xpose.msra.mxu0 0.0
    %471 = vmatprep.subr.mxu0 0.0
    %472 = vmatpush1.xpose.msra.mxu0 0.0
    %473 = vmatprep.subr.mxu0 0.0
    %474 = vmatpush1.xpose.msra.mxu0 0.0
    %475 = vmatprep.subr.mxu0 0.0
    %476 = vmatpush1.xpose.msra.mxu0 0.0
    %477 = vmatprep.subr.mxu0 0.0
    %478 = vmatpush1.xpose.msra.mxu0 0.0
    %479 = vmatprep.subr.mxu0 0.0
    %480 = vmatpush1.xpose.msra.mxu0 0.0
    %481 = vmatprep.subr.mxu0 0.0
    %482 = vmatpush1.xpose.msra.mxu0 0.0
    %483 = vmatprep.subr.mxu0 0.0
    %484 = vmatpush1.xpose.msra.mxu0 0.0
    %485 = vmatprep.subr.mxu0 0.0
    %486 = vmatpush1.xpose.msra.mxu0 0.0
    %487 = vmatprep.subr.mxu0 0.0
    %488 = vmatpush1.xpose.msra.mxu0 0.0
    %489 = vmatprep.subr.mxu0 0.0
    %490 = vmatpush1.xpose.msra.mxu0 0.0
    %491 = vmatprep.subr.mxu0 0.0
    %492 = vmatpush1.xpose.msra.mxu0 0.0
    %493 = vmatprep.subr.mxu0 0.0
    %494 = vmatpush1.xpose.msra.mxu0 0.0
    %495 = vmatprep.subr.mxu0 0.0
    %496 = vmatpush1.xpose.msra.mxu0 0.0
    %497 = vmatprep.subr.mxu0 0.0
    %498 = vmatpush1.xpose.msra.mxu0 0.0
    %499 = vmatprep.subr.mxu0 0.0
    %500 = vmatpush1.xpose.msra.mxu0 0.0
    %501 = vmatprep.mubr.f32.mxu0 0.0
    %502 = vmatmul.mubr.f32.gmra.mrb[0].mxu0 %v414
    %v503 = vpop.f32.mrb[0].mxu0
    %v504 = vadd.f32 %v102, %v503
    %v505 = vpop.f32.mrb[0].mxu0
    %506 = vmatprep.mubr.f32.mxu0 0.0
    %507 = vmatmul.mubr.f32.gmra.mrb[0].mxu0 %v417
    %v508 = vpop.f32.mrb[0].mxu0
    %v509 = vadd.f32 %v103, %v508
    %v510 = vpop.f32.mrb[0].mxu0
    %511 = vmatprep.mubr.f32.mxu0 0.0
    %512 = vmatmul.mubr.f32.gmra.mrb[0].mxu0 %v420
    %v513 = vpop.f32.mrb[0].mxu0
    %v514 = vadd.f32 %v104, %v513
    %v515 = vpop.f32.mrb[0].mxu0
    %516 = vmatprep.mubr.f32.mxu0 0.0
    %517 = vmatmul.mubr.f32.gmra.mrb[0].mxu0 %v423
    %v518 = vpop.f32.mrb[0].mxu0
    %v519 = vadd.f32 %v105, %v518
    %v520 = vpop.f32.mrb[0].mxu0
    %521 = vdwg.mxu0
    %v522 = vsel %vm412, %v504, -inf
    %523 = vmax.xlane.f32.xlu0 %v522
    %v524 = vpop.xlane.xlu0 %523
    %v525 = vsel %vm412, %v509, -inf
    %526 = vmax.xlane.f32.xlu0 %v525
    %v527 = vpop.xlane.xlu0 %526
    %v528 = vsel %vm412, %v514, -inf
    %529 = vmax.xlane.f32.xlu0 %v528
    %v530 = vpop.xlane.xlu0 %529
    %v531 = vsel %vm412, %v519, -inf
    %532 = vmax.xlane.f32.xlu0 %v531
    %v533 = vpop.xlane.xlu0 %532
    %v534 = vsub.f32 %v504, %v524
    %v535 = vsub.f32 %v509, %v527
    %v536 = vsub.f32 %v514, %v530
    %v537 = vsub.f32 %v519, %v533
    %v538 = vmul.f32 %v534, 1.442695
    %v539 = vpow.pop %v538
    %v540 = vmul.f32 %v535, 1.442695
    %v541 = vpow.pop %v540
    %v542 = vmul.f32 %v536, 1.442695
    %v543 = vpow.pop %v542
    %v544 = vmul.f32 %v537, 1.442695
    %v545 = vpow.pop %v544
    %v546 = vsel %vm412, %v539, 0.0
    %547 = vadd.xlane.f32.xlu0 %v546
    %v548 = vpop.xlane.xlu0 %547
    %v549 = vsel %vm412, %v541, 0.0
    %550 = vadd.xlane.f32.xlu0 %v549
    %v551 = vpop.xlane.xlu0 %550
    %v552 = vsel %vm412, %v543, 0.0
    %553 = vadd.xlane.f32.xlu0 %v552
    %v554 = vpop.xlane.xlu0 %553
    %v555 = vsel %vm412, %v545, 0.0
    %556 = vadd.xlane.f32.xlu0 %v555
    %v557 = vpop.xlane.xlu0 %556
    %v558 = vrcp.pop %v548
    %v559 = vmul.f32 %v539, %v558
    %v560 = vrcp.pop %v551
    %v561 = vmul.f32 %v541, %v560
    %v562 = vrcp.pop %v554
    %v563 = vmul.f32 %v543, %v562
    %v564 = vrcp.pop %v557
    %v565 = vmul.f32 %v545, %v564
    %v567 = vsel %vm412, %v559, 0
    %v570 = vsel %vm412, %v561, 0
    %v573 = vsel %vm412, %v563, 0
    %v576 = vsel %vm412, %v565, 0
    %578 = vmatprep.subr.mxu0 0.0
    %579 = vmatpush1.msra.mxu0 %v394
    %580 = vmatprep.subr.mxu0 0.0
    %581 = vmatpush1.msra.mxu0 %v399
    %582 = vmatprep.subr.mxu0 0.0
    %583 = vmatpush1.msra.mxu0 %v404
    %584 = vmatprep.subr.mxu0 0.0
    %585 = vmatpush1.msra.mxu0 %v409
    %586 = vmatprep.subr.mxu0 0.0
    %587 = vmatpush1.msra.mxu0 0.0
    %588 = vmatprep.subr.mxu0 0.0
    %589 = vmatpush1.msra.mxu0 0.0
    %590 = vmatprep.subr.mxu0 0.0
    %591 = vmatpush1.msra.mxu0 0.0
    %592 = vmatprep.subr.mxu0 0.0
    %593 = vmatpush1.msra.mxu0 0.0
    %594 = vmatprep.subr.mxu0 0.0
    %595 = vmatpush1.msra.mxu0 0.0
    %596 = vmatprep.subr.mxu0 0.0
    %597 = vmatpush1.msra.mxu0 0.0
    %598 = vmatprep.subr.mxu0 0.0
    %599 = vmatpush1.msra.mxu0 0.0
    %600 = vmatprep.subr.mxu0 0.0
    %601 = vmatpush1.msra.mxu0 0.0
    %602 = vmatprep.subr.mxu0 0.0
    %603 = vmatpush1.msra.mxu0 0.0
    %604 = vmatprep.subr.mxu0 0.0
    %605 = vmatpush1.msra.mxu0 0.0
    %606 = vmatprep.subr.mxu0 0.0
    %607 = vmatpush1.msra.mxu0 0.0
    %608 = vmatprep.subr.mxu0 0.0
    %609 = vmatpush1.msra.mxu0 0.0
    %610 = vmatprep.subr.mxu0 0.0
    %611 = vmatpush1.msra.mxu0 0.0
    %612 = vmatprep.subr.mxu0 0.0
    %613 = vmatpush1.msra.mxu0 0.0
    %614 = vmatprep.subr.mxu0 0.0
    %615 = vmatpush1.msra.mxu0 0.0
    %616 = vmatprep.subr.mxu0 0.0
    %617 = vmatpush1.msra.mxu0 0.0
    %618 = vmatprep.subr.mxu0 0.0
    %619 = vmatpush1.msra.mxu0 0.0
    %620 = vmatprep.subr.mxu0 0.0
    %621 = vmatpush1.msra.mxu0 0.0
    %622 = vmatprep.subr.mxu0 0.0
    %623 = vmatpush1.msra.mxu0 0.0
    %624 = vmatprep.subr.mxu0 0.0
    %625 = vmatpush1.msra.mxu0 0.0
    %626 = vmatprep.subr.mxu0 0.0
    %627 = vmatpush1.msra.mxu0 0.0
    %628 = vmatprep.subr.mxu0 0.0
    %629 = vmatpush1.msra.mxu0 0.0
    %630 = vmatprep.subr.mxu0 0.0
    %631 = vmatpush1.msra.mxu0 0.0
    %632 = vmatprep.subr.mxu0 0.0
    %633 = vmatpush1.msra.mxu0 0.0
    %634 = vmatprep.subr.mxu0 0.0
    %635 = vmatpush1.msra.mxu0 0.0
    %636 = vmatprep.subr.mxu0 0.0
    %637 = vmatpush1.msra.mxu0 0.0
    %638 = vmatprep.subr.mxu0 0.0
    %639 = vmatpush1.msra.mxu0 0.0
    %640 = vmatprep.subr.mxu0 0.0
    %641 = vmatpush1.msra.mxu0 0.0
    %642 = vmatprep.mubr.f32.mxu0 0.0
    %643 = vmatmul.mubr.f32.gmra.mrb[0].mxu0 %v567
    %v644 = vpop.f32.mrb[0].mxu0
    %v645 = vadd.f32 0.0, %v644
    %v646 = vpop.f32.mrb[0].mxu0
    %647 = vmatprep.mubr.f32.mxu0 0.0
    %648 = vmatmul.mubr.f32.gmra.mrb[0].mxu0 %v570
    %v649 = vpop.f32.mrb[0].mxu0
    %v650 = vadd.f32 0.0, %v649
    %v651 = vpop.f32.mrb[0].mxu0
    %652 = vmatprep.mubr.f32.mxu0 0.0
    %653 = vmatmul.mubr.f32.gmra.mrb[0].mxu0 %v573
    %v654 = vpop.f32.mrb[0].mxu0
    %v655 = vadd.f32 0.0, %v654
    %v656 = vpop.f32.mrb[0].mxu0
    %657 = vmatprep.mubr.f32.mxu0 0.0
    %658 = vmatmul.mubr.f32.gmra.mrb[0].mxu0 %v576
    %v659 = vpop.f32.mrb[0].mxu0
    %v660 = vadd.f32 0.0, %v659
    %v661 = vpop.f32.mrb[0].mxu0
    %662 = vdwg.mxu0
    %663 = vrot.lane.b32.xlu0 %v305, 96
    %v664 = vpop.permute.xlu0 %663
    %665 = vrot.lane.b32.xlu0 %v311, 96
    %v666 = vpop.permute.xlu0 %665
    %667 = vrot.lane.b32.xlu0 %v317, 96
    %v668 = vpop.permute.xlu0 %667
    %669 = vrot.lane.b32.xlu0 %v323, 96
    %v670 = vpop.permute.xlu0 %669
    %671 = vrot.lane.b32.xlu0 %v307, 96
    %v672 = vpop.permute.xlu0 %671
    %673 = vrot.lane.b32.xlu0 %v313, 96
    %v674 = vpop.permute.xlu0 %673
    %675 = vrot.lane.b32.xlu0 %v319, 96
    %v676 = vpop.permute.xlu0 %675
    %677 = vrot.lane.b32.xlu0 %v325, 96
    %v678 = vpop.permute.xlu0 %677
    %v679 = vsel %vm412, %v664, 0
    %v681 = vsel %vm412, %v666, 0
    %v683 = vsel %vm412, %v668, 0
    %v685 = vsel %vm412, %v670, 0
    %v687 = vsel %vm412, %v672, 0
    %v689 = vsel %vm412, %v674, 0
    %v691 = vsel %vm412, %v676, 0
    %v693 = vsel %vm412, %v678, 0
    %695 = vmatprep.subr.mxu0 0.0
    %696 = vmatpush1.xpose.msra.mxu0 %v687
    %697 = vmatprep.subr.mxu0 0.0
    %698 = vmatpush1.xpose.msra.mxu0 %v689
    %699 = vmatprep.subr.mxu0 0.0
    %700 = vmatpush1.xpose.msra.mxu0 %v691
    %701 = vmatprep.subr.mxu0 0.0
    %702 = vmatpush1.xpose.msra.mxu0 %v693
    %703 = vmatprep.subr.mxu0 0.0
    %704 = vmatpush1.xpose.msra.mxu0 0.0
    %705 = vmatprep.subr.mxu0 0.0
    %706 = vmatpush1.xpose.msra.mxu0 0.0
    %707 = vmatprep.subr.mxu0 0.0
    %708 = vmatpush1.xpose.msra.mxu0 0.0
    %709 = vmatprep.subr.mxu0 0.0
    %710 = vmatpush1.xpose.msra.mxu0 0.0
    %711 = vmatprep.subr.mxu0 0.0
    %712 = vmatpush1.xpose.msra.mxu0 0.0
    %713 = vmatprep.subr.mxu0 0.0
    %714 = vmatpush1.xpose.msra.mxu0 0.0
    %715 = vmatprep.subr.mxu0 0.0
    %716 = vmatpush1.xpose.msra.mxu0 0.0
    %717 = vmatprep.subr.mxu0 0.0
    %718 = vmatpush1.xpose.msra.mxu0 0.0
    %719 = vmatprep.subr.mxu0 0.0
    %720 = vmatpush1.xpose.msra.mxu0 0.0
    %721 = vmatprep.subr.mxu0 0.0
    %722 = vmatpush1.xpose.msra.mxu0 0.0
    %723 = vmatprep.subr.mxu0 0.0
    %724 = vmatpush1.xpose.msra.mxu0 0.0
    %725 = vmatprep.subr.mxu0 0.0
    %726 = vmatpush1.xpose.msra.mxu0 0.0
    %727 = vmatprep.subr.mxu0 0.0
    %728 = vmatpush1.xpose.msra.mxu0 0.0
    %729 = vmatprep.subr.mxu0 0.0
    %730 = vmatpush1.xpose.msra.mxu0 0.0
    %731 = vmatprep.subr.mxu0 0.0
    %732 = vmatpush1.xpose.msra.mxu0 0.0
    %733 = vmatprep.subr.mxu0 0.0
    %734 = vmatpush1.xpose.msra.mxu0 0.0
    %735 = vmatprep.subr.mxu0 0.0
    %736 = vmatpush1.xpose.msra.mxu0 0.0
    %737 = vmatprep.subr.mxu0 0.0
    %738 = vmatpush1.xpose.msra.mxu0 0.0
    %739 = vmatprep.subr.mxu0 0.0
    %740 = vmatpush1.xpose.msra.mxu0 0.0
    %741 = vmatprep.subr.mxu0 0.0
    %742 = vmatpush1.xpose.msra.mxu0 0.0
    %743 = vmatprep.subr.mxu0 0.0
    %744 = vmatpush1.xpose.msra.mxu0 0.0
    %745 = vmatprep.subr.mxu0 0.0
    %746 = vmatpush1.xpose.msra.mxu0 0.0
    %747 = vmatprep.subr.mxu0 0.0
    %748 = vmatpush1.xpose.msra.mxu0 0.0
    %749 = vmatprep.subr.mxu0 0.0
    %750 = vmatpush1.xpose.msra.mxu0 0.0
    %751 = vmatprep.subr.mxu0 0.0
    %752 = vmatpush1.xpose.msra.mxu0 0.0
    %753 = vmatprep.subr.mxu0 0.0
    %754 = vmatpush1.xpose.msra.mxu0 0.0
    %755 = vmatprep.subr.mxu0 0.0
    %756 = vmatpush1.xpose.msra.mxu0 0.0
    %757 = vmatprep.subr.mxu0 0.0
    %758 = vmatpush1.xpose.msra.mxu0 0.0
    %759 = vmatprep.mubr.f32.mxu0 0.0
    %760 = vmatmul.mubr.f32.gmra.mrb[0].mxu0 %v679
    %v761 = vpop.f32.mrb[0].mxu0
    %v762 = vadd.f32 %v102, %v761
    %v763 = vpop.f32.mrb[0].mxu0
    %764 = vmatprep.mubr.f32.mxu0 0.0
    %765 = vmatmul.mubr.f32.gmra.mrb[0].mxu0 %v681
    %v766 = vpop.f32.mrb[0].mxu0
    %v767 = vadd.f32 %v103, %v766
    %v768 = vpop.f32.mrb[0].mxu0
    %769 = vmatprep.mubr.f32.mxu0 0.0
    %770 = vmatmul.mubr.f32.gmra.mrb[0].mxu0 %v683
    %v771 = vpop.f32.mrb[0].mxu0
    %v772 = vadd.f32 %v104, %v771
    %v773 = vpop.f32.mrb[0].mxu0
    %774 = vmatprep.mubr.f32.mxu0 0.0
    %775 = vmatmul.mubr.f32.gmra.mrb[0].mxu0 %v685
    %v776 = vpop.f32.mrb[0].mxu0
    %v777 = vadd.f32 %v105, %v776
    %v778 = vpop.f32.mrb[0].mxu0
    %779 = vdwg.mxu0
    %v780 = vsel %vm412, %v762, -inf
    %781 = vmax.xlane.f32.xlu0 %v780
    %v782 = vpop.xlane.xlu0 %781
    %v783 = vsel %vm412, %v767, -inf
    %784 = vmax.xlane.f32.xlu0 %v783
    %v785 = vpop.xlane.xlu0 %784
    %v786 = vsel %vm412, %v772, -inf
    %787 = vmax.xlane.f32.xlu0 %v786
    %v788 = vpop.xlane.xlu0 %787
    %v789 = vsel %vm412, %v777, -inf
    %790 = vmax.xlane.f32.xlu0 %v789
    %v791 = vpop.xlane.xlu0 %790
    %v792 = vsub.f32 %v762, %v782
    %v793 = vsub.f32 %v767, %v785
    %v794 = vsub.f32 %v772, %v788
    %v795 = vsub.f32 %v777, %v791
    %v796 = vmul.f32 %v792, 1.442695
    %v797 = vpow.pop %v796
    %v798 = vmul.f32 %v793, 1.442695
    %v799 = vpow.pop %v798
    %v800 = vmul.f32 %v794, 1.442695
    %v801 = vpow.pop %v800
    %v802 = vmul.f32 %v795, 1.442695
    %v803 = vpow.pop %v802
    %v804 = vsel %vm412, %v797, 0.0
    %805 = vadd.xlane.f32.xlu0 %v804
    %v806 = vpop.xlane.xlu0 %805
    %v807 = vsel %vm412, %v799, 0.0
    %808 = vadd.xlane.f32.xlu0 %v807
    %v809 = vpop.xlane.xlu0 %808
    %v810 = vsel %vm412, %v801, 0.0
    %811 = vadd.xlane.f32.xlu0 %v810
    %v812 = vpop.xlane.xlu0 %811
    %v813 = vsel %vm412, %v803, 0.0
    %814 = vadd.xlane.f32.xlu0 %v813
    %v815 = vpop.xlane.xlu0 %814
    %v816 = vrcp.pop %v806
    %v817 = vmul.f32 %v797, %v816
    %v818 = vrcp.pop %v809
    %v819 = vmul.f32 %v799, %v818
    %v820 = vrcp.pop %v812
    %v821 = vmul.f32 %v801, %v820
    %v822 = vrcp.pop %v815
    %v823 = vmul.f32 %v803, %v822
    %828 = vrot.lane.b32.xlu0 %v394, 96
    %v829 = vpop.permute.xlu0 %828
    %830 = vrot.lane.b32.xlu0 %v399, 96
    %v831 = vpop.permute.xlu0 %830
    %832 = vrot.lane.b32.xlu0 %v404, 96
    %v833 = vpop.permute.xlu0 %832
    %834 = vrot.lane.b32.xlu0 %v409, 96
    %v835 = vpop.permute.xlu0 %834
    %v841 = vsel %vm412, %v817, 0
    %v844 = vsel %vm412, %v819, 0
    %v847 = vsel %vm412, %v821, 0
    %v850 = vsel %vm412, %v823, 0
    %852 = vmatprep.subr.mxu0 0.0
    %853 = vmatpush1.msra.mxu0 %v829
    %854 = vmatprep.subr.mxu0 0.0
    %855 = vmatpush1.msra.mxu0 %v831
    %856 = vmatprep.subr.mxu0 0.0
    %857 = vmatpush1.msra.mxu0 %v833
    %858 = vmatprep.subr.mxu0 0.0
    %859 = vmatpush1.msra.mxu0 %v835
    %860 = vmatprep.subr.mxu0 0.0
    %861 = vmatpush1.msra.mxu0 0.0
    %862 = vmatprep.subr.mxu0 0.0
    %863 = vmatpush1.msra.mxu0 0.0
    %864 = vmatprep.subr.mxu0 0.0
    %865 = vmatpush1.msra.mxu0 0.0
    %866 = vmatprep.subr.mxu0 0.0
    %867 = vmatpush1.msra.mxu0 0.0
    %868 = vmatprep.subr.mxu0 0.0
    %869 = vmatpush1.msra.mxu0 0.0
    %870 = vmatprep.subr.mxu0 0.0
    %871 = vmatpush1.msra.mxu0 0.0
    %872 = vmatprep.subr.mxu0 0.0
    %873 = vmatpush1.msra.mxu0 0.0
    %874 = vmatprep.subr.mxu0 0.0
    %875 = vmatpush1.msra.mxu0 0.0
    %876 = vmatprep.subr.mxu0 0.0
    %877 = vmatpush1.msra.mxu0 0.0
    %878 = vmatprep.subr.mxu0 0.0
    %879 = vmatpush1.msra.mxu0 0.0
    %880 = vmatprep.subr.mxu0 0.0
    %881 = vmatpush1.msra.mxu0 0.0
    %882 = vmatprep.subr.mxu0 0.0
    %883 = vmatpush1.msra.mxu0 0.0
    %884 = vmatprep.subr.mxu0 0.0
    %885 = vmatpush1.msra.mxu0 0.0
    %886 = vmatprep.subr.mxu0 0.0
    %887 = vmatpush1.msra.mxu0 0.0
    %888 = vmatprep.subr.mxu0 0.0
    %889 = vmatpush1.msra.mxu0 0.0
    %890 = vmatprep.subr.mxu0 0.0
    %891 = vmatpush1.msra.mxu0 0.0
    %892 = vmatprep.subr.mxu0 0.0
    %893 = vmatpush1.msra.mxu0 0.0
    %894 = vmatprep.subr.mxu0 0.0
    %895 = vmatpush1.msra.mxu0 0.0
    %896 = vmatprep.subr.mxu0 0.0
    %897 = vmatpush1.msra.mxu0 0.0
    %898 = vmatprep.subr.mxu0 0.0
    %899 = vmatpush1.msra.mxu0 0.0
    %900 = vmatprep.subr.mxu0 0.0
    %901 = vmatpush1.msra.mxu0 0.0
    %902 = vmatprep.subr.mxu0 0.0
    %903 = vmatpush1.msra.mxu0 0.0
    %904 = vmatprep.subr.mxu0 0.0
    %905 = vmatpush1.msra.mxu0 0.0
    %906 = vmatprep.subr.mxu0 0.0
    %907 = vmatpush1.msra.mxu0 0.0
    %908 = vmatprep.subr.mxu0 0.0
    %909 = vmatpush1.msra.mxu0 0.0
    %910 = vmatprep.subr.mxu0 0.0
    %911 = vmatpush1.msra.mxu0 0.0
    %912 = vmatprep.subr.mxu0 0.0
    %913 = vmatpush1.msra.mxu0 0.0
    %914 = vmatprep.subr.mxu0 0.0
    %915 = vmatpush1.msra.mxu0 0.0
    %916 = vmatprep.mubr.f32.mxu0 0.0
    %917 = vmatmul.mubr.f32.gmra.mrb[0].mxu0 %v841
    %v918 = vpop.f32.mrb[0].mxu0
    %v919 = vadd.f32 0.0, %v918
    %v920 = vpop.f32.mrb[0].mxu0
    %921 = vmatprep.mubr.f32.mxu0 0.0
    %922 = vmatmul.mubr.f32.gmra.mrb[0].mxu0 %v844
    %v923 = vpop.f32.mrb[0].mxu0
    %v924 = vadd.f32 0.0, %v923
    %v925 = vpop.f32.mrb[0].mxu0
    %926 = vmatprep.mubr.f32.mxu0 0.0
    %927 = vmatmul.mubr.f32.gmra.mrb[0].mxu0 %v847
    %v928 = vpop.f32.mrb[0].mxu0
    %v929 = vadd.f32 0.0, %v928
    %v930 = vpop.f32.mrb[0].mxu0
    %931 = vmatprep.mubr.f32.mxu0 0.0
    %932 = vmatmul.mubr.f32.gmra.mrb[0].mxu0 %v850
    %v933 = vpop.f32.mrb[0].mxu0
    %v934 = vadd.f32 0.0, %v933
    %v935 = vpop.f32.mrb[0].mxu0
    %936 = vdwg.mxu0
    %937 = vrot.lane.b32.xlu0 %v305, 64
    %v938 = vpop.permute.xlu0 %937
    %939 = vrot.lane.b32.xlu0 %v311, 64
    %v940 = vpop.permute.xlu0 %939
    %941 = vrot.lane.b32.xlu0 %v317, 64
    %v942 = vpop.permute.xlu0 %941
    %943 = vrot.lane.b32.xlu0 %v323, 64
    %v944 = vpop.permute.xlu0 %943
    %945 = vrot.lane.b32.xlu0 %v307, 64
    %v946 = vpop.permute.xlu0 %945
    %947 = vrot.lane.b32.xlu0 %v313, 64
    %v948 = vpop.permute.xlu0 %947
    %949 = vrot.lane.b32.xlu0 %v319, 64
    %v950 = vpop.permute.xlu0 %949
    %951 = vrot.lane.b32.xlu0 %v325, 64
    %v952 = vpop.permute.xlu0 %951
    %v953 = vsel %vm412, %v938, 0
    %v955 = vsel %vm412, %v940, 0
    %v957 = vsel %vm412, %v942, 0
    %v959 = vsel %vm412, %v944, 0
    %v961 = vsel %vm412, %v946, 0
    %v963 = vsel %vm412, %v948, 0
    %v965 = vsel %vm412, %v950, 0
    %v967 = vsel %vm412, %v952, 0
    %969 = vmatprep.subr.mxu0 0.0
    %970 = vmatpush1.xpose.msra.mxu0 %v961
    %971 = vmatprep.subr.mxu0 0.0
    %972 = vmatpush1.xpose.msra.mxu0 %v963
    %973 = vmatprep.subr.mxu0 0.0
    %974 = vmatpush1.xpose.msra.mxu0 %v965
    %975 = vmatprep.subr.mxu0 0.0
    %976 = vmatpush1.xpose.msra.mxu0 %v967
    %977 = vmatprep.subr.mxu0 0.0
    %978 = vmatpush1.xpose.msra.mxu0 0.0
    %979 = vmatprep.subr.mxu0 0.0
    %980 = vmatpush1.xpose.msra.mxu0 0.0
    %981 = vmatprep.subr.mxu0 0.0
    %982 = vmatpush1.xpose.msra.mxu0 0.0
    %983 = vmatprep.subr.mxu0 0.0
    %984 = vmatpush1.xpose.msra.mxu0 0.0
    %985 = vmatprep.subr.mxu0 0.0
    %986 = vmatpush1.xpose.msra.mxu0 0.0
    %987 = vmatprep.subr.mxu0 0.0
    %988 = vmatpush1.xpose.msra.mxu0 0.0
    %989 = vmatprep.subr.mxu0 0.0
    %990 = vmatpush1.xpose.msra.mxu0 0.0
    %991 = vmatprep.subr.mxu0 0.0
    %992 = vmatpush1.xpose.msra.mxu0 0.0
    %993 = vmatprep.subr.mxu0 0.0
    %994 = vmatpush1.xpose.msra.mxu0 0.0
    %995 = vmatprep.subr.mxu0 0.0
    %996 = vmatpush1.xpose.msra.mxu0 0.0
    %997 = vmatprep.subr.mxu0 0.0
    %998 = vmatpush1.xpose.msra.mxu0 0.0
    %999 = vmatprep.subr.mxu0 0.0
    %1000 = vmatpush1.xpose.msra.mxu0 0.0
    %1001 = vmatprep.subr.mxu0 0.0
    %1002 = vmatpush1.xpose.msra.mxu0 0.0
    %1003 = vmatprep.subr.mxu0 0.0
    %1004 = vmatpush1.xpose.msra.mxu0 0.0
    %1005 = vmatprep.subr.mxu0 0.0
    %1006 = vmatpush1.xpose.msra.mxu0 0.0
    %1007 = vmatprep.subr.mxu0 0.0
    %1008 = vmatpush1.xpose.msra.mxu0 0.0
    %1009 = vmatprep.subr.mxu0 0.0
    %1010 = vmatpush1.xpose.msra.mxu0 0.0
    %1011 = vmatprep.subr.mxu0 0.0
    %1012 = vmatpush1.xpose.msra.mxu0 0.0
    %1013 = vmatprep.subr.mxu0 0.0
    %1014 = vmatpush1.xpose.msra.mxu0 0.0
    %1015 = vmatprep.subr.mxu0 0.0
    %1016 = vmatpush1.xpose.msra.mxu0 0.0
    %1017 = vmatprep.subr.mxu0 0.0
    %1018 = vmatpush1.xpose.msra.mxu0 0.0
    %1019 = vmatprep.subr.mxu0 0.0
    %1020 = vmatpush1.xpose.msra.mxu0 0.0
    %1021 = vmatprep.subr.mxu0 0.0
    %1022 = vmatpush1.xpose.msra.mxu0 0.0
    %1023 = vmatprep.subr.mxu0 0.0
    %1024 = vmatpush1.xpose.msra.mxu0 0.0
    %1025 = vmatprep.subr.mxu0 0.0
    %1026 = vmatpush1.xpose.msra.mxu0 0.0
    %1027 = vmatprep.subr.mxu0 0.0
    %1028 = vmatpush1.xpose.msra.mxu0 0.0
    %1029 = vmatprep.subr.mxu0 0.0
    %1030 = vmatpush1.xpose.msra.mxu0 0.0
    %1031 = vmatprep.subr.mxu0 0.0
    %1032 = vmatpush1.xpose.msra.mxu0 0.0
    %1033 = vmatprep.mubr.f32.mxu0 0.0
    %1034 = vmatmul.mubr.f32.gmra.mrb[0].mxu0 %v953
    %v1035 = vpop.f32.mrb[0].mxu0
    %v1036 = vadd.f32 %v102, %v1035
    %v1037 = vpop.f32.mrb[0].mxu0
    %1038 = vmatprep.mubr.f32.mxu0 0.0
    %1039 = vmatmul.mubr.f32.gmra.mrb[0].mxu0 %v955
    %v1040 = vpop.f32.mrb[0].mxu0
    %v1041 = vadd.f32 %v103, %v1040
    %v1042 = vpop.f32.mrb[0].mxu0
    %1043 = vmatprep.mubr.f32.mxu0 0.0
    %1044 = vmatmul.mubr.f32.gmra.mrb[0].mxu0 %v957
    %v1045 = vpop.f32.mrb[0].mxu0
    %v1046 = vadd.f32 %v104, %v1045
    %v1047 = vpop.f32.mrb[0].mxu0
    %1048 = vmatprep.mubr.f32.mxu0 0.0
    %1049 = vmatmul.mubr.f32.gmra.mrb[0].mxu0 %v959
    %v1050 = vpop.f32.mrb[0].mxu0
    %v1051 = vadd.f32 %v105, %v1050
    %v1052 = vpop.f32.mrb[0].mxu0
    %1053 = vdwg.mxu0
    %v1054 = vsel %vm412, %v1036, -inf
    %1055 = vmax.xlane.f32.xlu0 %v1054
    %v1056 = vpop.xlane.xlu0 %1055
    %v1057 = vsel %vm412, %v1041, -inf
    %1058 = vmax.xlane.f32.xlu0 %v1057
    %v1059 = vpop.xlane.xlu0 %1058
    %v1060 = vsel %vm412, %v1046, -inf
    %1061 = vmax.xlane.f32.xlu0 %v1060
    %v1062 = vpop.xlane.xlu0 %1061
    %v1063 = vsel %vm412, %v1051, -inf
    %1064 = vmax.xlane.f32.xlu0 %v1063
    %v1065 = vpop.xlane.xlu0 %1064
    %v1066 = vsub.f32 %v1036, %v1056
    %v1067 = vsub.f32 %v1041, %v1059
    %v1068 = vsub.f32 %v1046, %v1062
    %v1069 = vsub.f32 %v1051, %v1065
    %v1070 = vmul.f32 %v1066, 1.442695
    %v1071 = vpow.pop %v1070
    %v1072 = vmul.f32 %v1067, 1.442695
    %v1073 = vpow.pop %v1072
    %v1074 = vmul.f32 %v1068, 1.442695
    %v1075 = vpow.pop %v1074
    %v1076 = vmul.f32 %v1069, 1.442695
    %v1077 = vpow.pop %v1076
    %v1078 = vsel %vm412, %v1071, 0.0
    %1079 = vadd.xlane.f32.xlu0 %v1078
    %v1080 = vpop.xlane.xlu0 %1079
    %v1081 = vsel %vm412, %v1073, 0.0
    %1082 = vadd.xlane.f32.xlu0 %v1081
    %v1083 = vpop.xlane.xlu0 %1082
    %v1084 = vsel %vm412, %v1075, 0.0
    %1085 = vadd.xlane.f32.xlu0 %v1084
    %v1086 = vpop.xlane.xlu0 %1085
    %v1087 = vsel %vm412, %v1077, 0.0
    %1088 = vadd.xlane.f32.xlu0 %v1087
    %v1089 = vpop.xlane.xlu0 %1088
    %v1090 = vrcp.pop %v1080
    %v1091 = vmul.f32 %v1071, %v1090
    %v1092 = vrcp.pop %v1083
    %v1093 = vmul.f32 %v1073, %v1092
    %v1094 = vrcp.pop %v1086
    %v1095 = vmul.f32 %v1075, %v1094
    %v1096 = vrcp.pop %v1089
    %v1097 = vmul.f32 %v1077, %v1096
    %1098 = vrot.lane.b32.xlu0 %v394, 64
    %v1099 = vpop.permute.xlu0 %1098
    %1100 = vrot.lane.b32.xlu0 %v399, 64
    %v1101 = vpop.permute.xlu0 %1100
    %1102 = vrot.lane.b32.xlu0 %v404, 64
    %v1103 = vpop.permute.xlu0 %1102
    %1104 = vrot.lane.b32.xlu0 %v409, 64
    %v1105 = vpop.permute.xlu0 %1104
    %v1111 = vsel %vm412, %v1091, 0
    %v1114 = vsel %vm412, %v1093, 0
    %v1117 = vsel %vm412, %v1095, 0
    %v1120 = vsel %vm412, %v1097, 0
    %1122 = vmatprep.subr.mxu0 0.0
    %1123 = vmatpush1.msra.mxu0 %v1099
    %1124 = vmatprep.subr.mxu0 0.0
    %1125 = vmatpush1.msra.mxu0 %v1101
    %1126 = vmatprep.subr.mxu0 0.0
    %1127 = vmatpush1.msra.mxu0 %v1103
    %1128 = vmatprep.subr.mxu0 0.0
    %1129 = vmatpush1.msra.mxu0 %v1105
    %1130 = vmatprep.subr.mxu0 0.0
    %1131 = vmatpush1.msra.mxu0 0.0
    %1132 = vmatprep.subr.mxu0 0.0
    %1133 = vmatpush1.msra.mxu0 0.0
    %1134 = vmatprep.subr.mxu0 0.0
    %1135 = vmatpush1.msra.mxu0 0.0
    %1136 = vmatprep.subr.mxu0 0.0
    %1137 = vmatpush1.msra.mxu0 0.0
    %1138 = vmatprep.subr.mxu0 0.0
    %1139 = vmatpush1.msra.mxu0 0.0
    %1140 = vmatprep.subr.mxu0 0.0
    %1141 = vmatpush1.msra.mxu0 0.0
    %1142 = vmatprep.subr.mxu0 0.0
    %1143 = vmatpush1.msra.mxu0 0.0
    %1144 = vmatprep.subr.mxu0 0.0
    %1145 = vmatpush1.msra.mxu0 0.0
    %1146 = vmatprep.subr.mxu0 0.0
    %1147 = vmatpush1.msra.mxu0 0.0
    %1148 = vmatprep.subr.mxu0 0.0
    %1149 = vmatpush1.msra.mxu0 0.0
    %1150 = vmatprep.subr.mxu0 0.0
    %1151 = vmatpush1.msra.mxu0 0.0
    %1152 = vmatprep.subr.mxu0 0.0
    %1153 = vmatpush1.msra.mxu0 0.0
    %1154 = vmatprep.subr.mxu0 0.0
    %1155 = vmatpush1.msra.mxu0 0.0
    %1156 = vmatprep.subr.mxu0 0.0
    %1157 = vmatpush1.msra.mxu0 0.0
    %1158 = vmatprep.subr.mxu0 0.0
    %1159 = vmatpush1.msra.mxu0 0.0
    %1160 = vmatprep.subr.mxu0 0.0
    %1161 = vmatpush1.msra.mxu0 0.0
    %1162 = vmatprep.subr.mxu0 0.0
    %1163 = vmatpush1.msra.mxu0 0.0
    %1164 = vmatprep.subr.mxu0 0.0
    %1165 = vmatpush1.msra.mxu0 0.0
    %1166 = vmatprep.subr.mxu0 0.0
    %1167 = vmatpush1.msra.mxu0 0.0
    %1168 = vmatprep.subr.mxu0 0.0
    %1169 = vmatpush1.msra.mxu0 0.0
    %1170 = vmatprep.subr.mxu0 0.0
    %1171 = vmatpush1.msra.mxu0 0.0
    %1172 = vmatprep.subr.mxu0 0.0
    %1173 = vmatpush1.msra.mxu0 0.0
    %1174 = vmatprep.subr.mxu0 0.0
    %1175 = vmatpush1.msra.mxu0 0.0
    %1176 = vmatprep.subr.mxu0 0.0
    %1177 = vmatpush1.msra.mxu0 0.0
    %1178 = vmatprep.subr.mxu0 0.0
    %1179 = vmatpush1.msra.mxu0 0.0
    %1180 = vmatprep.subr.mxu0 0.0
    %1181 = vmatpush1.msra.mxu0 0.0
    %1182 = vmatprep.subr.mxu0 0.0
    %1183 = vmatpush1.msra.mxu0 0.0
    %1184 = vmatprep.subr.mxu0 0.0
    %1185 = vmatpush1.msra.mxu0 0.0
    %1186 = vmatprep.mubr.f32.mxu0 0.0
    %1187 = vmatmul.mubr.f32.gmra.mrb[0].mxu0 %v1111
    %v1188 = vpop.f32.mrb[0].mxu0
    %v1189 = vadd.f32 0.0, %v1188
    %v1190 = vpop.f32.mrb[0].mxu0
    %1191 = vmatprep.mubr.f32.mxu0 0.0
    %1192 = vmatmul.mubr.f32.gmra.mrb[0].mxu0 %v1114
    %v1193 = vpop.f32.mrb[0].mxu0
    %v1194 = vadd.f32 0.0, %v1193
    %v1195 = vpop.f32.mrb[0].mxu0
    %1196 = vmatprep.mubr.f32.mxu0 0.0
    %1197 = vmatmul.mubr.f32.gmra.mrb[0].mxu0 %v1117
    %v1198 = vpop.f32.mrb[0].mxu0
    %v1199 = vadd.f32 0.0, %v1198
    %v1200 = vpop.f32.mrb[0].mxu0
    %1201 = vmatprep.mubr.f32.mxu0 0.0
    %1202 = vmatmul.mubr.f32.gmra.mrb[0].mxu0 %v1120
    %v1203 = vpop.f32.mrb[0].mxu0
    %v1204 = vadd.f32 0.0, %v1203
    %v1205 = vpop.f32.mrb[0].mxu0
    %1206 = vdwg.mxu0
    %1207 = vrot.lane.b32.xlu0 %v305, 32
    %v1208 = vpop.permute.xlu0 %1207
    %1209 = vrot.lane.b32.xlu0 %v311, 32
    %v1210 = vpop.permute.xlu0 %1209
    %1211 = vrot.lane.b32.xlu0 %v317, 32
    %v1212 = vpop.permute.xlu0 %1211
    %1213 = vrot.lane.b32.xlu0 %v323, 32
    %v1214 = vpop.permute.xlu0 %1213
    %1215 = vrot.lane.b32.xlu0 %v307, 32
    %v1216 = vpop.permute.xlu0 %1215
    %1217 = vrot.lane.b32.xlu0 %v313, 32
    %v1218 = vpop.permute.xlu0 %1217
    %1219 = vrot.lane.b32.xlu0 %v319, 32
    %v1220 = vpop.permute.xlu0 %1219
    %1221 = vrot.lane.b32.xlu0 %v325, 32
    %v1222 = vpop.permute.xlu0 %1221
    %v1223 = vsel %vm412, %v1208, 0
    %v1225 = vsel %vm412, %v1210, 0
    %v1227 = vsel %vm412, %v1212, 0
    %v1229 = vsel %vm412, %v1214, 0
    %v1231 = vsel %vm412, %v1216, 0
    %v1233 = vsel %vm412, %v1218, 0
    %v1235 = vsel %vm412, %v1220, 0
    %v1237 = vsel %vm412, %v1222, 0
    %1239 = vmatprep.subr.mxu0 0.0
    %1240 = vmatpush1.xpose.msra.mxu0 %v1231
    %1241 = vmatprep.subr.mxu0 0.0
    %1242 = vmatpush1.xpose.msra.mxu0 %v1233
    %1243 = vmatprep.subr.mxu0 0.0
    %1244 = vmatpush1.xpose.msra.mxu0 %v1235
    %1245 = vmatprep.subr.mxu0 0.0
    %1246 = vmatpush1.xpose.msra.mxu0 %v1237
    %1247 = vmatprep.subr.mxu0 0.0
    %1248 = vmatpush1.xpose.msra.mxu0 0.0
    %1249 = vmatprep.subr.mxu0 0.0
    %1250 = vmatpush1.xpose.msra.mxu0 0.0
    %1251 = vmatprep.subr.mxu0 0.0
    %1252 = vmatpush1.xpose.msra.mxu0 0.0
    %1253 = vmatprep.subr.mxu0 0.0
    %1254 = vmatpush1.xpose.msra.mxu0 0.0
    %1255 = vmatprep.subr.mxu0 0.0
    %1256 = vmatpush1.xpose.msra.mxu0 0.0
    %1257 = vmatprep.subr.mxu0 0.0
    %1258 = vmatpush1.xpose.msra.mxu0 0.0
    %1259 = vmatprep.subr.mxu0 0.0
    %1260 = vmatpush1.xpose.msra.mxu0 0.0
    %1261 = vmatprep.subr.mxu0 0.0
    %1262 = vmatpush1.xpose.msra.mxu0 0.0
    %1263 = vmatprep.subr.mxu0 0.0
    %1264 = vmatpush1.xpose.msra.mxu0 0.0
    %1265 = vmatprep.subr.mxu0 0.0
    %1266 = vmatpush1.xpose.msra.mxu0 0.0
    %1267 = vmatprep.subr.mxu0 0.0
    %1268 = vmatpush1.xpose.msra.mxu0 0.0
    %1269 = vmatprep.subr.mxu0 0.0
    %1270 = vmatpush1.xpose.msra.mxu0 0.0
    %1271 = vmatprep.subr.mxu0 0.0
    %1272 = vmatpush1.xpose.msra.mxu0 0.0
    %1273 = vmatprep.subr.mxu0 0.0
    %1274 = vmatpush1.xpose.msra.mxu0 0.0
    %1275 = vmatprep.subr.mxu0 0.0
    %1276 = vmatpush1.xpose.msra.mxu0 0.0
    %1277 = vmatprep.subr.mxu0 0.0
    %1278 = vmatpush1.xpose.msra.mxu0 0.0
    %1279 = vmatprep.subr.mxu0 0.0
    %1280 = vmatpush1.xpose.msra.mxu0 0.0
    %1281 = vmatprep.subr.mxu0 0.0
    %1282 = vmatpush1.xpose.msra.mxu0 0.0
    %1283 = vmatprep.subr.mxu0 0.0
    %1284 = vmatpush1.xpose.msra.mxu0 0.0
    %1285 = vmatprep.subr.mxu0 0.0
    %1286 = vmatpush1.xpose.msra.mxu0 0.0
    %1287 = vmatprep.subr.mxu0 0.0
    %1288 = vmatpush1.xpose.msra.mxu0 0.0
    %1289 = vmatprep.subr.mxu0 0.0
    %1290 = vmatpush1.xpose.msra.mxu0 0.0
    %1291 = vmatprep.subr.mxu0 0.0
    %1292 = vmatpush1.xpose.msra.mxu0 0.0
    %1293 = vmatprep.subr.mxu0 0.0
    %1294 = vmatpush1.xpose.msra.mxu0 0.0
    %1295 = vmatprep.subr.mxu0 0.0
    %1296 = vmatpush1.xpose.msra.mxu0 0.0
    %1297 = vmatprep.subr.mxu0 0.0
    %1298 = vmatpush1.xpose.msra.mxu0 0.0
    %1299 = vmatprep.subr.mxu0 0.0
    %1300 = vmatpush1.xpose.msra.mxu0 0.0
    %1301 = vmatprep.subr.mxu0 0.0
    %1302 = vmatpush1.xpose.msra.mxu0 0.0
    %1303 = vmatprep.mubr.f32.mxu0 0.0
    %1304 = vmatmul.mubr.f32.gmra.mrb[0].mxu0 %v1223
    %v1305 = vpop.f32.mrb[0].mxu0
    %v1306 = vadd.f32 %v102, %v1305
    %v1307 = vpop.f32.mrb[0].mxu0
    %1308 = vmatprep.mubr.f32.mxu0 0.0
    %1309 = vmatmul.mubr.f32.gmra.mrb[0].mxu0 %v1225
    %v1310 = vpop.f32.mrb[0].mxu0
    %v1311 = vadd.f32 %v103, %v1310
    %v1312 = vpop.f32.mrb[0].mxu0
    %1313 = vmatprep.mubr.f32.mxu0 0.0
    %1314 = vmatmul.mubr.f32.gmra.mrb[0].mxu0 %v1227
    %v1315 = vpop.f32.mrb[0].mxu0
    %v1316 = vadd.f32 %v104, %v1315
    %v1317 = vpop.f32.mrb[0].mxu0
    %1318 = vmatprep.mubr.f32.mxu0 0.0
    %1319 = vmatmul.mubr.f32.gmra.mrb[0].mxu0 %v1229
    %v1320 = vpop.f32.mrb[0].mxu0
    %v1321 = vadd.f32 %v105, %v1320
    %v1322 = vpop.f32.mrb[0].mxu0
    %1323 = vdwg.mxu0
    %v1324 = vsel %vm412, %v1306, -inf
    %1325 = vmax.xlane.f32.xlu0 %v1324
    %v1326 = vpop.xlane.xlu0 %1325
    %v1327 = vsel %vm412, %v1311, -inf
    %1328 = vmax.xlane.f32.xlu0 %v1327
    %v1329 = vpop.xlane.xlu0 %1328
    %v1330 = vsel %vm412, %v1316, -inf
    %1331 = vmax.xlane.f32.xlu0 %v1330
    %v1332 = vpop.xlane.xlu0 %1331
    %v1333 = vsel %vm412, %v1321, -inf
    %1334 = vmax.xlane.f32.xlu0 %v1333
    %v1335 = vpop.xlane.xlu0 %1334
    %v1336 = vsub.f32 %v1306, %v1326
    %v1337 = vsub.f32 %v1311, %v1329
    %v1338 = vsub.f32 %v1316, %v1332
    %v1339 = vsub.f32 %v1321, %v1335
    %v1340 = vmul.f32 %v1336, 1.442695
    %v1341 = vpow.pop %v1340
    %v1342 = vmul.f32 %v1337, 1.442695
    %v1343 = vpow.pop %v1342
    %v1344 = vmul.f32 %v1338, 1.442695
    %v1345 = vpow.pop %v1344
    %v1346 = vmul.f32 %v1339, 1.442695
    %v1347 = vpow.pop %v1346
    %v1348 = vsel %vm412, %v1341, 0.0
    %1349 = vadd.xlane.f32.xlu0 %v1348
    %v1350 = vpop.xlane.xlu0 %1349
    %v1351 = vsel %vm412, %v1343, 0.0
    %1352 = vadd.xlane.f32.xlu0 %v1351
    %v1353 = vpop.xlane.xlu0 %1352
    %v1354 = vsel %vm412, %v1345, 0.0
    %1355 = vadd.xlane.f32.xlu0 %v1354
    %v1356 = vpop.xlane.xlu0 %1355
    %v1357 = vsel %vm412, %v1347, 0.0
    %1358 = vadd.xlane.f32.xlu0 %v1357
    %v1359 = vpop.xlane.xlu0 %1358
    %v1360 = vrcp.pop %v1350
    %v1361 = vmul.f32 %v1341, %v1360
    %v1362 = vrcp.pop %v1353
    %v1363 = vmul.f32 %v1343, %v1362
    %v1364 = vrcp.pop %v1356
    %v1365 = vmul.f32 %v1345, %v1364
    %v1366 = vrcp.pop %v1359
    %v1367 = vmul.f32 %v1347, %v1366
    %1368 = vrot.lane.b32.xlu0 %v394, 32
    %v1369 = vpop.permute.xlu0 %1368
    %1370 = vrot.lane.b32.xlu0 %v399, 32
    %v1371 = vpop.permute.xlu0 %1370
    %1372 = vrot.lane.b32.xlu0 %v404, 32
    %v1373 = vpop.permute.xlu0 %1372
    %1374 = vrot.lane.b32.xlu0 %v409, 32
    %v1375 = vpop.permute.xlu0 %1374
    %v1381 = vsel %vm412, %v1361, 0
    %v1384 = vsel %vm412, %v1363, 0
    %v1387 = vsel %vm412, %v1365, 0
    %v1390 = vsel %vm412, %v1367, 0
    %1392 = vmatprep.subr.mxu0 0.0
    %1393 = vmatpush1.msra.mxu0 %v1369
    %1394 = vmatprep.subr.mxu0 0.0
    %1395 = vmatpush1.msra.mxu0 %v1371
    %1396 = vmatprep.subr.mxu0 0.0
    %1397 = vmatpush1.msra.mxu0 %v1373
    %1398 = vmatprep.subr.mxu0 0.0
    %1399 = vmatpush1.msra.mxu0 %v1375
    %1400 = vmatprep.subr.mxu0 0.0
    %1401 = vmatpush1.msra.mxu0 0.0
    %1402 = vmatprep.subr.mxu0 0.0
    %1403 = vmatpush1.msra.mxu0 0.0
    %1404 = vmatprep.subr.mxu0 0.0
    %1405 = vmatpush1.msra.mxu0 0.0
    %1406 = vmatprep.subr.mxu0 0.0
    %1407 = vmatpush1.msra.mxu0 0.0
    %1408 = vmatprep.subr.mxu0 0.0
    %1409 = vmatpush1.msra.mxu0 0.0
    %1410 = vmatprep.subr.mxu0 0.0
    %1411 = vmatpush1.msra.mxu0 0.0
    %1412 = vmatprep.subr.mxu0 0.0
    %1413 = vmatpush1.msra.mxu0 0.0
    %1414 = vmatprep.subr.mxu0 0.0
    %1415 = vmatpush1.msra.mxu0 0.0
    %1416 = vmatprep.subr.mxu0 0.0
    %1417 = vmatpush1.msra.mxu0 0.0
    %1418 = vmatprep.subr.mxu0 0.0
    %1419 = vmatpush1.msra.mxu0 0.0
    %1420 = vmatprep.subr.mxu0 0.0
    %1421 = vmatpush1.msra.mxu0 0.0
    %1422 = vmatprep.subr.mxu0 0.0
    %1423 = vmatpush1.msra.mxu0 0.0
    %1424 = vmatprep.subr.mxu0 0.0
    %1425 = vmatpush1.msra.mxu0 0.0
    %1426 = vmatprep.subr.mxu0 0.0
    %1427 = vmatpush1.msra.mxu0 0.0
    %1428 = vmatprep.subr.mxu0 0.0
    %1429 = vmatpush1.msra.mxu0 0.0
    %1430 = vmatprep.subr.mxu0 0.0
    %1431 = vmatpush1.msra.mxu0 0.0
    %1432 = vmatprep.subr.mxu0 0.0
    %1433 = vmatpush1.msra.mxu0 0.0
    %1434 = vmatprep.subr.mxu0 0.0
    %1435 = vmatpush1.msra.mxu0 0.0
    %1436 = vmatprep.subr.mxu0 0.0
    %1437 = vmatpush1.msra.mxu0 0.0
    %1438 = vmatprep.subr.mxu0 0.0
    %1439 = vmatpush1.msra.mxu0 0.0
    %1440 = vmatprep.subr.mxu0 0.0
    %1441 = vmatpush1.msra.mxu0 0.0
    %1442 = vmatprep.subr.mxu0 0.0
    %1443 = vmatpush1.msra.mxu0 0.0
    %1444 = vmatprep.subr.mxu0 0.0
    %1445 = vmatpush1.msra.mxu0 0.0
    %1446 = vmatprep.subr.mxu0 0.0
    %1447 = vmatpush1.msra.mxu0 0.0
    %1448 = vmatprep.subr.mxu0 0.0
    %1449 = vmatpush1.msra.mxu0 0.0
    %1450 = vmatprep.subr.mxu0 0.0
    %1451 = vmatpush1.msra.mxu0 0.0
    %1452 = vmatprep.subr.mxu0 0.0
    %1453 = vmatpush1.msra.mxu0 0.0
    %1454 = vmatprep.subr.mxu0 0.0
    %1455 = vmatpush1.msra.mxu0 0.0
    %1456 = vmatprep.mubr.f32.mxu0 0.0
    %1457 = vmatmul.mubr.f32.gmra.mrb[0].mxu0 %v1381
    %v1458 = vpop.f32.mrb[0].mxu0
    %v1459 = vadd.f32 0.0, %v1458
    %v1460 = vpop.f32.mrb[0].mxu0
    %1461 = vmatprep.mubr.f32.mxu0 0.0
    %1462 = vmatmul.mubr.f32.gmra.mrb[0].mxu0 %v1384
    %v1463 = vpop.f32.mrb[0].mxu0
    %v1464 = vadd.f32 0.0, %v1463
    %v1465 = vpop.f32.mrb[0].mxu0
    %1466 = vmatprep.mubr.f32.mxu0 0.0
    %1467 = vmatmul.mubr.f32.gmra.mrb[0].mxu0 %v1387
    %v1468 = vpop.f32.mrb[0].mxu0
    %v1469 = vadd.f32 0.0, %v1468
    %v1470 = vpop.f32.mrb[0].mxu0
    %1471 = vmatprep.mubr.f32.mxu0 0.0
    %1472 = vmatmul.mubr.f32.gmra.mrb[0].mxu0 %v1390
    %v1473 = vpop.f32.mrb[0].mxu0
    %v1474 = vadd.f32 0.0, %v1473
    %v1475 = vpop.f32.mrb[0].mxu0
    %1476 = vdwg.mxu0
    %1481 = vrot.lane.b32.xlu0 %v919, 32
    %v1482 = vpop.permute.xlu0 %1481
    %1483 = vrot.lane.b32.xlu0 %v924, 32
    %v1484 = vpop.permute.xlu0 %1483
    %1485 = vrot.lane.b32.xlu0 %v929, 32
    %v1486 = vpop.permute.xlu0 %1485
    %1487 = vrot.lane.b32.xlu0 %v934, 32
    %v1488 = vpop.permute.xlu0 %1487
    %1497 = vrot.lane.b32.xlu0 %v1189, 64
    %v1498 = vpop.permute.xlu0 %1497
    %1499 = vrot.lane.b32.xlu0 %v1194, 64
    %v1500 = vpop.permute.xlu0 %1499
    %1501 = vrot.lane.b32.xlu0 %v1199, 64
    %v1502 = vpop.permute.xlu0 %1501
    %1503 = vrot.lane.b32.xlu0 %v1204, 64
    %v1504 = vpop.permute.xlu0 %1503
    %1513 = vrot.lane.b32.xlu0 %v1459, 96
    %v1514 = vpop.permute.xlu0 %1513
    %1515 = vrot.lane.b32.xlu0 %v1464, 96
    %v1516 = vpop.permute.xlu0 %1515
    %1517 = vrot.lane.b32.xlu0 %v1469, 96
    %v1518 = vpop.permute.xlu0 %1517
    %1519 = vrot.lane.b32.xlu0 %v1474, 96
    %v1520 = vpop.permute.xlu0 %1519
    %v1525 = vsel %vm412, %v645, %v1482
    %v1526 = vsel %vm412, %v650, %v1484
    %v1527 = vsel %vm412, %v655, %v1486
    %v1528 = vsel %vm412, %v660, %v1488
    %vm1529 = vcmask 523264
    %v1530 = vsel %vm1529, %v1525, %v1498
    %v1531 = vsel %vm1529, %v1526, %v1500
    %v1532 = vsel %vm1529, %v1527, %v1502
    %v1533 = vsel %vm1529, %v1528, %v1504
    %vm1534 = vcmask 785408
    %v1535 = vsel %vm1534, %v1530, %v1514
    %v1536 = vsel %vm1534, %v1531, %v1516
    %v1537 = vsel %vm1534, %v1532, %v1518
    %v1538 = vsel %vm1534, %v1533, %v1520
    %v1539 = vld [vmem:[%s6] sm:$0xff]
    %v1540 = vld [vmem:[%s6 + $0x8] sm:$0xff]
    %v1541 = vld [vmem:[%s6 + $0x10] sm:$0xff]
    %v1542 = vld [vmem:[%s6 + $0x18] sm:$0xff]
    %v1543 = vld [vmem:[%s6 + $0x20] sm:$0xff]
    %v1544 = vld [vmem:[%s6 + $0x28] sm:$0xff]
    %v1545 = vld [vmem:[%s6 + $0x30] sm:$0xff]
    %v1546 = vld [vmem:[%s6 + $0x38] sm:$0xff]
    %v1547 = vld [vmem:[%s6 + $0x40] sm:$0xff]
    %v1548 = vld [vmem:[%s6 + $0x48] sm:$0xff]
    %v1549 = vld [vmem:[%s6 + $0x50] sm:$0xff]
    %v1550 = vld [vmem:[%s6 + $0x58] sm:$0xff]
    %v1551 = vld [vmem:[%s6 + $0x60] sm:$0xff]
    %v1552 = vld [vmem:[%s6 + $0x68] sm:$0xff]
    %v1553 = vld [vmem:[%s6 + $0x70] sm:$0xff]
    %v1554 = vld [vmem:[%s6 + $0x78] sm:$0xff]
    %v1555 = vld [vmem:[%s7] sm:$0x1]
    %v1557 = vlaneseq
    %v1558 = vshrl.u32 %v1557, 7
    %v1559 = vsub.s32 0, %v1558
    %v1560 = vrot.slane %v1555, %v1559
    %1562 = vmatprep.subr.mxu0 0.0
    %1563 = vmatpush1.msra.mxu0 %v1539
    %1564 = vmatprep.subr.mxu0 0.0
    %1565 = vmatpush1.msra.mxu0 %v1540
    %1566 = vmatprep.subr.mxu0 0.0
    %1567 = vmatpush1.msra.mxu0 %v1541
    %1568 = vmatprep.subr.mxu0 0.0
    %1569 = vmatpush1.msra.mxu0 %v1542
    %1570 = vmatprep.subr.mxu0 0.0
    %1571 = vmatpush1.msra.mxu0 %v1543
    %1572 = vmatprep.subr.mxu0 0.0
    %1573 = vmatpush1.msra.mxu0 %v1544
    %1574 = vmatprep.subr.mxu0 0.0
    %1575 = vmatpush1.msra.mxu0 %v1545
    %1576 = vmatprep.subr.mxu0 0.0
    %1577 = vmatpush1.msra.mxu0 %v1546
    %1578 = vmatprep.subr.mxu0 0.0
    %1579 = vmatpush1.msra.mxu0 %v1547
    %1580 = vmatprep.subr.mxu0 0.0
    %1581 = vmatpush1.msra.mxu0 %v1548
    %1582 = vmatprep.subr.mxu0 0.0
    %1583 = vmatpush1.msra.mxu0 %v1549
    %1584 = vmatprep.subr.mxu0 0.0
    %1585 = vmatpush1.msra.mxu0 %v1550
    %1586 = vmatprep.subr.mxu0 0.0
    %1587 = vmatpush1.msra.mxu0 %v1551
    %1588 = vmatprep.subr.mxu0 0.0
    %1589 = vmatpush1.msra.mxu0 %v1552
    %1590 = vmatprep.subr.mxu0 0.0
    %1591 = vmatpush1.msra.mxu0 %v1553
    %1592 = vmatprep.subr.mxu0 0.0
    %1593 = vmatpush1.msra.mxu0 %v1554
    %1594 = vmatprep.subr.mxu0 0.0
    %1595 = vmatpush1.msra.mxu0 0.0
    %1596 = vmatprep.subr.mxu0 0.0
    %1597 = vmatpush1.msra.mxu0 0.0
    %1598 = vmatprep.subr.mxu0 0.0
    %1599 = vmatpush1.msra.mxu0 0.0
    %1600 = vmatprep.subr.mxu0 0.0
    %1601 = vmatpush1.msra.mxu0 0.0
    %1602 = vmatprep.subr.mxu0 0.0
    %1603 = vmatpush1.msra.mxu0 0.0
    %1604 = vmatprep.subr.mxu0 0.0
    %1605 = vmatpush1.msra.mxu0 0.0
    %1606 = vmatprep.subr.mxu0 0.0
    %1607 = vmatpush1.msra.mxu0 0.0
    %1608 = vmatprep.subr.mxu0 0.0
    %1609 = vmatpush1.msra.mxu0 0.0
    %1610 = vmatprep.subr.mxu0 0.0
    %1611 = vmatpush1.msra.mxu0 0.0
    %1612 = vmatprep.subr.mxu0 0.0
    %1613 = vmatpush1.msra.mxu0 0.0
    %1614 = vmatprep.subr.mxu0 0.0
    %1615 = vmatpush1.msra.mxu0 0.0
    %1616 = vmatprep.subr.mxu0 0.0
    %1617 = vmatpush1.msra.mxu0 0.0
    %1618 = vmatprep.subr.mxu0 0.0
    %1619 = vmatpush1.msra.mxu0 0.0
    %1620 = vmatprep.subr.mxu0 0.0
    %1621 = vmatpush1.msra.mxu0 0.0
    %1622 = vmatprep.subr.mxu0 0.0
    %1623 = vmatpush1.msra.mxu0 0.0
    %1624 = vmatprep.subr.mxu0 0.0
    %1625 = vmatpush1.msra.mxu0 0.0
    %1626 = vmatprep.mubr.f32.mxu0 0.0
    %1627 = vmatmul.mubr.f32.gmra.mrb[0].mxu0 %v1535
    %v1628 = vpop.f32.mrb[0].mxu0
    %v1629 = vadd.f32 %v1560, %v1628
    %v1630 = vpop.f32.mrb[0].mxu0
    %1631 = vmatprep.mubr.f32.mxu0 0.0
    %1632 = vmatmul.mubr.f32.gmra.mrb[0].mxu0 %v1536
    %v1633 = vpop.f32.mrb[0].mxu0
    %v1634 = vadd.f32 %v1560, %v1633
    %v1635 = vpop.f32.mrb[0].mxu0
    %1636 = vmatprep.mubr.f32.mxu0 0.0
    %1637 = vmatmul.mubr.f32.gmra.mrb[0].mxu0 %v1537
    %v1638 = vpop.f32.mrb[0].mxu0
    %v1639 = vadd.f32 %v1560, %v1638
    %v1640 = vpop.f32.mrb[0].mxu0
    %1641 = vmatprep.mubr.f32.mxu0 0.0
    %1642 = vmatmul.mubr.f32.gmra.mrb[0].mxu0 %v1538
    %v1643 = vpop.f32.mrb[0].mxu0
    %v1644 = vadd.f32 %v1560, %v1643
    %v1645 = vpop.f32.mrb[0].mxu0
    %1646 = vdwg.mxu0
    %v1647 = vadd.f32 %v98, %v1629
    %v1648 = vadd.f32 %v99, %v1634
    %v1649 = vadd.f32 %v100, %v1639
    %v1650 = vadd.f32 %v101, %v1644
    %v1651 = vld [vmem:[%s8] sm:$0x1]
    %v1652 = vld [vmem:[%s9] sm:$0x1]
    %1653 = vadd.xlane.f32.xlu0 %v1647
    %v1654 = vpop.xlane.xlu0 %1653
    %1655 = vadd.xlane.f32.xlu0 %v1648
    %v1656 = vpop.xlane.xlu0 %1655
    %1657 = vadd.xlane.f32.xlu0 %v1649
    %v1658 = vpop.xlane.xlu0 %1657
    %1659 = vadd.xlane.f32.xlu0 %v1650
    %v1660 = vpop.xlane.xlu0 %1659
    %v1661 = vmul.f32 %v1654, %v116
    %v1662 = vmul.f32 %v1656, %v116
    %v1663 = vmul.f32 %v1658, %v116
    %v1664 = vmul.f32 %v1660, %v116
    %v1665 = vsub.f32 %v1647, %v1661
    %v1666 = vsub.f32 %v1648, %v1662
    %v1667 = vsub.f32 %v1649, %v1663
    %v1668 = vsub.f32 %v1650, %v1664
    %v1669 = vmul.f32 %v1665, %v1665
    %v1670 = vmul.f32 %v1666, %v1666
    %v1671 = vmul.f32 %v1667, %v1667
    %v1672 = vmul.f32 %v1668, %v1668
    %1673 = vadd.xlane.f32.xlu0 %v1669
    %v1674 = vpop.xlane.xlu0 %1673
    %1675 = vadd.xlane.f32.xlu0 %v1670
    %v1676 = vpop.xlane.xlu0 %1675
    %1677 = vadd.xlane.f32.xlu0 %v1671
    %v1678 = vpop.xlane.xlu0 %1677
    %1679 = vadd.xlane.f32.xlu0 %v1672
    %v1680 = vpop.xlane.xlu0 %1679
    %v1681 = vmul.f32 %v1674, %v116
    %v1682 = vmul.f32 %v1676, %v116
    %v1683 = vmul.f32 %v1678, %v116
    %v1684 = vmul.f32 %v1680, %v116
    %v1685 = vadd.f32 %v1681, 1e-05
    %v1686 = vadd.f32 %v1682, 1e-05
    %v1687 = vadd.f32 %v1683, 1e-05
    %v1688 = vadd.f32 %v1684, 1e-05
    %v1689 = vrsqrt.pop %v1685
    %v1690 = vrsqrt.pop %v1686
    %v1691 = vrsqrt.pop %v1687
    %v1692 = vrsqrt.pop %v1688
    %v1693 = vmul.f32 %v1665, %v1689
    %v1694 = vmul.f32 %v1666, %v1690
    %v1695 = vmul.f32 %v1667, %v1691
    %v1696 = vmul.f32 %v1668, %v1692
    %v1698 = vlaneseq
    %v1699 = vshrl.u32 %v1698, 7
    %v1700 = vsub.s32 0, %v1699
    %v1701 = vrot.slane %v1651, %v1700
    %v1703 = vmul.f32 %v1693, %v1701
    %v1704 = vmul.f32 %v1694, %v1701
    %v1705 = vmul.f32 %v1695, %v1701
    %v1706 = vmul.f32 %v1696, %v1701
    %v1708 = vlaneseq
    %v1709 = vshrl.u32 %v1708, 7
    %v1710 = vsub.s32 0, %v1709
    %v1711 = vrot.slane %v1652, %v1710
    %v1713 = vadd.f32 %v1703, %v1711
    %v1714 = vadd.f32 %v1704, %v1711
    %v1715 = vadd.f32 %v1705, %v1711
    %v1716 = vadd.f32 %v1706, %v1711
    %v1717 = vld [vmem:[#allocation5] sm:$0xff]
    %v1718 = vld [vmem:[#allocation5 + $0x8] sm:$0xff]
    %v1719 = vld [vmem:[#allocation5 + $0x10] sm:$0xff]
    %v1720 = vld [vmem:[#allocation5 + $0x18] sm:$0xff]
    %v1721 = vld [vmem:[#allocation5 + $0x20] sm:$0xff]
    %v1722 = vld [vmem:[#allocation5 + $0x28] sm:$0xff]
    %v1723 = vld [vmem:[#allocation5 + $0x30] sm:$0xff]
    %v1724 = vld [vmem:[#allocation5 + $0x38] sm:$0xff]
    %v1725 = vld [vmem:[#allocation5 + $0x40] sm:$0xff]
    %v1726 = vld [vmem:[#allocation5 + $0x48] sm:$0xff]
    %v1727 = vld [vmem:[#allocation5 + $0x50] sm:$0xff]
    %v1728 = vld [vmem:[#allocation5 + $0x58] sm:$0xff]
    %v1729 = vld [vmem:[#allocation5 + $0x60] sm:$0xff]
    %v1730 = vld [vmem:[#allocation5 + $0x68] sm:$0xff]
    %v1731 = vld [vmem:[#allocation5 + $0x70] sm:$0xff]
    %v1732 = vld [vmem:[#allocation5 + $0x78] sm:$0xff]
    %v1733 = vld [vmem:[#allocation5 + $0x80] sm:$0xff]
    %v1734 = vld [vmem:[#allocation5 + $0x88] sm:$0xff]
    %v1735 = vld [vmem:[#allocation5 + $0x90] sm:$0xff]
    %v1736 = vld [vmem:[#allocation5 + $0x98] sm:$0xff]
    %v1737 = vld [vmem:[#allocation5 + $0xa0] sm:$0xff]
    %v1738 = vld [vmem:[#allocation5 + $0xa8] sm:$0xff]
    %v1739 = vld [vmem:[#allocation5 + $0xb0] sm:$0xff]
    %v1740 = vld [vmem:[#allocation5 + $0xb8] sm:$0xff]
    %v1741 = vld [vmem:[#allocation5 + $0xc0] sm:$0xff]
    %v1742 = vld [vmem:[#allocation5 + $0xc8] sm:$0xff]
    %v1743 = vld [vmem:[#allocation5 + $0xd0] sm:$0xff]
    %v1744 = vld [vmem:[#allocation5 + $0xd8] sm:$0xff]
    %v1745 = vld [vmem:[#allocation5 + $0xe0] sm:$0xff]
    %v1746 = vld [vmem:[#allocation5 + $0xe8] sm:$0xff]
    %v1747 = vld [vmem:[#allocation5 + $0xf0] sm:$0xff]
    %v1748 = vld [vmem:[#allocation5 + $0xf8] sm:$0xff]
    %v1749 = vld [vmem:[#allocation5 + $0x100] sm:$0xff]
    %v1750 = vld [vmem:[#allocation5 + $0x108] sm:$0xff]
    %v1751 = vld [vmem:[#allocation5 + $0x110] sm:$0xff]
    %v1752 = vld [vmem:[#allocation5 + $0x118] sm:$0xff]
    %v1753 = vld [vmem:[#allocation5 + $0x120] sm:$0xff]
    %v1754 = vld [vmem:[#allocation5 + $0x128] sm:$0xff]
    %v1755 = vld [vmem:[#allocation5 + $0x130] sm:$0xff]
    %v1756 = vld [vmem:[#allocation5 + $0x138] sm:$0xff]
    %v1757 = vld [vmem:[#allocation5 + $0x140] sm:$0xff]
    %v1758 = vld [vmem:[#allocation5 + $0x148] sm:$0xff]
    %v1759 = vld [vmem:[#allocation5 + $0x150] sm:$0xff]
    %v1760 = vld [vmem:[#allocation5 + $0x158] sm:$0xff]
    %v1761 = vld [vmem:[#allocation5 + $0x160] sm:$0xff]
    %v1762 = vld [vmem:[#allocation5 + $0x168] sm:$0xff]
    %v1763 = vld [vmem:[#allocation5 + $0x170] sm:$0xff]
    %v1764 = vld [vmem:[#allocation5 + $0x178] sm:$0xff]
    %v1765 = vld [vmem:[#allocation5 + $0x180] sm:$0xff]
    %v1766 = vld [vmem:[#allocation5 + $0x188] sm:$0xff]
    %v1767 = vld [vmem:[#allocation5 + $0x190] sm:$0xff]
    %v1768 = vld [vmem:[#allocation5 + $0x198] sm:$0xff]
    %v1769 = vld [vmem:[#allocation5 + $0x1a0] sm:$0xff]
    %v1770 = vld [vmem:[#allocation5 + $0x1a8] sm:$0xff]
    %v1771 = vld [vmem:[#allocation5 + $0x1b0] sm:$0xff]
    %v1772 = vld [vmem:[#allocation5 + $0x1b8] sm:$0xff]
    %v1773 = vld [vmem:[#allocation5 + $0x1c0] sm:$0xff]
    %v1774 = vld [vmem:[#allocation5 + $0x1c8] sm:$0xff]
    %v1775 = vld [vmem:[#allocation5 + $0x1d0] sm:$0xff]
    %v1776 = vld [vmem:[#allocation5 + $0x1d8] sm:$0xff]
    %v1777 = vld [vmem:[#allocation5 + $0x1e0] sm:$0xff]
    %v1778 = vld [vmem:[#allocation5 + $0x1e8] sm:$0xff]
    %v1779 = vld [vmem:[#allocation5 + $0x1f0] sm:$0xff]
    %v1780 = vld [vmem:[#allocation5 + $0x1f8] sm:$0xff]
    %v1781 = vld [vmem:[%s11] sm:$0xf]
    %v1783 = vlaneseq
    %v1784 = vshrl.u32 %v1783, 7
    %v1785 = vsub.s32 0, %v1784
    %v1786 = vrot.slane %v1781, %v1785
    %v1787 = vlaneseq
    %v1788 = vshrl.u32 %v1787, 7
    %v1789 = vsub.s32 1, %v1788
    %v1790 = vrot.slane %v1781, %v1789
    %v1791 = vlaneseq
    %v1792 = vshrl.u32 %v1791, 7
    %v1793 = vsub.s32 2, %v1792
    %v1794 = vrot.slane %v1781, %v1793
    %v1795 = vlaneseq
    %v1796 = vshrl.u32 %v1795, 7
    %v1797 = vsub.s32 3, %v1796
    %v1798 = vrot.slane %v1781, %v1797
    %1803 = vmatprep.subr.mxu0 %v1718
    %1804 = vmatpush1.msra.mxu0 %v1717
    %1805 = vmatprep.subr.mxu0 %v1722
    %1806 = vmatpush1.msra.mxu0 %v1721
    %1807 = vmatprep.subr.mxu0 %v1726
    %1808 = vmatpush1.msra.mxu0 %v1725
    %1809 = vmatprep.subr.mxu0 %v1730
    %1810 = vmatpush1.msra.mxu0 %v1729
    %1811 = vmatprep.subr.mxu0 %v1734
    %1812 = vmatpush1.msra.mxu0 %v1733
    %1813 = vmatprep.subr.mxu0 %v1738
    %1814 = vmatpush1.msra.mxu0 %v1737
    %1815 = vmatprep.subr.mxu0 %v1742
    %1816 = vmatpush1.msra.mxu0 %v1741
    %1817 = vmatprep.subr.mxu0 %v1746
    %1818 = vmatpush1.msra.mxu0 %v1745
    %1819 = vmatprep.subr.mxu0 %v1750
    %1820 = vmatpush1.msra.mxu0 %v1749
    %1821 = vmatprep.subr.mxu0 %v1754
    %1822 = vmatpush1.msra.mxu0 %v1753
    %1823 = vmatprep.subr.mxu0 %v1758
    %1824 = vmatpush1.msra.mxu0 %v1757
    %1825 = vmatprep.subr.mxu0 %v1762
    %1826 = vmatpush1.msra.mxu0 %v1761
    %1827 = vmatprep.subr.mxu0 %v1766
    %1828 = vmatpush1.msra.mxu0 %v1765
    %1829 = vmatprep.subr.mxu0 %v1770
    %1830 = vmatpush1.msra.mxu0 %v1769
    %1831 = vmatprep.subr.mxu0 %v1774
    %1832 = vmatpush1.msra.mxu0 %v1773
    %1833 = vmatprep.subr.mxu0 %v1778
    %1834 = vmatpush1.msra.mxu0 %v1777
    %1835 = vmatprep.subr.mxu0 0.0
    %1836 = vmatpush1.msra.mxu0 0.0
    %1837 = vmatprep.subr.mxu0 0.0
    %1838 = vmatpush1.msra.mxu0 0.0
    %1839 = vmatprep.subr.mxu0 0.0
    %1840 = vmatpush1.msra.mxu0 0.0
    %1841 = vmatprep.subr.mxu0 0.0
    %1842 = vmatpush1.msra.mxu0 0.0
    %1843 = vmatprep.subr.mxu0 0.0
    %1844 = vmatpush1.msra.mxu0 0.0
    %1845 = vmatprep.subr.mxu0 0.0
    %1846 = vmatpush1.msra.mxu0 0.0
    %1847 = vmatprep.subr.mxu0 0.0
    %1848 = vmatpush1.msra.mxu0 0.0
    %1849 = vmatprep.subr.mxu0 0.0
    %1850 = vmatpush1.msra.mxu0 0.0
    %1851 = vmatprep.subr.mxu0 0.0
    %1852 = vmatpush1.msra.mxu0 0.0
    %1853 = vmatprep.subr.mxu0 0.0
    %1854 = vmatpush1.msra.mxu0 0.0
    %1855 = vmatprep.subr.mxu0 0.0
    %1856 = vmatpush1.msra.mxu0 0.0
    %1857 = vmatprep.subr.mxu0 0.0
    %1858 = vmatpush1.msra.mxu0 0.0
    %1859 = vmatprep.subr.mxu0 0.0
    %1860 = vmatpush1.msra.mxu0 0.0
    %1861 = vmatprep.subr.mxu0 0.0
    %1862 = vmatpush1.msra.mxu0 0.0
    %1863 = vmatprep.subr.mxu0 0.0
    %1864 = vmatpush1.msra.mxu0 0.0
    %1865 = vmatprep.subr.mxu0 0.0
    %1866 = vmatpush1.msra.mxu0 0.0
    %1867 = vmatprep.mubr.f32.mxu0 0.0
    %1868 = vmatmul.mubr.f32.gmra.mrb[0].mxu0 %v1713
    %v1869 = vpop.f32.mrb[0].mxu0
    %v1870 = vadd.f32 %v1786, %v1869
    %v1871 = vpop.f32.mrb[0].mxu0
    %v1872 = vadd.f32 %v1790, %v1871
    %1873 = vmatprep.mubr.f32.mxu0 0.0
    %1874 = vmatmul.mubr.f32.gmra.mrb[0].mxu0 %v1714
    %v1875 = vpop.f32.mrb[0].mxu0
    %v1876 = vadd.f32 %v1786, %v1875
    %v1877 = vpop.f32.mrb[0].mxu0
    %v1878 = vadd.f32 %v1790, %v1877
    %1879 = vmatprep.mubr.f32.mxu0 0.0
    %1880 = vmatmul.mubr.f32.gmra.mrb[0].mxu0 %v1715
    %v1881 = vpop.f32.mrb[0].mxu0
    %v1882 = vadd.f32 %v1786, %v1881
    %v1883 = vpop.f32.mrb[0].mxu0
    %v1884 = vadd.f32 %v1790, %v1883
    %1885 = vmatprep.mubr.f32.mxu0 0.0
    %1886 = vmatmul.mubr.f32.gmra.mrb[0].mxu0 %v1716
    %v1887 = vpop.f32.mrb[0].mxu0
    %v1888 = vadd.f32 %v1786, %v1887
    %v1889 = vpop.f32.mrb[0].mxu0
    %v1890 = vadd.f32 %v1790, %v1889
    %1891 = vdwg.mxu0
    %1892 = vmatprep.subr.mxu0 %v1720
    %1893 = vmatpush1.msra.mxu0 %v1719
    %1894 = vmatprep.subr.mxu0 %v1724
    %1895 = vmatpush1.msra.mxu0 %v1723
    %1896 = vmatprep.subr.mxu0 %v1728
    %1897 = vmatpush1.msra.mxu0 %v1727
    %1898 = vmatprep.subr.mxu0 %v1732
    %1899 = vmatpush1.msra.mxu0 %v1731
    %1900 = vmatprep.subr.mxu0 %v1736
    %1901 = vmatpush1.msra.mxu0 %v1735
    %1902 = vmatprep.subr.mxu0 %v1740
    %1903 = vmatpush1.msra.mxu0 %v1739
    %1904 = vmatprep.subr.mxu0 %v1744
    %1905 = vmatpush1.msra.mxu0 %v1743
    %1906 = vmatprep.subr.mxu0 %v1748
    %1907 = vmatpush1.msra.mxu0 %v1747
    %1908 = vmatprep.subr.mxu0 %v1752
    %1909 = vmatpush1.msra.mxu0 %v1751
    %1910 = vmatprep.subr.mxu0 %v1756
    %1911 = vmatpush1.msra.mxu0 %v1755
    %1912 = vmatprep.subr.mxu0 %v1760
    %1913 = vmatpush1.msra.mxu0 %v1759
    %1914 = vmatprep.subr.mxu0 %v1764
    %1915 = vmatpush1.msra.mxu0 %v1763
    %1916 = vmatprep.subr.mxu0 %v1768
    %1917 = vmatpush1.msra.mxu0 %v1767
    %1918 = vmatprep.subr.mxu0 %v1772
    %1919 = vmatpush1.msra.mxu0 %v1771
    %1920 = vmatprep.subr.mxu0 %v1776
    %1921 = vmatpush1.msra.mxu0 %v1775
    %1922 = vmatprep.subr.mxu0 %v1780
    %1923 = vmatpush1.msra.mxu0 %v1779
    %1924 = vmatprep.subr.mxu0 0.0
    %1925 = vmatpush1.msra.mxu0 0.0
    %1926 = vmatprep.subr.mxu0 0.0
    %1927 = vmatpush1.msra.mxu0 0.0
    %1928 = vmatprep.subr.mxu0 0.0
    %1929 = vmatpush1.msra.mxu0 0.0
    %1930 = vmatprep.subr.mxu0 0.0
    %1931 = vmatpush1.msra.mxu0 0.0
    %1932 = vmatprep.subr.mxu0 0.0
    %1933 = vmatpush1.msra.mxu0 0.0
    %1934 = vmatprep.subr.mxu0 0.0
    %1935 = vmatpush1.msra.mxu0 0.0
    %1936 = vmatprep.subr.mxu0 0.0
    %1937 = vmatpush1.msra.mxu0 0.0
    %1938 = vmatprep.subr.mxu0 0.0
    %1939 = vmatpush1.msra.mxu0 0.0
    %1940 = vmatprep.subr.mxu0 0.0
    %1941 = vmatpush1.msra.mxu0 0.0
    %1942 = vmatprep.subr.mxu0 0.0
    %1943 = vmatpush1.msra.mxu0 0.0
    %1944 = vmatprep.subr.mxu0 0.0
    %1945 = vmatpush1.msra.mxu0 0.0
    %1946 = vmatprep.subr.mxu0 0.0
    %1947 = vmatpush1.msra.mxu0 0.0
    %1948 = vmatprep.subr.mxu0 0.0
    %1949 = vmatpush1.msra.mxu0 0.0
    %1950 = vmatprep.subr.mxu0 0.0
    %1951 = vmatpush1.msra.mxu0 0.0
    %1952 = vmatprep.subr.mxu0 0.0
    %1953 = vmatpush1.msra.mxu0 0.0
    %1954 = vmatprep.subr.mxu0 0.0
    %1955 = vmatpush1.msra.mxu0 0.0
    %1956 = vmatprep.mubr.f32.mxu0 0.0
    %1957 = vmatmul.mubr.f32.gmra.mrb[0].mxu0 %v1713
    %v1958 = vpop.f32.mrb[0].mxu0
    %v1959 = vadd.f32 %v1794, %v1958
    %v1960 = vpop.f32.mrb[0].mxu0
    %v1961 = vadd.f32 %v1798, %v1960
    %1962 = vmatprep.mubr.f32.mxu0 0.0
    %1963 = vmatmul.mubr.f32.gmra.mrb[0].mxu0 %v1714
    %v1964 = vpop.f32.mrb[0].mxu0
    %v1965 = vadd.f32 %v1794, %v1964
    %v1966 = vpop.f32.mrb[0].mxu0
    %v1967 = vadd.f32 %v1798, %v1966
    %1968 = vmatprep.mubr.f32.mxu0 0.0
    %1969 = vmatmul.mubr.f32.gmra.mrb[0].mxu0 %v1715
    %v1970 = vpop.f32.mrb[0].mxu0
    %v1971 = vadd.f32 %v1794, %v1970
    %v1972 = vpop.f32.mrb[0].mxu0
    %v1973 = vadd.f32 %v1798, %v1972
    %1974 = vmatprep.mubr.f32.mxu0 0.0
    %1975 = vmatmul.mubr.f32.gmra.mrb[0].mxu0 %v1716
    %v1976 = vpop.f32.mrb[0].mxu0
    %v1977 = vadd.f32 %v1794, %v1976
    %v1978 = vpop.f32.mrb[0].mxu0
    %v1979 = vadd.f32 %v1798, %v1978
    %1980 = vdwg.mxu0
    %v1981 = vmul.f32 %v1870, 0.5
    %v1982 = vmul.f32 %v1872, 0.5
    %v1983 = vmul.f32 %v1959, 0.5
    %v1984 = vmul.f32 %v1961, 0.5
    %v1985 = vmul.f32 %v1876, 0.5
    %v1986 = vmul.f32 %v1878, 0.5
    %v1987 = vmul.f32 %v1965, 0.5
    %v1988 = vmul.f32 %v1967, 0.5
    %v1989 = vmul.f32 %v1882, 0.5
    %v1990 = vmul.f32 %v1884, 0.5
    %v1991 = vmul.f32 %v1971, 0.5
    %v1992 = vmul.f32 %v1973, 0.5
    %v1993 = vmul.f32 %v1888, 0.5
    %v1994 = vmul.f32 %v1890, 0.5
    %v1995 = vmul.f32 %v1977, 0.5
    %v1996 = vmul.f32 %v1979, 0.5
    %v1997 = vmul.f32 %v1870, 0.70710677
    %v1998 = vmul.f32 %v1872, 0.70710677
    %v1999 = vmul.f32 %v1959, 0.70710677
    %v2000 = vmul.f32 %v1961, 0.70710677
    %v2001 = vmul.f32 %v1876, 0.70710677
    %v2002 = vmul.f32 %v1878, 0.70710677
    %v2003 = vmul.f32 %v1965, 0.70710677
    %v2004 = vmul.f32 %v1967, 0.70710677
    %v2005 = vmul.f32 %v1882, 0.70710677
    %v2006 = vmul.f32 %v1884, 0.70710677
    %v2007 = vmul.f32 %v1971, 0.70710677
    %v2008 = vmul.f32 %v1973, 0.70710677
    %v2009 = vmul.f32 %v1888, 0.70710677
    %v2010 = vmul.f32 %v1890, 0.70710677
    %v2011 = vmul.f32 %v1977, 0.70710677
    %v2012 = vmul.f32 %v1979, 0.70710677
    %v2013 = verf.f32.pop %v1997
    %v2014 = verf.f32.pop %v1998
    %v2015 = verf.f32.pop %v1999
    %v2016 = verf.f32.pop %v2000
    %v2017 = verf.f32.pop %v2001
    %v2018 = verf.f32.pop %v2002
    %v2019 = verf.f32.pop %v2003
    %v2020 = verf.f32.pop %v2004
    %v2021 = verf.f32.pop %v2005
    %v2022 = verf.f32.pop %v2006
    %v2023 = verf.f32.pop %v2007
    %v2024 = verf.f32.pop %v2008
    %v2025 = verf.f32.pop %v2009
    %v2026 = verf.f32.pop %v2010
    %v2027 = verf.f32.pop %v2011
    %v2028 = verf.f32.pop %v2012
    %v2029 = vadd.f32 %v2013, 1.0
    %v2030 = vadd.f32 %v2014, 1.0
    %v2031 = vadd.f32 %v2015, 1.0
    %v2032 = vadd.f32 %v2016, 1.0
    %v2033 = vadd.f32 %v2017, 1.0
    %v2034 = vadd.f32 %v2018, 1.0
    %v2035 = vadd.f32 %v2019, 1.0
    %v2036 = vadd.f32 %v2020, 1.0
    %v2037 = vadd.f32 %v2021, 1.0
    %v2038 = vadd.f32 %v2022, 1.0
    %v2039 = vadd.f32 %v2023, 1.0
    %v2040 = vadd.f32 %v2024, 1.0
    %v2041 = vadd.f32 %v2025, 1.0
    %v2042 = vadd.f32 %v2026, 1.0
    %v2043 = vadd.f32 %v2027, 1.0
    %v2044 = vadd.f32 %v2028, 1.0
    %v2045 = vmul.f32 %v1981, %v2029
    %v2046 = vmul.f32 %v1982, %v2030
    %v2047 = vmul.f32 %v1983, %v2031
    %v2048 = vmul.f32 %v1984, %v2032
    %v2049 = vmul.f32 %v1985, %v2033
    %v2050 = vmul.f32 %v1986, %v2034
    %v2051 = vmul.f32 %v1987, %v2035
    %v2052 = vmul.f32 %v1988, %v2036
    %v2053 = vmul.f32 %v1989, %v2037
    %v2054 = vmul.f32 %v1990, %v2038
    %v2055 = vmul.f32 %v1991, %v2039
    %v2056 = vmul.f32 %v1992, %v2040
    %v2057 = vmul.f32 %v1993, %v2041
    %v2058 = vmul.f32 %v1994, %v2042
    %v2059 = vmul.f32 %v1995, %v2043
    %v2060 = vmul.f32 %v1996, %v2044
    %v2061 = vld [vmem:[#allocation7] sm:$0xff]
    %v2062 = vld [vmem:[#allocation7 + $0x8] sm:$0xff]
    %v2063 = vld [vmem:[#allocation7 + $0x10] sm:$0xff]
    %v2064 = vld [vmem:[#allocation7 + $0x18] sm:$0xff]
    %v2065 = vld [vmem:[#allocation7 + $0x20] sm:$0xff]
    %v2066 = vld [vmem:[#allocation7 + $0x28] sm:$0xff]
    %v2067 = vld [vmem:[#allocation7 + $0x30] sm:$0xff]
    %v2068 = vld [vmem:[#allocation7 + $0x38] sm:$0xff]
    %v2069 = vld [vmem:[#allocation7 + $0x40] sm:$0xff]
    %v2070 = vld [vmem:[#allocation7 + $0x48] sm:$0xff]
    %v2071 = vld [vmem:[#allocation7 + $0x50] sm:$0xff]
    %v2072 = vld [vmem:[#allocation7 + $0x58] sm:$0xff]
    %v2073 = vld [vmem:[#allocation7 + $0x60] sm:$0xff]
    %v2074 = vld [vmem:[#allocation7 + $0x68] sm:$0xff]
    %v2075 = vld [vmem:[#allocation7 + $0x70] sm:$0xff]
    %v2076 = vld [vmem:[#allocation7 + $0x78] sm:$0xff]
    %v2077 = vld [vmem:[#allocation7 + $0x80] sm:$0xff]
    %v2078 = vld [vmem:[#allocation7 + $0x88] sm:$0xff]
    %v2079 = vld [vmem:[#allocation7 + $0x90] sm:$0xff]
    %v2080 = vld [vmem:[#allocation7 + $0x98] sm:$0xff]
    %v2081 = vld [vmem:[#allocation7 + $0xa0] sm:$0xff]
    %v2082 = vld [vmem:[#allocation7 + $0xa8] sm:$0xff]
    %v2083 = vld [vmem:[#allocation7 + $0xb0] sm:$0xff]
    %v2084 = vld [vmem:[#allocation7 + $0xb8] sm:$0xff]
    %v2085 = vld [vmem:[#allocation7 + $0xc0] sm:$0xff]
    %v2086 = vld [vmem:[#allocation7 + $0xc8] sm:$0xff]
    %v2087 = vld [vmem:[#allocation7 + $0xd0] sm:$0xff]
    %v2088 = vld [vmem:[#allocation7 + $0xd8] sm:$0xff]
    %v2089 = vld [vmem:[#allocation7 + $0xe0] sm:$0xff]
    %v2090 = vld [vmem:[#allocation7 + $0xe8] sm:$0xff]
    %v2091 = vld [vmem:[#allocation7 + $0xf0] sm:$0xff]
    %v2092 = vld [vmem:[#allocation7 + $0xf8] sm:$0xff]
    %v2093 = vld [vmem:[#allocation7 + $0x100] sm:$0xff]
    %v2094 = vld [vmem:[#allocation7 + $0x108] sm:$0xff]
    %v2095 = vld [vmem:[#allocation7 + $0x110] sm:$0xff]
    %v2096 = vld [vmem:[#allocation7 + $0x118] sm:$0xff]
    %v2097 = vld [vmem:[#allocation7 + $0x120] sm:$0xff]
    %v2098 = vld [vmem:[#allocation7 + $0x128] sm:$0xff]
    %v2099 = vld [vmem:[#allocation7 + $0x130] sm:$0xff]
    %v2100 = vld [vmem:[#allocation7 + $0x138] sm:$0xff]
    %v2101 = vld [vmem:[#allocation7 + $0x140] sm:$0xff]
    %v2102 = vld [vmem:[#allocation7 + $0x148] sm:$0xff]
    %v2103 = vld [vmem:[#allocation7 + $0x150] sm:$0xff]
    %v2104 = vld [vmem:[#allocation7 + $0x158] sm:$0xff]
    %v2105 = vld [vmem:[#allocation7 + $0x160] sm:$0xff]
    %v2106 = vld [vmem:[#allocation7 + $0x168] sm:$0xff]
    %v2107 = vld [vmem:[#allocation7 + $0x170] sm:$0xff]
    %v2108 = vld [vmem:[#allocation7 + $0x178] sm:$0xff]
    %v2109 = vld [vmem:[#allocation7 + $0x180] sm:$0xff]
    %v2110 = vld [vmem:[#allocation7 + $0x188] sm:$0xff]
    %v2111 = vld [vmem:[#allocation7 + $0x190] sm:$0xff]
    %v2112 = vld [vmem:[#allocation7 + $0x198] sm:$0xff]
    %v2113 = vld [vmem:[#allocation7 + $0x1a0] sm:$0xff]
    %v2114 = vld [vmem:[#allocation7 + $0x1a8] sm:$0xff]
    %v2115 = vld [vmem:[#allocation7 + $0x1b0] sm:$0xff]
    %v2116 = vld [vmem:[#allocation7 + $0x1b8] sm:$0xff]
    %v2117 = vld [vmem:[#allocation7 + $0x1c0] sm:$0xff]
    %v2118 = vld [vmem:[#allocation7 + $0x1c8] sm:$0xff]
    %v2119 = vld [vmem:[#allocation7 + $0x1d0] sm:$0xff]
    %v2120 = vld [vmem:[#allocation7 + $0x1d8] sm:$0xff]
    %v2121 = vld [vmem:[#allocation7 + $0x1e0] sm:$0xff]
    %v2122 = vld [vmem:[#allocation7 + $0x1e8] sm:$0xff]
    %v2123 = vld [vmem:[#allocation7 + $0x1f0] sm:$0xff]
    %v2124 = vld [vmem:[#allocation7 + $0x1f8] sm:$0xff]
    %v2125 = vld [vmem:[%s13] sm:$0x1]
    %v2127 = vlaneseq
    %v2128 = vshrl.u32 %v2127, 7
    %v2129 = vsub.s32 0, %v2128
    %v2130 = vrot.slane %v2125, %v2129
    %2132 = vmatprep.subr.mxu0 0.0
    %2133 = vmatpush1.msra.mxu0 %v2061
    %2134 = vmatprep.subr.mxu0 0.0
    %2135 = vmatpush1.msra.mxu0 %v2062
    %2136 = vmatprep.subr.mxu0 0.0
    %2137 = vmatpush1.msra.mxu0 %v2063
    %2138 = vmatprep.subr.mxu0 0.0
    %2139 = vmatpush1.msra.mxu0 %v2064
    %2140 = vmatprep.subr.mxu0 0.0
    %2141 = vmatpush1.msra.mxu0 %v2065
    %2142 = vmatprep.subr.mxu0 0.0
    %2143 = vmatpush1.msra.mxu0 %v2066
    %2144 = vmatprep.subr.mxu0 0.0
    %2145 = vmatpush1.msra.mxu0 %v2067
    %2146 = vmatprep.subr.mxu0 0.0
    %2147 = vmatpush1.msra.mxu0 %v2068
    %2148 = vmatprep.subr.mxu0 0.0
    %2149 = vmatpush1.msra.mxu0 %v2069
    %2150 = vmatprep.subr.mxu0 0.0
    %2151 = vmatpush1.msra.mxu0 %v2070
    %2152 = vmatprep.subr.mxu0 0.0
    %2153 = vmatpush1.msra.mxu0 %v2071
    %2154 = vmatprep.subr.mxu0 0.0
    %2155 = vmatpush1.msra.mxu0 %v2072
    %2156 = vmatprep.subr.mxu0 0.0
    %2157 = vmatpush1.msra.mxu0 %v2073
    %2158 = vmatprep.subr.mxu0 0.0
    %2159 = vmatpush1.msra.mxu0 %v2074
    %2160 = vmatprep.subr.mxu0 0.0
    %2161 = vmatpush1.msra.mxu0 %v2075
    %2162 = vmatprep.subr.mxu0 0.0
    %2163 = vmatpush1.msra.mxu0 %v2076
    %2164 = vmatprep.subr.mxu0 0.0
    %2165 = vmatpush1.msra.mxu0 %v2077
    %2166 = vmatprep.subr.mxu0 0.0
    %2167 = vmatpush1.msra.mxu0 %v2078
    %2168 = vmatprep.subr.mxu0 0.0
    %2169 = vmatpush1.msra.mxu0 %v2079
    %2170 = vmatprep.subr.mxu0 0.0
    %2171 = vmatpush1.msra.mxu0 %v2080
    %2172 = vmatprep.subr.mxu0 0.0
    %2173 = vmatpush1.msra.mxu0 %v2081
    %2174 = vmatprep.subr.mxu0 0.0
    %2175 = vmatpush1.msra.mxu0 %v2082
    %2176 = vmatprep.subr.mxu0 0.0
    %2177 = vmatpush1.msra.mxu0 %v2083
    %2178 = vmatprep.subr.mxu0 0.0
    %2179 = vmatpush1.msra.mxu0 %v2084
    %2180 = vmatprep.subr.mxu0 0.0
    %2181 = vmatpush1.msra.mxu0 %v2085
    %2182 = vmatprep.subr.mxu0 0.0
    %2183 = vmatpush1.msra.mxu0 %v2086
    %2184 = vmatprep.subr.mxu0 0.0
    %2185 = vmatpush1.msra.mxu0 %v2087
    %2186 = vmatprep.subr.mxu0 0.0
    %2187 = vmatpush1.msra.mxu0 %v2088
    %2188 = vmatprep.subr.mxu0 0.0
    %2189 = vmatpush1.msra.mxu0 %v2089
    %2190 = vmatprep.subr.mxu0 0.0
    %2191 = vmatpush1.msra.mxu0 %v2090
    %2192 = vmatprep.subr.mxu0 0.0
    %2193 = vmatpush1.msra.mxu0 %v2091
    %2194 = vmatprep.subr.mxu0 0.0
    %2195 = vmatpush1.msra.mxu0 %v2092
    %2196 = vmatprep.mubr.f32.mxu0 %v2046
    %2197 = vmatmul.mubr.f32.gmra.mrb[0].mxu0 %v2045
    %v2198 = vpop.f32.mrb[0].mxu0
    %v2199 = vadd.f32 %v2130, %v2198
    %v2200 = vpop.f32.mrb[0].mxu0
    %2201 = vmatprep.mubr.f32.mxu0 %v2050
    %2202 = vmatmul.mubr.f32.gmra.mrb[0].mxu0 %v2049
    %v2203 = vpop.f32.mrb[0].mxu0
    %v2204 = vadd.f32 %v2130, %v2203
    %v2205 = vpop.f32.mrb[0].mxu0
    %2206 = vmatprep.mubr.f32.mxu0 %v2054
    %2207 = vmatmul.mubr.f32.gmra.mrb[0].mxu0 %v2053
    %v2208 = vpop.f32.mrb[0].mxu0
    %v2209 = vadd.f32 %v2130, %v2208
    %v2210 = vpop.f32.mrb[0].mxu0
    %2211 = vmatprep.mubr.f32.mxu0 %v2058
    %2212 = vmatmul.mubr.f32.gmra.mrb[0].mxu0 %v2057
    %v2213 = vpop.f32.mrb[0].mxu0
    %v2214 = vadd.f32 %v2130, %v2213
    %v2215 = vpop.f32.mrb[0].mxu0
    %2216 = vdwg.mxu0
    %2217 = vmatprep.subr.mxu0 0.0
    %2218 = vmatpush1.msra.mxu0 %v2093
    %2219 = vmatprep.subr.mxu0 0.0
    %2220 = vmatpush1.msra.mxu0 %v2094
    %2221 = vmatprep.subr.mxu0 0.0
    %2222 = vmatpush1.msra.mxu0 %v2095
    %2223 = vmatprep.subr.mxu0 0.0
    %2224 = vmatpush1.msra.mxu0 %v2096
    %2225 = vmatprep.subr.mxu0 0.0
    %2226 = vmatpush1.msra.mxu0 %v2097
    %2227 = vmatprep.subr.mxu0 0.0
    %2228 = vmatpush1.msra.mxu0 %v2098
    %2229 = vmatprep.subr.mxu0 0.0
    %2230 = vmatpush1.msra.mxu0 %v2099
    %2231 = vmatprep.subr.mxu0 0.0
    %2232 = vmatpush1.msra.mxu0 %v2100
    %2233 = vmatprep.subr.mxu0 0.0
    %2234 = vmatpush1.msra.mxu0 %v2101
    %2235 = vmatprep.subr.mxu0 0.0
    %2236 = vmatpush1.msra.mxu0 %v2102
    %2237 = vmatprep.subr.mxu0 0.0
    %2238 = vmatpush1.msra.mxu0 %v2103
    %2239 = vmatprep.subr.mxu0 0.0
    %2240 = vmatpush1.msra.mxu0 %v2104
    %2241 = vmatprep.subr.mxu0 0.0
    %2242 = vmatpush1.msra.mxu0 %v2105
    %2243 = vmatprep.subr.mxu0 0.0
    %2244 = vmatpush1.msra.mxu0 %v2106
    %2245 = vmatprep.subr.mxu0 0.0
    %2246 = vmatpush1.msra.mxu0 %v2107
    %2247 = vmatprep.subr.mxu0 0.0
    %2248 = vmatpush1.msra.mxu0 %v2108
    %2249 = vmatprep.subr.mxu0 0.0
    %2250 = vmatpush1.msra.mxu0 %v2109
    %2251 = vmatprep.subr.mxu0 0.0
    %2252 = vmatpush1.msra.mxu0 %v2110
    %2253 = vmatprep.subr.mxu0 0.0
    %2254 = vmatpush1.msra.mxu0 %v2111
    %2255 = vmatprep.subr.mxu0 0.0
    %2256 = vmatpush1.msra.mxu0 %v2112
    %2257 = vmatprep.subr.mxu0 0.0
    %2258 = vmatpush1.msra.mxu0 %v2113
    %2259 = vmatprep.subr.mxu0 0.0
    %2260 = vmatpush1.msra.mxu0 %v2114
    %2261 = vmatprep.subr.mxu0 0.0
    %2262 = vmatpush1.msra.mxu0 %v2115
    %2263 = vmatprep.subr.mxu0 0.0
    %2264 = vmatpush1.msra.mxu0 %v2116
    %2265 = vmatprep.subr.mxu0 0.0
    %2266 = vmatpush1.msra.mxu0 %v2117
    %2267 = vmatprep.subr.mxu0 0.0
    %2268 = vmatpush1.msra.mxu0 %v2118
    %2269 = vmatprep.subr.mxu0 0.0
    %2270 = vmatpush1.msra.mxu0 %v2119
    %2271 = vmatprep.subr.mxu0 0.0
    %2272 = vmatpush1.msra.mxu0 %v2120
    %2273 = vmatprep.subr.mxu0 0.0
    %2274 = vmatpush1.msra.mxu0 %v2121
    %2275 = vmatprep.subr.mxu0 0.0
    %2276 = vmatpush1.msra.mxu0 %v2122
    %2277 = vmatprep.subr.mxu0 0.0
    %2278 = vmatpush1.msra.mxu0 %v2123
    %2279 = vmatprep.subr.mxu0 0.0
    %2280 = vmatpush1.msra.mxu0 %v2124
    %2281 = vmatprep.mubr.f32.mxu0 %v2048
    %2282 = vmatmul.mubr.f32.gmra.mrb[0].mxu0 %v2047
    %v2283 = vpop.f32.mrb[0].mxu0
    %v2284 = vadd.f32 %v2199, %v2283
    %v2285 = vpop.f32.mrb[0].mxu0
    %2286 = vmatprep.mubr.f32.mxu0 %v2052
    %2287 = vmatmul.mubr.f32.gmra.mrb[0].mxu0 %v2051
    %v2288 = vpop.f32.mrb[0].mxu0
    %v2289 = vadd.f32 %v2204, %v2288
    %v2290 = vpop.f32.mrb[0].mxu0
    %2291 = vmatprep.mubr.f32.mxu0 %v2056
    %2292 = vmatmul.mubr.f32.gmra.mrb[0].mxu0 %v2055
    %v2293 = vpop.f32.mrb[0].mxu0
    %v2294 = vadd.f32 %v2209, %v2293
    %v2295 = vpop.f32.mrb[0].mxu0
    %2296 = vmatprep.mubr.f32.mxu0 %v2060
    %2297 = vmatmul.mubr.f32.gmra.mrb[0].mxu0 %v2059
    %v2298 = vpop.f32.mrb[0].mxu0
    %v2299 = vadd.f32 %v2214, %v2298
    %v2300 = vpop.f32.mrb[0].mxu0
    %2301 = vdwg.mxu0
    %v2302 = vadd.f32 %v1647, %v2284
    %v2303 = vadd.f32 %v1648, %v2289
    %v2304 = vadd.f32 %v1649, %v2294
    %v2305 = vadd.f32 %v1650, %v2299
    %s2306 = scalar_lea.vmem %s2, 1
    %v2307 = vld [vmem:[%s2306] sm:$0x1]
    %s2308 = scalar_lea.vmem %s3, 1
    %v2309 = vld [vmem:[%s2308] sm:$0x1]
    %2310 = vadd.xlane.f32.xlu0 %v2302
    %v2311 = vpop.xlane.xlu0 %2310
    %2312 = vadd.xlane.f32.xlu0 %v2303
    %v2313 = vpop.xlane.xlu0 %2312
    %2314 = vadd.xlane.f32.xlu0 %v2304
    %v2315 = vpop.xlane.xlu0 %2314
    %2316 = vadd.xlane.f32.xlu0 %v2305
    %v2317 = vpop.xlane.xlu0 %2316
    %v2318 = vmul.f32 %v2311, %v116
    %v2319 = vmul.f32 %v2313, %v116
    %v2320 = vmul.f32 %v2315, %v116
    %v2321 = vmul.f32 %v2317, %v116
    %v2322 = vsub.f32 %v2302, %v2318
    %v2323 = vsub.f32 %v2303, %v2319
    %v2324 = vsub.f32 %v2304, %v2320
    %v2325 = vsub.f32 %v2305, %v2321
    %v2326 = vmul.f32 %v2322, %v2322
    %v2327 = vmul.f32 %v2323, %v2323
    %v2328 = vmul.f32 %v2324, %v2324
    %v2329 = vmul.f32 %v2325, %v2325
    %2330 = vadd.xlane.f32.xlu0 %v2326
    %v2331 = vpop.xlane.xlu0 %2330
    %2332 = vadd.xlane.f32.xlu0 %v2327
    %v2333 = vpop.xlane.xlu0 %2332
    %2334 = vadd.xlane.f32.xlu0 %v2328
    %v2335 = vpop.xlane.xlu0 %2334
    %2336 = vadd.xlane.f32.xlu0 %v2329
    %v2337 = vpop.xlane.xlu0 %2336
    %v2338 = vmul.f32 %v2331, %v116
    %v2339 = vmul.f32 %v2333, %v116
    %v2340 = vmul.f32 %v2335, %v116
    %v2341 = vmul.f32 %v2337, %v116
    %v2342 = vadd.f32 %v2338, 1e-05
    %v2343 = vadd.f32 %v2339, 1e-05
    %v2344 = vadd.f32 %v2340, 1e-05
    %v2345 = vadd.f32 %v2341, 1e-05
    %v2346 = vrsqrt.pop %v2342
    %v2347 = vrsqrt.pop %v2343
    %v2348 = vrsqrt.pop %v2344
    %v2349 = vrsqrt.pop %v2345
    %v2350 = vmul.f32 %v2322, %v2346
    %v2351 = vmul.f32 %v2323, %v2347
    %v2352 = vmul.f32 %v2324, %v2348
    %v2353 = vmul.f32 %v2325, %v2349
    %v2355 = vlaneseq
    %v2356 = vshrl.u32 %v2355, 7
    %v2357 = vsub.s32 0, %v2356
    %v2358 = vrot.slane %v2307, %v2357
    %v2360 = vmul.f32 %v2350, %v2358
    %v2361 = vmul.f32 %v2351, %v2358
    %v2362 = vmul.f32 %v2352, %v2358
    %v2363 = vmul.f32 %v2353, %v2358
    %v2365 = vlaneseq
    %v2366 = vshrl.u32 %v2365, 7
    %v2367 = vsub.s32 0, %v2366
    %v2368 = vrot.slane %v2309, %v2367
    %v2370 = vadd.f32 %v2360, %v2368
    %v2371 = vadd.f32 %v2361, %v2368
    %v2372 = vadd.f32 %v2362, %v2368
    %v2373 = vadd.f32 %v2363, %v2368
    %s2374 = scalar_lea.vmem [#allocation2], 384
    %v2375 = vld [vmem:[%s2374] sm:$0xff]
    %v2376 = vld [vmem:[%s2374 + $0x8] sm:$0xff]
    %v2377 = vld [vmem:[%s2374 + $0x10] sm:$0xff]
    %v2378 = vld [vmem:[%s2374 + $0x18] sm:$0xff]
    %v2379 = vld [vmem:[%s2374 + $0x20] sm:$0xff]
    %v2380 = vld [vmem:[%s2374 + $0x28] sm:$0xff]
    %v2381 = vld [vmem:[%s2374 + $0x30] sm:$0xff]
    %v2382 = vld [vmem:[%s2374 + $0x38] sm:$0xff]
    %v2383 = vld [vmem:[%s2374 + $0x40] sm:$0xff]
    %v2384 = vld [vmem:[%s2374 + $0x48] sm:$0xff]
    %v2385 = vld [vmem:[%s2374 + $0x50] sm:$0xff]
    %v2386 = vld [vmem:[%s2374 + $0x58] sm:$0xff]
    %v2387 = vld [vmem:[%s2374 + $0x60] sm:$0xff]
    %v2388 = vld [vmem:[%s2374 + $0x68] sm:$0xff]
    %v2389 = vld [vmem:[%s2374 + $0x70] sm:$0xff]
    %v2390 = vld [vmem:[%s2374 + $0x78] sm:$0xff]
    %v2391 = vld [vmem:[%s2374 + $0x80] sm:$0xff]
    %v2392 = vld [vmem:[%s2374 + $0x88] sm:$0xff]
    %v2393 = vld [vmem:[%s2374 + $0x90] sm:$0xff]
    %v2394 = vld [vmem:[%s2374 + $0x98] sm:$0xff]
    %v2395 = vld [vmem:[%s2374 + $0xa0] sm:$0xff]
    %v2396 = vld [vmem:[%s2374 + $0xa8] sm:$0xff]
    %v2397 = vld [vmem:[%s2374 + $0xb0] sm:$0xff]
    %v2398 = vld [vmem:[%s2374 + $0xb8] sm:$0xff]
    %v2399 = vld [vmem:[%s2374 + $0xc0] sm:$0xff]
    %v2400 = vld [vmem:[%s2374 + $0xc8] sm:$0xff]
    %v2401 = vld [vmem:[%s2374 + $0xd0] sm:$0xff]
    %v2402 = vld [vmem:[%s2374 + $0xd8] sm:$0xff]
    %v2403 = vld [vmem:[%s2374 + $0xe0] sm:$0xff]
    %v2404 = vld [vmem:[%s2374 + $0xe8] sm:$0xff]
    %v2405 = vld [vmem:[%s2374 + $0xf0] sm:$0xff]
    %v2406 = vld [vmem:[%s2374 + $0xf8] sm:$0xff]
    %v2407 = vld [vmem:[%s2374 + $0x100] sm:$0xff]
    %v2408 = vld [vmem:[%s2374 + $0x108] sm:$0xff]
    %v2409 = vld [vmem:[%s2374 + $0x110] sm:$0xff]
    %v2410 = vld [vmem:[%s2374 + $0x118] sm:$0xff]
    %v2411 = vld [vmem:[%s2374 + $0x120] sm:$0xff]
    %v2412 = vld [vmem:[%s2374 + $0x128] sm:$0xff]
    %v2413 = vld [vmem:[%s2374 + $0x130] sm:$0xff]
    %v2414 = vld [vmem:[%s2374 + $0x138] sm:$0xff]
    %v2415 = vld [vmem:[%s2374 + $0x140] sm:$0xff]
    %v2416 = vld [vmem:[%s2374 + $0x148] sm:$0xff]
    %v2417 = vld [vmem:[%s2374 + $0x150] sm:$0xff]
    %v2418 = vld [vmem:[%s2374 + $0x158] sm:$0xff]
    %v2419 = vld [vmem:[%s2374 + $0x160] sm:$0xff]
    %v2420 = vld [vmem:[%s2374 + $0x168] sm:$0xff]
    %v2421 = vld [vmem:[%s2374 + $0x170] sm:$0xff]
    %v2422 = vld [vmem:[%s2374 + $0x178] sm:$0xff]
    %s2423 = scalar_lea.vmem %s5, 3
    %v2424 = vld [vmem:[%s2423] sm:$0x7]
    %v2426 = vlaneseq
    %v2427 = vshrl.u32 %v2426, 7
    %v2428 = vsub.s32 0, %v2427
    %v2429 = vrot.slane %v2424, %v2428
    %v2430 = vlaneseq
    %v2431 = vshrl.u32 %v2430, 7
    %v2432 = vsub.s32 1, %v2431
    %v2433 = vrot.slane %v2424, %v2432
    %v2434 = vlaneseq
    %v2435 = vshrl.u32 %v2434, 7
    %v2436 = vsub.s32 2, %v2435
    %v2437 = vrot.slane %v2424, %v2436
    %2441 = vmatprep.subr.mxu0 %v2376
    %2442 = vmatpush1.msra.mxu0 %v2375
    %2443 = vmatprep.subr.mxu0 %v2379
    %2444 = vmatpush1.msra.mxu0 %v2378
    %2445 = vmatprep.subr.mxu0 %v2382
    %2446 = vmatpush1.msra.mxu0 %v2381
    %2447 = vmatprep.subr.mxu0 %v2385
    %2448 = vmatpush1.msra.mxu0 %v2384
    %2449 = vmatprep.subr.mxu0 %v2388
    %2450 = vmatpush1.msra.mxu0 %v2387
    %2451 = vmatprep.subr.mxu0 %v2391
    %2452 = vmatpush1.msra.mxu0 %v2390
    %2453 = vmatprep.subr.mxu0 %v2394
    %2454 = vmatpush1.msra.mxu0 %v2393
    %2455 = vmatprep.subr.mxu0 %v2397
    %2456 = vmatpush1.msra.mxu0 %v2396
    %2457 = vmatprep.subr.mxu0 %v2400
    %2458 = vmatpush1.msra.mxu0 %v2399
    %2459 = vmatprep.subr.mxu0 %v2403
    %2460 = vmatpush1.msra.mxu0 %v2402
    %2461 = vmatprep.subr.mxu0 %v2406
    %2462 = vmatpush1.msra.mxu0 %v2405
    %2463 = vmatprep.subr.mxu0 %v2409
    %2464 = vmatpush1.msra.mxu0 %v2408
    %2465 = vmatprep.subr.mxu0 %v2412
    %2466 = vmatpush1.msra.mxu0 %v2411
    %2467 = vmatprep.subr.mxu0 %v2415
    %2468 = vmatpush1.msra.mxu0 %v2414
    %2469 = vmatprep.subr.mxu0 %v2418
    %2470 = vmatpush1.msra.mxu0 %v2417
    %2471 = vmatprep.subr.mxu0 %v2421
    %2472 = vmatpush1.msra.mxu0 %v2420
    %2473 = vmatprep.subr.mxu0 0.0
    %2474 = vmatpush1.msra.mxu0 0.0
    %2475 = vmatprep.subr.mxu0 0.0
    %2476 = vmatpush1.msra.mxu0 0.0
    %2477 = vmatprep.subr.mxu0 0.0
    %2478 = vmatpush1.msra.mxu0 0.0
    %2479 = vmatprep.subr.mxu0 0.0
    %2480 = vmatpush1.msra.mxu0 0.0
    %2481 = vmatprep.subr.mxu0 0.0
    %2482 = vmatpush1.msra.mxu0 0.0
    %2483 = vmatprep.subr.mxu0 0.0
    %2484 = vmatpush1.msra.mxu0 0.0
    %2485 = vmatprep.subr.mxu0 0.0
    %2486 = vmatpush1.msra.mxu0 0.0
    %2487 = vmatprep.subr.mxu0 0.0
    %2488 = vmatpush1.msra.mxu0 0.0
    %2489 = vmatprep.subr.mxu0 0.0
    %2490 = vmatpush1.msra.mxu0 0.0
    %2491 = vmatprep.subr.mxu0 0.0
    %2492 = vmatpush1.msra.mxu0 0.0
    %2493 = vmatprep.subr.mxu0 0.0
    %2494 = vmatpush1.msra.mxu0 0.0
    %2495 = vmatprep.subr.mxu0 0.0
    %2496 = vmatpush1.msra.mxu0 0.0
    %2497 = vmatprep.subr.mxu0 0.0
    %2498 = vmatpush1.msra.mxu0 0.0
    %2499 = vmatprep.subr.mxu0 0.0
    %2500 = vmatpush1.msra.mxu0 0.0
    %2501 = vmatprep.subr.mxu0 0.0
    %2502 = vmatpush1.msra.mxu0 0.0
    %2503 = vmatprep.subr.mxu0 0.0
    %2504 = vmatpush1.msra.mxu0 0.0
    %2505 = vmatprep.mubr.f32.mxu0 0.0
    %2506 = vmatmul.mubr.f32.gmra.mrb[0].mxu0 %v2370
    %v2507 = vpop.f32.mrb[0].mxu0
    %v2508 = vadd.f32 %v2429, %v2507
    %v2509 = vpop.f32.mrb[0].mxu0
    %v2510 = vadd.f32 %v2433, %v2509
    %2511 = vmatprep.mubr.f32.mxu0 0.0
    %2512 = vmatmul.mubr.f32.gmra.mrb[0].mxu0 %v2371
    %v2513 = vpop.f32.mrb[0].mxu0
    %v2514 = vadd.f32 %v2429, %v2513
    %v2515 = vpop.f32.mrb[0].mxu0
    %v2516 = vadd.f32 %v2433, %v2515
    %2517 = vmatprep.mubr.f32.mxu0 0.0
    %2518 = vmatmul.mubr.f32.gmra.mrb[0].mxu0 %v2372
    %v2519 = vpop.f32.mrb[0].mxu0
    %v2520 = vadd.f32 %v2429, %v2519
    %v2521 = vpop.f32.mrb[0].mxu0
    %v2522 = vadd.f32 %v2433, %v2521
    %2523 = vmatprep.mubr.f32.mxu0 0.0
    %2524 = vmatmul.mubr.f32.gmra.mrb[0].mxu0 %v2373
    %v2525 = vpop.f32.mrb[0].mxu0
    %v2526 = vadd.f32 %v2429, %v2525
    %v2527 = vpop.f32.mrb[0].mxu0
    %v2528 = vadd.f32 %v2433, %v2527
    %2529 = vdwg.mxu0
    %2530 = vmatprep.subr.mxu0 0.0
    %2531 = vmatpush1.msra.mxu0 %v2377
    %2532 = vmatprep.subr.mxu0 0.0
    %2533 = vmatpush1.msra.mxu0 %v2380
    %2534 = vmatprep.subr.mxu0 0.0
    %2535 = vmatpush1.msra.mxu0 %v2383
    %2536 = vmatprep.subr.mxu0 0.0
    %2537 = vmatpush1.msra.mxu0 %v2386
    %2538 = vmatprep.subr.mxu0 0.0
    %2539 = vmatpush1.msra.mxu0 %v2389
    %2540 = vmatprep.subr.mxu0 0.0
    %2541 = vmatpush1.msra.mxu0 %v2392
    %2542 = vmatprep.subr.mxu0 0.0
    %2543 = vmatpush1.msra.mxu0 %v2395
    %2544 = vmatprep.subr.mxu0 0.0
    %2545 = vmatpush1.msra.mxu0 %v2398
    %2546 = vmatprep.subr.mxu0 0.0
    %2547 = vmatpush1.msra.mxu0 %v2401
    %2548 = vmatprep.subr.mxu0 0.0
    %2549 = vmatpush1.msra.mxu0 %v2404
    %2550 = vmatprep.subr.mxu0 0.0
    %2551 = vmatpush1.msra.mxu0 %v2407
    %2552 = vmatprep.subr.mxu0 0.0
    %2553 = vmatpush1.msra.mxu0 %v2410
    %2554 = vmatprep.subr.mxu0 0.0
    %2555 = vmatpush1.msra.mxu0 %v2413
    %2556 = vmatprep.subr.mxu0 0.0
    %2557 = vmatpush1.msra.mxu0 %v2416
    %2558 = vmatprep.subr.mxu0 0.0
    %2559 = vmatpush1.msra.mxu0 %v2419
    %2560 = vmatprep.subr.mxu0 0.0
    %2561 = vmatpush1.msra.mxu0 %v2422
    %2562 = vmatprep.subr.mxu0 0.0
    %2563 = vmatpush1.msra.mxu0 0.0
    %2564 = vmatprep.subr.mxu0 0.0
    %2565 = vmatpush1.msra.mxu0 0.0
    %2566 = vmatprep.subr.mxu0 0.0
    %2567 = vmatpush1.msra.mxu0 0.0
    %2568 = vmatprep.subr.mxu0 0.0
    %2569 = vmatpush1.msra.mxu0 0.0
    %2570 = vmatprep.subr.mxu0 0.0
    %2571 = vmatpush1.msra.mxu0 0.0
    %2572 = vmatprep.subr.mxu0 0.0
    %2573 = vmatpush1.msra.mxu0 0.0
    %2574 = vmatprep.subr.mxu0 0.0
    %2575 = vmatpush1.msra.mxu0 0.0
    %2576 = vmatprep.subr.mxu0 0.0
    %2577 = vmatpush1.msra.mxu0 0.0
    %2578 = vmatprep.subr.mxu0 0.0
    %2579 = vmatpush1.msra.mxu0 0.0
    %2580 = vmatprep.subr.mxu0 0.0
    %2581 = vmatpush1.msra.mxu0 0.0
    %2582 = vmatprep.subr.mxu0 0.0
    %2583 = vmatpush1.msra.mxu0 0.0
    %2584 = vmatprep.subr.mxu0 0.0
    %2585 = vmatpush1.msra.mxu0 0.0
    %2586 = vmatprep.subr.mxu0 0.0
    %2587 = vmatpush1.msra.mxu0 0.0
    %2588 = vmatprep.subr.mxu0 0.0
    %2589 = vmatpush1.msra.mxu0 0.0
    %2590 = vmatprep.subr.mxu0 0.0
    %2591 = vmatpush1.msra.mxu0 0.0
    %2592 = vmatprep.subr.mxu0 0.0
    %2593 = vmatpush1.msra.mxu0 0.0
    %2594 = vmatprep.mubr.f32.mxu0 0.0
    %2595 = vmatmul.mubr.f32.gmra.mrb[0].mxu0 %v2370
    %v2596 = vpop.f32.mrb[0].mxu0
    %v2597 = vadd.f32 %v2437, %v2596
    %v2598 = vpop.f32.mrb[0].mxu0
    %2599 = vmatprep.mubr.f32.mxu0 0.0
    %2600 = vmatmul.mubr.f32.gmra.mrb[0].mxu0 %v2371
    %v2601 = vpop.f32.mrb[0].mxu0
    %v2602 = vadd.f32 %v2437, %v2601
    %v2603 = vpop.f32.mrb[0].mxu0
    %2604 = vmatprep.mubr.f32.mxu0 0.0
    %2605 = vmatmul.mubr.f32.gmra.mrb[0].mxu0 %v2372
    %v2606 = vpop.f32.mrb[0].mxu0
    %v2607 = vadd.f32 %v2437, %v2606
    %v2608 = vpop.f32.mrb[0].mxu0
    %2609 = vmatprep.mubr.f32.mxu0 0.0
    %2610 = vmatmul.mubr.f32.gmra.mrb[0].mxu0 %v2373
    %v2611 = vpop.f32.mrb[0].mxu0
    %v2612 = vadd.f32 %v2437, %v2611
    %v2613 = vpop.f32.mrb[0].mxu0
    %2614 = vdwg.mxu0
    %v2616 = vsel %vm412, %v2508, 0
    %v2619 = vsel %vm412, %v2514, 0
    %v2622 = vsel %vm412, %v2520, 0
    %v2625 = vsel %vm412, %v2526, 0
    %v2628 = vsel %vm412, %v2510, 0
    %v2631 = vsel %vm412, %v2516, 0
    %v2634 = vsel %vm412, %v2522, 0
    %v2637 = vsel %vm412, %v2528, 0
    %2639 = vmatprep.subr.mxu0 0.0
    %2640 = vmatpush1.xpose.msra.mxu0 %v2628
    %2641 = vmatprep.subr.mxu0 0.0
    %2642 = vmatpush1.xpose.msra.mxu0 %v2631
    %2643 = vmatprep.subr.mxu0 0.0
    %2644 = vmatpush1.xpose.msra.mxu0 %v2634
    %2645 = vmatprep.subr.mxu0 0.0
    %2646 = vmatpush1.xpose.msra.mxu0 %v2637
    %2647 = vmatprep.subr.mxu0 0.0
    %2648 = vmatpush1.xpose.msra.mxu0 0.0
    %2649 = vmatprep.subr.mxu0 0.0
    %2650 = vmatpush1.xpose.msra.mxu0 0.0
    %2651 = vmatprep.subr.mxu0 0.0
    %2652 = vmatpush1.xpose.msra.mxu0 0.0
    %2653 = vmatprep.subr.mxu0 0.0
    %2654 = vmatpush1.xpose.msra.mxu0 0.0
    %2655 = vmatprep.subr.mxu0 0.0
    %2656 = vmatpush1.xpose.msra.mxu0 0.0
    %2657 = vmatprep.subr.mxu0 0.0
    %2658 = vmatpush1.xpose.msra.mxu0 0.0
    %2659 = vmatprep.subr.mxu0 0.0
    %2660 = vmatpush1.xpose.msra.mxu0 0.0
    %2661 = vmatprep.subr.mxu0 0.0
    %2662 = vmatpush1.xpose.msra.mxu0 0.0
    %2663 = vmatprep.subr.mxu0 0.0
    %2664 = vmatpush1.xpose.msra.mxu0 0.0
    %2665 = vmatprep.subr.mxu0 0.0
    %2666 = vmatpush1.xpose.msra.mxu0 0.0
    %2667 = vmatprep.subr.mxu0 0.0
    %2668 = vmatpush1.xpose.msra.mxu0 0.0
    %2669 = vmatprep.subr.mxu0 0.0
    %2670 = vmatpush1.xpose.msra.mxu0 0.0
    %2671 = vmatprep.subr.mxu0 0.0
    %2672 = vmatpush1.xpose.msra.mxu0 0.0
    %2673 = vmatprep.subr.mxu0 0.0
    %2674 = vmatpush1.xpose.msra.mxu0 0.0
    %2675 = vmatprep.subr.mxu0 0.0
    %2676 = vmatpush1.xpose.msra.mxu0 0.0
    %2677 = vmatprep.subr.mxu0 0.0
    %2678 = vmatpush1.xpose.msra.mxu0 0.0
    %2679 = vmatprep.subr.mxu0 0.0
    %2680 = vmatpush1.xpose.msra.mxu0 0.0
    %2681 = vmatprep.subr.mxu0 0.0
    %2682 = vmatpush1.xpose.msra.mxu0 0.0
    %2683 = vmatprep.subr.mxu0 0.0
    %2684 = vmatpush1.xpose.msra.mxu0 0.0
    %2685 = vmatprep.subr.mxu0 0.0
    %2686 = vmatpush1.xpose.msra.mxu0 0.0
    %2687 = vmatprep.subr.mxu0 0.0
    %2688 = vmatpush1.xpose.msra.mxu0 0.0
    %2689 = vmatprep.subr.mxu0 0.0
    %2690 = vmatpush1.xpose.msra.mxu0 0.0
    %2691 = vmatprep.subr.mxu0 0.0
    %2692 = vmatpush1.xpose.msra.mxu0 0.0
    %2693 = vmatprep.subr.mxu0 0.0
    %2694 = vmatpush1.xpose.msra.mxu0 0.0
    %2695 = vmatprep.subr.mxu0 0.0
    %2696 = vmatpush1.xpose.msra.mxu0 0.0
    %2697 = vmatprep.subr.mxu0 0.0
    %2698 = vmatpush1.xpose.msra.mxu0 0.0
    %2699 = vmatprep.subr.mxu0 0.0
    %2700 = vmatpush1.xpose.msra.mxu0 0.0
    %2701 = vmatprep.subr.mxu0 0.0
    %2702 = vmatpush1.xpose.msra.mxu0 0.0
    %2703 = vmatprep.mubr.f32.mxu0 0.0
    %2704 = vmatmul.mubr.f32.gmra.mrb[0].mxu0 %v2616
    %v2705 = vpop.f32.mrb[0].mxu0
    %v2706 = vadd.f32 %v102, %v2705
    %v2707 = vpop.f32.mrb[0].mxu0
    %2708 = vmatprep.mubr.f32.mxu0 0.0
    %2709 = vmatmul.mubr.f32.gmra.mrb[0].mxu0 %v2619
    %v2710 = vpop.f32.mrb[0].mxu0
    %v2711 = vadd.f32 %v103, %v2710
    %v2712 = vpop.f32.mrb[0].mxu0
    %2713 = vmatprep.mubr.f32.mxu0 0.0
    %2714 = vmatmul.mubr.f32.gmra.mrb[0].mxu0 %v2622
    %v2715 = vpop.f32.mrb[0].mxu0
    %v2716 = vadd.f32 %v104, %v2715
    %v2717 = vpop.f32.mrb[0].mxu0
    %2718 = vmatprep.mubr.f32.mxu0 0.0
    %2719 = vmatmul.mubr.f32.gmra.mrb[0].mxu0 %v2625
    %v2720 = vpop.f32.mrb[0].mxu0
    %v2721 = vadd.f32 %v105, %v2720
    %v2722 = vpop.f32.mrb[0].mxu0
    %2723 = vdwg.mxu0
    %v2724 = vsel %vm412, %v2706, -inf
    %2725 = vmax.xlane.f32.xlu0 %v2724
    %v2726 = vpop.xlane.xlu0 %2725
    %v2727 = vsel %vm412, %v2711, -inf
    %2728 = vmax.xlane.f32.xlu0 %v2727
    %v2729 = vpop.xlane.xlu0 %2728
    %v2730 = vsel %vm412, %v2716, -inf
    %2731 = vmax.xlane.f32.xlu0 %v2730
    %v2732 = vpop.xlane.xlu0 %2731
    %v2733 = vsel %vm412, %v2721, -inf
    %2734 = vmax.xlane.f32.xlu0 %v2733
    %v2735 = vpop.xlane.xlu0 %2734
    %v2736 = vsub.f32 %v2706, %v2726
    %v2737 = vsub.f32 %v2711, %v2729
    %v2738 = vsub.f32 %v2716, %v2732
    %v2739 = vsub.f32 %v2721, %v2735
    %v2740 = vmul.f32 %v2736, 1.442695
    %v2741 = vpow.pop %v2740
    %v2742 = vmul.f32 %v2737, 1.442695
    %v2743 = vpow.pop %v2742
    %v2744 = vmul.f32 %v2738, 1.442695
    %v2745 = vpow.pop %v2744
    %v2746 = vmul.f32 %v2739, 1.442695
    %v2747 = vpow.pop %v2746
    %v2748 = vsel %vm412, %v2741, 0.0
    %2749 = vadd.xlane.f32.xlu0 %v2748
    %v2750 = vpop.xlane.xlu0 %2749
    %v2751 = vsel %vm412, %v2743, 0.0
    %2752 = vadd.xlane.f32.xlu0 %v2751
    %v2753 = vpop.xlane.xlu0 %2752
    %v2754 = vsel %vm412, %v2745, 0.0
    %2755 = vadd.xlane.f32.xlu0 %v2754
    %v2756 = vpop.xlane.xlu0 %2755
    %v2757 = vsel %vm412, %v2747, 0.0
    %2758 = vadd.xlane.f32.xlu0 %v2757
    %v2759 = vpop.xlane.xlu0 %2758
    %v2760 = vrcp.pop %v2750
    %v2761 = vmul.f32 %v2741, %v2760
    %v2762 = vrcp.pop %v2753
    %v2763 = vmul.f32 %v2743, %v2762
    %v2764 = vrcp.pop %v2756
    %v2765 = vmul.f32 %v2745, %v2764
    %v2766 = vrcp.pop %v2759
    %v2767 = vmul.f32 %v2747, %v2766
    %v2769 = vsel %vm412, %v2761, 0
    %v2772 = vsel %vm412, %v2763, 0
    %v2775 = vsel %vm412, %v2765, 0
    %v2778 = vsel %vm412, %v2767, 0
    %2780 = vmatprep.subr.mxu0 0.0
    %2781 = vmatpush1.msra.mxu0 %v2597
    %2782 = vmatprep.subr.mxu0 0.0
    %2783 = vmatpush1.msra.mxu0 %v2602
    %2784 = vmatprep.subr.mxu0 0.0
    %2785 = vmatpush1.msra.mxu0 %v2607
    %2786 = vmatprep.subr.mxu0 0.0
    %2787 = vmatpush1.msra.mxu0 %v2612
    %2788 = vmatprep.subr.mxu0 0.0
    %2789 = vmatpush1.msra.mxu0 0.0
    %2790 = vmatprep.subr.mxu0 0.0
    %2791 = vmatpush1.msra.mxu0 0.0
    %2792 = vmatprep.subr.mxu0 0.0
    %2793 = vmatpush1.msra.mxu0 0.0
    %2794 = vmatprep.subr.mxu0 0.0
    %2795 = vmatpush1.msra.mxu0 0.0
    %2796 = vmatprep.subr.mxu0 0.0
    %2797 = vmatpush1.msra.mxu0 0.0
    %2798 = vmatprep.subr.mxu0 0.0
    %2799 = vmatpush1.msra.mxu0 0.0
    %2800 = vmatprep.subr.mxu0 0.0
    %2801 = vmatpush1.msra.mxu0 0.0
    %2802 = vmatprep.subr.mxu0 0.0
    %2803 = vmatpush1.msra.mxu0 0.0
    %2804 = vmatprep.subr.mxu0 0.0
    %2805 = vmatpush1.msra.mxu0 0.0
    %2806 = vmatprep.subr.mxu0 0.0
    %2807 = vmatpush1.msra.mxu0 0.0
    %2808 = vmatprep.subr.mxu0 0.0
    %2809 = vmatpush1.msra.mxu0 0.0
    %2810 = vmatprep.subr.mxu0 0.0
    %2811 = vmatpush1.msra.mxu0 0.0
    %2812 = vmatprep.subr.mxu0 0.0
    %2813 = vmatpush1.msra.mxu0 0.0
    %2814 = vmatprep.subr.mxu0 0.0
    %2815 = vmatpush1.msra.mxu0 0.0
    %2816 = vmatprep.subr.mxu0 0.0
    %2817 = vmatpush1.msra.mxu0 0.0
    %2818 = vmatprep.subr.mxu0 0.0
    %2819 = vmatpush1.msra.mxu0 0.0
    %2820 = vmatprep.subr.mxu0 0.0
    %2821 = vmatpush1.msra.mxu0 0.0
    %2822 = vmatprep.subr.mxu0 0.0
    %2823 = vmatpush1.msra.mxu0 0.0
    %2824 = vmatprep.subr.mxu0 0.0
    %2825 = vmatpush1.msra.mxu0 0.0
    %2826 = vmatprep.subr.mxu0 0.0
    %2827 = vmatpush1.msra.mxu0 0.0
    %2828 = vmatprep.subr.mxu0 0.0
    %2829 = vmatpush1.msra.mxu0 0.0
    %2830 = vmatprep.subr.mxu0 0.0
    %2831 = vmatpush1.msra.mxu0 0.0
    %2832 = vmatprep.subr.mxu0 0.0
    %2833 = vmatpush1.msra.mxu0 0.0
    %2834 = vmatprep.subr.mxu0 0.0
    %2835 = vmatpush1.msra.mxu0 0.0
    %2836 = vmatprep.subr.mxu0 0.0
    %2837 = vmatpush1.msra.mxu0 0.0
    %2838 = vmatprep.subr.mxu0 0.0
    %2839 = vmatpush1.msra.mxu0 0.0
    %2840 = vmatprep.subr.mxu0 0.0
    %2841 = vmatpush1.msra.mxu0 0.0
    %2842 = vmatprep.subr.mxu0 0.0
    %2843 = vmatpush1.msra.mxu0 0.0
    %2844 = vmatprep.mubr.f32.mxu0 0.0
    %2845 = vmatmul.mubr.f32.gmra.mrb[0].mxu0 %v2769
    %v2846 = vpop.f32.mrb[0].mxu0
    %v2847 = vadd.f32 0.0, %v2846
    %v2848 = vpop.f32.mrb[0].mxu0
    %2849 = vmatprep.mubr.f32.mxu0 0.0
    %2850 = vmatmul.mubr.f32.gmra.mrb[0].mxu0 %v2772
    %v2851 = vpop.f32.mrb[0].mxu0
    %v2852 = vadd.f32 0.0, %v2851
    %v2853 = vpop.f32.mrb[0].mxu0
    %2854 = vmatprep.mubr.f32.mxu0 0.0
    %2855 = vmatmul.mubr.f32.gmra.mrb[0].mxu0 %v2775
    %v2856 = vpop.f32.mrb[0].mxu0
    %v2857 = vadd.f32 0.0, %v2856
    %v2858 = vpop.f32.mrb[0].mxu0
    %2859 = vmatprep.mubr.f32.mxu0 0.0
    %2860 = vmatmul.mubr.f32.gmra.mrb[0].mxu0 %v2778
    %v2861 = vpop.f32.mrb[0].mxu0
    %v2862 = vadd.f32 0.0, %v2861
    %v2863 = vpop.f32.mrb[0].mxu0
    %2864 = vdwg.mxu0
    %2865 = vrot.lane.b32.xlu0 %v2508, 96
    %v2866 = vpop.permute.xlu0 %2865
    %2867 = vrot.lane.b32.xlu0 %v2514, 96
    %v2868 = vpop.permute.xlu0 %2867
    %2869 = vrot.lane.b32.xlu0 %v2520, 96
    %v2870 = vpop.permute.xlu0 %2869
    %2871 = vrot.lane.b32.xlu0 %v2526, 96
    %v2872 = vpop.permute.xlu0 %2871
    %2873 = vrot.lane.b32.xlu0 %v2510, 96
    %v2874 = vpop.permute.xlu0 %2873
    %2875 = vrot.lane.b32.xlu0 %v2516, 96
    %v2876 = vpop.permute.xlu0 %2875
    %2877 = vrot.lane.b32.xlu0 %v2522, 96
    %v2878 = vpop.permute.xlu0 %2877
    %2879 = vrot.lane.b32.xlu0 %v2528, 96
    %v2880 = vpop.permute.xlu0 %2879
    %v2881 = vsel %vm412, %v2866, 0
    %v2883 = vsel %vm412, %v2868, 0
    %v2885 = vsel %vm412, %v2870, 0
    %v2887 = vsel %vm412, %v2872, 0
    %v2889 = vsel %vm412, %v2874, 0
    %v2891 = vsel %vm412, %v2876, 0
    %v2893 = vsel %vm412, %v2878, 0
    %v2895 = vsel %vm412, %v2880, 0
    %2897 = vmatprep.subr.mxu0 0.0
    %2898 = vmatpush1.xpose.msra.mxu0 %v2889
    %2899 = vmatprep.subr.mxu0 0.0
    %2900 = vmatpush1.xpose.msra.mxu0 %v2891
    %2901 = vmatprep.subr.mxu0 0.0
    %2902 = vmatpush1.xpose.msra.mxu0 %v2893
    %2903 = vmatprep.subr.mxu0 0.0
    %2904 = vmatpush1.xpose.msra.mxu0 %v2895
    %2905 = vmatprep.subr.mxu0 0.0
    %2906 = vmatpush1.xpose.msra.mxu0 0.0
    %2907 = vmatprep.subr.mxu0 0.0
    %2908 = vmatpush1.xpose.msra.mxu0 0.0
    %2909 = vmatprep.subr.mxu0 0.0
    %2910 = vmatpush1.xpose.msra.mxu0 0.0
    %2911 = vmatprep.subr.mxu0 0.0
    %2912 = vmatpush1.xpose.msra.mxu0 0.0
    %2913 = vmatprep.subr.mxu0 0.0
    %2914 = vmatpush1.xpose.msra.mxu0 0.0
    %2915 = vmatprep.subr.mxu0 0.0
    %2916 = vmatpush1.xpose.msra.mxu0 0.0
    %2917 = vmatprep.subr.mxu0 0.0
    %2918 = vmatpush1.xpose.msra.mxu0 0.0
    %2919 = vmatprep.subr.mxu0 0.0
    %2920 = vmatpush1.xpose.msra.mxu0 0.0
    %2921 = vmatprep.subr.mxu0 0.0
    %2922 = vmatpush1.xpose.msra.mxu0 0.0
    %2923 = vmatprep.subr.mxu0 0.0
    %2924 = vmatpush1.xpose.msra.mxu0 0.0
    %2925 = vmatprep.subr.mxu0 0.0
    %2926 = vmatpush1.xpose.msra.mxu0 0.0
    %2927 = vmatprep.subr.mxu0 0.0
    %2928 = vmatpush1.xpose.msra.mxu0 0.0
    %2929 = vmatprep.subr.mxu0 0.0
    %2930 = vmatpush1.xpose.msra.mxu0 0.0
    %2931 = vmatprep.subr.mxu0 0.0
    %2932 = vmatpush1.xpose.msra.mxu0 0.0
    %2933 = vmatprep.subr.mxu0 0.0
    %2934 = vmatpush1.xpose.msra.mxu0 0.0
    %2935 = vmatprep.subr.mxu0 0.0
    %2936 = vmatpush1.xpose.msra.mxu0 0.0
    %2937 = vmatprep.subr.mxu0 0.0
    %2938 = vmatpush1.xpose.msra.mxu0 0.0
    %2939 = vmatprep.subr.mxu0 0.0
    %2940 = vmatpush1.xpose.msra.mxu0 0.0
    %2941 = vmatprep.subr.mxu0 0.0
    %2942 = vmatpush1.xpose.msra.mxu0 0.0
    %2943 = vmatprep.subr.mxu0 0.0
    %2944 = vmatpush1.xpose.msra.mxu0 0.0
    %2945 = vmatprep.subr.mxu0 0.0
    %2946 = vmatpush1.xpose.msra.mxu0 0.0
    %2947 = vmatprep.subr.mxu0 0.0
    %2948 = vmatpush1.xpose.msra.mxu0 0.0
    %2949 = vmatprep.subr.mxu0 0.0
    %2950 = vmatpush1.xpose.msra.mxu0 0.0
    %2951 = vmatprep.subr.mxu0 0.0
    %2952 = vmatpush1.xpose.msra.mxu0 0.0
    %2953 = vmatprep.subr.mxu0 0.0
    %2954 = vmatpush1.xpose.msra.mxu0 0.0
    %2955 = vmatprep.subr.mxu0 0.0
    %2956 = vmatpush1.xpose.msra.mxu0 0.0
    %2957 = vmatprep.subr.mxu0 0.0
    %2958 = vmatpush1.xpose.msra.mxu0 0.0
    %2959 = vmatprep.subr.mxu0 0.0
    %2960 = vmatpush1.xpose.msra.mxu0 0.0
    %2961 = vmatprep.mubr.f32.mxu0 0.0
    %2962 = vmatmul.mubr.f32.gmra.mrb[0].mxu0 %v2881
    %v2963 = vpop.f32.mrb[0].mxu0
    %v2964 = vadd.f32 %v102, %v2963
    %v2965 = vpop.f32.mrb[0].mxu0
    %2966 = vmatprep.mubr.f32.mxu0 0.0
    %2967 = vmatmul.mubr.f32.gmra.mrb[0].mxu0 %v2883
    %v2968 = vpop.f32.mrb[0].mxu0
    %v2969 = vadd.f32 %v103, %v2968
    %v2970 = vpop.f32.mrb[0].mxu0
    %2971 = vmatprep.mubr.f32.mxu0 0.0
    %2972 = vmatmul.mubr.f32.gmra.mrb[0].mxu0 %v2885
    %v2973 = vpop.f32.mrb[0].mxu0
    %v2974 = vadd.f32 %v104, %v2973
    %v2975 = vpop.f32.mrb[0].mxu0
    %2976 = vmatprep.mubr.f32.mxu0 0.0
    %2977 = vmatmul.mubr.f32.gmra.mrb[0].mxu0 %v2887
    %v2978 = vpop.f32.mrb[0].mxu0
    %v2979 = vadd.f32 %v105, %v2978
    %v2980 = vpop.f32.mrb[0].mxu0
    %2981 = vdwg.mxu0
    %v2982 = vsel %vm412, %v2964, -inf
    %2983 = vmax.xlane.f32.xlu0 %v2982
    %v2984 = vpop.xlane.xlu0 %2983
    %v2985 = vsel %vm412, %v2969, -inf
    %2986 = vmax.xlane.f32.xlu0 %v2985
    %v2987 = vpop.xlane.xlu0 %2986
    %v2988 = vsel %vm412, %v2974, -inf
    %2989 = vmax.xlane.f32.xlu0 %v2988
    %v2990 = vpop.xlane.xlu0 %2989
    %v2991 = vsel %vm412, %v2979, -inf
    %2992 = vmax.xlane.f32.xlu0 %v2991
    %v2993 = vpop.xlane.xlu0 %2992
    %v2994 = vsub.f32 %v2964, %v2984
    %v2995 = vsub.f32 %v2969, %v2987
    %v2996 = vsub.f32 %v2974, %v2990
    %v2997 = vsub.f32 %v2979, %v2993
    %v2998 = vmul.f32 %v2994, 1.442695
    %v2999 = vpow.pop %v2998
    %v3000 = vmul.f32 %v2995, 1.442695
    %v3001 = vpow.pop %v3000
    %v3002 = vmul.f32 %v2996, 1.442695
    %v3003 = vpow.pop %v3002
    %v3004 = vmul.f32 %v2997, 1.442695
    %v3005 = vpow.pop %v3004
    %v3006 = vsel %vm412, %v2999, 0.0
    %3007 = vadd.xlane.f32.xlu0 %v3006
    %v3008 = vpop.xlane.xlu0 %3007
    %v3009 = vsel %vm412, %v3001, 0.0
    %3010 = vadd.xlane.f32.xlu0 %v3009
    %v3011 = vpop.xlane.xlu0 %3010
    %v3012 = vsel %vm412, %v3003, 0.0
    %3013 = vadd.xlane.f32.xlu0 %v3012
    %v3014 = vpop.xlane.xlu0 %3013
    %v3015 = vsel %vm412, %v3005, 0.0
    %3016 = vadd.xlane.f32.xlu0 %v3015
    %v3017 = vpop.xlane.xlu0 %3016
    %v3018 = vrcp.pop %v3008
    %v3019 = vmul.f32 %v2999, %v3018
    %v3020 = vrcp.pop %v3011
    %v3021 = vmul.f32 %v3001, %v3020
    %v3022 = vrcp.pop %v3014
    %v3023 = vmul.f32 %v3003, %v3022
    %v3024 = vrcp.pop %v3017
    %v3025 = vmul.f32 %v3005, %v3024
    %3030 = vrot.lane.b32.xlu0 %v2597, 96
    %v3031 = vpop.permute.xlu0 %3030
    %3032 = vrot.lane.b32.xlu0 %v2602, 96
    %v3033 = vpop.permute.xlu0 %3032
    %3034 = vrot.lane.b32.xlu0 %v2607, 96
    %v3035 = vpop.permute.xlu0 %3034
    %3036 = vrot.lane.b32.xlu0 %v2612, 96
    %v3037 = vpop.permute.xlu0 %3036
    %v3043 = vsel %vm412, %v3019, 0
    %v3046 = vsel %vm412, %v3021, 0
    %v3049 = vsel %vm412, %v3023, 0
    %v3052 = vsel %vm412, %v3025, 0
    %3054 = vmatprep.subr.mxu0 0.0
    %3055 = vmatpush1.msra.mxu0 %v3031
    %3056 = vmatprep.subr.mxu0 0.0
    %3057 = vmatpush1.msra.mxu0 %v3033
    %3058 = vmatprep.subr.mxu0 0.0
    %3059 = vmatpush1.msra.mxu0 %v3035
    %3060 = vmatprep.subr.mxu0 0.0
    %3061 = vmatpush1.msra.mxu0 %v3037
    %3062 = vmatprep.subr.mxu0 0.0
    %3063 = vmatpush1.msra.mxu0 0.0
    %3064 = vmatprep.subr.mxu0 0.0
    %3065 = vmatpush1.msra.mxu0 0.0
    %3066 = vmatprep.subr.mxu0 0.0
    %3067 = vmatpush1.msra.mxu0 0.0
    %3068 = vmatprep.subr.mxu0 0.0
    %3069 = vmatpush1.msra.mxu0 0.0
    %3070 = vmatprep.subr.mxu0 0.0
    %3071 = vmatpush1.msra.mxu0 0.0
    %3072 = vmatprep.subr.mxu0 0.0
    %3073 = vmatpush1.msra.mxu0 0.0
    %3074 = vmatprep.subr.mxu0 0.0
    %3075 = vmatpush1.msra.mxu0 0.0
    %3076 = vmatprep.subr.mxu0 0.0
    %3077 = vmatpush1.msra.mxu0 0.0
    %3078 = vmatprep.subr.mxu0 0.0
    %3079 = vmatpush1.msra.mxu0 0.0
    %3080 = vmatprep.subr.mxu0 0.0
    %3081 = vmatpush1.msra.mxu0 0.0
    %3082 = vmatprep.subr.mxu0 0.0
    %3083 = vmatpush1.msra.mxu0 0.0
    %3084 = vmatprep.subr.mxu0 0.0
    %3085 = vmatpush1.msra.mxu0 0.0
    %3086 = vmatprep.subr.mxu0 0.0
    %3087 = vmatpush1.msra.mxu0 0.0
    %3088 = vmatprep.subr.mxu0 0.0
    %3089 = vmatpush1.msra.mxu0 0.0
    %3090 = vmatprep.subr.mxu0 0.0
    %3091 = vmatpush1.msra.mxu0 0.0
    %3092 = vmatprep.subr.mxu0 0.0
    %3093 = vmatpush1.msra.mxu0 0.0
    %3094 = vmatprep.subr.mxu0 0.0
    %3095 = vmatpush1.msra.mxu0 0.0
    %3096 = vmatprep.subr.mxu0 0.0
    %3097 = vmatpush1.msra.mxu0 0.0
    %3098 = vmatprep.subr.mxu0 0.0
    %3099 = vmatpush1.msra.mxu0 0.0
    %3100 = vmatprep.subr.mxu0 0.0
    %3101 = vmatpush1.msra.mxu0 0.0
    %3102 = vmatprep.subr.mxu0 0.0
    %3103 = vmatpush1.msra.mxu0 0.0
    %3104 = vmatprep.subr.mxu0 0.0
    %3105 = vmatpush1.msra.mxu0 0.0
    %3106 = vmatprep.subr.mxu0 0.0
    %3107 = vmatpush1.msra.mxu0 0.0
    %3108 = vmatprep.subr.mxu0 0.0
    %3109 = vmatpush1.msra.mxu0 0.0
    %3110 = vmatprep.subr.mxu0 0.0
    %3111 = vmatpush1.msra.mxu0 0.0
    %3112 = vmatprep.subr.mxu0 0.0
    %3113 = vmatpush1.msra.mxu0 0.0
    %3114 = vmatprep.subr.mxu0 0.0
    %3115 = vmatpush1.msra.mxu0 0.0
    %3116 = vmatprep.subr.mxu0 0.0
    %3117 = vmatpush1.msra.mxu0 0.0
    %3118 = vmatprep.mubr.f32.mxu0 0.0
    %3119 = vmatmul.mubr.f32.gmra.mrb[0].mxu0 %v3043
    %v3120 = vpop.f32.mrb[0].mxu0
    %v3121 = vadd.f32 0.0, %v3120
    %v3122 = vpop.f32.mrb[0].mxu0
    %3123 = vmatprep.mubr.f32.mxu0 0.0
    %3124 = vmatmul.mubr.f32.gmra.mrb[0].mxu0 %v3046
    %v3125 = vpop.f32.mrb[0].mxu0
    %v3126 = vadd.f32 0.0, %v3125
    %v3127 = vpop.f32.mrb[0].mxu0
    %3128 = vmatprep.mubr.f32.mxu0 0.0
    %3129 = vmatmul.mubr.f32.gmra.mrb[0].mxu0 %v3049
    %v3130 = vpop.f32.mrb[0].mxu0
    %v3131 = vadd.f32 0.0, %v3130
    %v3132 = vpop.f32.mrb[0].mxu0
    %3133 = vmatprep.mubr.f32.mxu0 0.0
    %3134 = vmatmul.mubr.f32.gmra.mrb[0].mxu0 %v3052
    %v3135 = vpop.f32.mrb[0].mxu0
    %v3136 = vadd.f32 0.0, %v3135
    %v3137 = vpop.f32.mrb[0].mxu0
    %3138 = vdwg.mxu0
    %3139 = vrot.lane.b32.xlu0 %v2508, 64
    %v3140 = vpop.permute.xlu0 %3139
    %3141 = vrot.lane.b32.xlu0 %v2514, 64
    %v3142 = vpop.permute.xlu0 %3141
    %3143 = vrot.lane.b32.xlu0 %v2520, 64
    %v3144 = vpop.permute.xlu0 %3143
    %3145 = vrot.lane.b32.xlu0 %v2526, 64
    %v3146 = vpop.permute.xlu0 %3145
    %3147 = vrot.lane.b32.xlu0 %v2510, 64
    %v3148 = vpop.permute.xlu0 %3147
    %3149 = vrot.lane.b32.xlu0 %v2516, 64
    %v3150 = vpop.permute.xlu0 %3149
    %3151 = vrot.lane.b32.xlu0 %v2522, 64
    %v3152 = vpop.permute.xlu0 %3151
    %3153 = vrot.lane.b32.xlu0 %v2528, 64
    %v3154 = vpop.permute.xlu0 %3153
    %v3155 = vsel %vm412, %v3140, 0
    %v3157 = vsel %vm412, %v3142, 0
    %v3159 = vsel %vm412, %v3144, 0
    %v3161 = vsel %vm412, %v3146, 0
    %v3163 = vsel %vm412, %v3148, 0
    %v3165 = vsel %vm412, %v3150, 0
    %v3167 = vsel %vm412, %v3152, 0
    %v3169 = vsel %vm412, %v3154, 0
    %3171 = vmatprep.subr.mxu0 0.0
    %3172 = vmatpush1.xpose.msra.mxu0 %v3163
    %3173 = vmatprep.subr.mxu0 0.0
    %3174 = vmatpush1.xpose.msra.mxu0 %v3165
    %3175 = vmatprep.subr.mxu0 0.0
    %3176 = vmatpush1.xpose.msra.mxu0 %v3167
    %3177 = vmatprep.subr.mxu0 0.0
    %3178 = vmatpush1.xpose.msra.mxu0 %v3169
    %3179 = vmatprep.subr.mxu0 0.0
    %3180 = vmatpush1.xpose.msra.mxu0 0.0
    %3181 = vmatprep.subr.mxu0 0.0
    %3182 = vmatpush1.xpose.msra.mxu0 0.0
    %3183 = vmatprep.subr.mxu0 0.0
    %3184 = vmatpush1.xpose.msra.mxu0 0.0
    %3185 = vmatprep.subr.mxu0 0.0
    %3186 = vmatpush1.xpose.msra.mxu0 0.0
    %3187 = vmatprep.subr.mxu0 0.0
    %3188 = vmatpush1.xpose.msra.mxu0 0.0
    %3189 = vmatprep.subr.mxu0 0.0
    %3190 = vmatpush1.xpose.msra.mxu0 0.0
    %3191 = vmatprep.subr.mxu0 0.0
    %3192 = vmatpush1.xpose.msra.mxu0 0.0
    %3193 = vmatprep.subr.mxu0 0.0
    %3194 = vmatpush1.xpose.msra.mxu0 0.0
    %3195 = vmatprep.subr.mxu0 0.0
    %3196 = vmatpush1.xpose.msra.mxu0 0.0
    %3197 = vmatprep.subr.mxu0 0.0
    %3198 = vmatpush1.xpose.msra.mxu0 0.0
    %3199 = vmatprep.subr.mxu0 0.0
    %3200 = vmatpush1.xpose.msra.mxu0 0.0
    %3201 = vmatprep.subr.mxu0 0.0
    %3202 = vmatpush1.xpose.msra.mxu0 0.0
    %3203 = vmatprep.subr.mxu0 0.0
    %3204 = vmatpush1.xpose.msra.mxu0 0.0
    %3205 = vmatprep.subr.mxu0 0.0
    %3206 = vmatpush1.xpose.msra.mxu0 0.0
    %3207 = vmatprep.subr.mxu0 0.0
    %3208 = vmatpush1.xpose.msra.mxu0 0.0
    %3209 = vmatprep.subr.mxu0 0.0
    %3210 = vmatpush1.xpose.msra.mxu0 0.0
    %3211 = vmatprep.subr.mxu0 0.0
    %3212 = vmatpush1.xpose.msra.mxu0 0.0
    %3213 = vmatprep.subr.mxu0 0.0
    %3214 = vmatpush1.xpose.msra.mxu0 0.0
    %3215 = vmatprep.subr.mxu0 0.0
    %3216 = vmatpush1.xpose.msra.mxu0 0.0
    %3217 = vmatprep.subr.mxu0 0.0
    %3218 = vmatpush1.xpose.msra.mxu0 0.0
    %3219 = vmatprep.subr.mxu0 0.0
    %3220 = vmatpush1.xpose.msra.mxu0 0.0
    %3221 = vmatprep.subr.mxu0 0.0
    %3222 = vmatpush1.xpose.msra.mxu0 0.0
    %3223 = vmatprep.subr.mxu0 0.0
    %3224 = vmatpush1.xpose.msra.mxu0 0.0
    %3225 = vmatprep.subr.mxu0 0.0
    %3226 = vmatpush1.xpose.msra.mxu0 0.0
    %3227 = vmatprep.subr.mxu0 0.0
    %3228 = vmatpush1.xpose.msra.mxu0 0.0
    %3229 = vmatprep.subr.mxu0 0.0
    %3230 = vmatpush1.xpose.msra.mxu0 0.0
    %3231 = vmatprep.subr.mxu0 0.0
    %3232 = vmatpush1.xpose.msra.mxu0 0.0
    %3233 = vmatprep.subr.mxu0 0.0
    %3234 = vmatpush1.xpose.msra.mxu0 0.0
    %3235 = vmatprep.mubr.f32.mxu0 0.0
    %3236 = vmatmul.mubr.f32.gmra.mrb[0].mxu0 %v3155
    %v3237 = vpop.f32.mrb[0].mxu0
    %v3238 = vadd.f32 %v102, %v3237
    %v3239 = vpop.f32.mrb[0].mxu0
    %3240 = vmatprep.mubr.f32.mxu0 0.0
    %3241 = vmatmul.mubr.f32.gmra.mrb[0].mxu0 %v3157
    %v3242 = vpop.f32.mrb[0].mxu0
    %v3243 = vadd.f32 %v103, %v3242
    %v3244 = vpop.f32.mrb[0].mxu0
    %3245 = vmatprep.mubr.f32.mxu0 0.0
    %3246 = vmatmul.mubr.f32.gmra.mrb[0].mxu0 %v3159
    %v3247 = vpop.f32.mrb[0].mxu0
    %v3248 = vadd.f32 %v104, %v3247
    %v3249 = vpop.f32.mrb[0].mxu0
    %3250 = vmatprep.mubr.f32.mxu0 0.0
    %3251 = vmatmul.mubr.f32.gmra.mrb[0].mxu0 %v3161
    %v3252 = vpop.f32.mrb[0].mxu0
    %v3253 = vadd.f32 %v105, %v3252
    %v3254 = vpop.f32.mrb[0].mxu0
    %3255 = vdwg.mxu0
    %v3256 = vsel %vm412, %v3238, -inf
    %3257 = vmax.xlane.f32.xlu0 %v3256
    %v3258 = vpop.xlane.xlu0 %3257
    %v3259 = vsel %vm412, %v3243, -inf
    %3260 = vmax.xlane.f32.xlu0 %v3259
    %v3261 = vpop.xlane.xlu0 %3260
    %v3262 = vsel %vm412, %v3248, -inf
    %3263 = vmax.xlane.f32.xlu0 %v3262
    %v3264 = vpop.xlane.xlu0 %3263
    %v3265 = vsel %vm412, %v3253, -inf
    %3266 = vmax.xlane.f32.xlu0 %v3265
    %v3267 = vpop.xlane.xlu0 %3266
    %v3268 = vsub.f32 %v3238, %v3258
    %v3269 = vsub.f32 %v3243, %v3261
    %v3270 = vsub.f32 %v3248, %v3264
    %v3271 = vsub.f32 %v3253, %v3267
    %v3272 = vmul.f32 %v3268, 1.442695
    %v3273 = vpow.pop %v3272
    %v3274 = vmul.f32 %v3269, 1.442695
    %v3275 = vpow.pop %v3274
    %v3276 = vmul.f32 %v3270, 1.442695
    %v3277 = vpow.pop %v3276
    %v3278 = vmul.f32 %v3271, 1.442695
    %v3279 = vpow.pop %v3278
    %v3280 = vsel %vm412, %v3273, 0.0
    %3281 = vadd.xlane.f32.xlu0 %v3280
    %v3282 = vpop.xlane.xlu0 %3281
    %v3283 = vsel %vm412, %v3275, 0.0
    %3284 = vadd.xlane.f32.xlu0 %v3283
    %v3285 = vpop.xlane.xlu0 %3284
    %v3286 = vsel %vm412, %v3277, 0.0
    %3287 = vadd.xlane.f32.xlu0 %v3286
    %v3288 = vpop.xlane.xlu0 %3287
    %v3289 = vsel %vm412, %v3279, 0.0
    %3290 = vadd.xlane.f32.xlu0 %v3289
    %v3291 = vpop.xlane.xlu0 %3290
    %v3292 = vrcp.pop %v3282
    %v3293 = vmul.f32 %v3273, %v3292
    %v3294 = vrcp.pop %v3285
    %v3295 = vmul.f32 %v3275, %v3294
    %v3296 = vrcp.pop %v3288
    %v3297 = vmul.f32 %v3277, %v3296
    %v3298 = vrcp.pop %v3291
    %v3299 = vmul.f32 %v3279, %v3298
    %3300 = vrot.lane.b32.xlu0 %v2597, 64
    %v3301 = vpop.permute.xlu0 %3300
    %3302 = vrot.lane.b32.xlu0 %v2602, 64
    %v3303 = vpop.permute.xlu0 %3302
    %3304 = vrot.lane.b32.xlu0 %v2607, 64
    %v3305 = vpop.permute.xlu0 %3304
    %3306 = vrot.lane.b32.xlu0 %v2612, 64
    %v3307 = vpop.permute.xlu0 %3306
    %v3313 = vsel %vm412, %v3293, 0
    %v3316 = vsel %vm412, %v3295, 0
    %v3319 = vsel %vm412, %v3297, 0
    %v3322 = vsel %vm412, %v3299, 0
    %3324 = vmatprep.subr.mxu0 0.0
    %3325 = vmatpush1.msra.mxu0 %v3301
    %3326 = vmatprep.subr.mxu0 0.0
    %3327 = vmatpush1.msra.mxu0 %v3303
    %3328 = vmatprep.subr.mxu0 0.0
    %3329 = vmatpush1.msra.mxu0 %v3305
    %3330 = vmatprep.subr.mxu0 0.0
    %3331 = vmatpush1.msra.mxu0 %v3307
    %3332 = vmatprep.subr.mxu0 0.0
    %3333 = vmatpush1.msra.mxu0 0.0
    %3334 = vmatprep.subr.mxu0 0.0
    %3335 = vmatpush1.msra.mxu0 0.0
    %3336 = vmatprep.subr.mxu0 0.0
    %3337 = vmatpush1.msra.mxu0 0.0
    %3338 = vmatprep.subr.mxu0 0.0
    %3339 = vmatpush1.msra.mxu0 0.0
    %3340 = vmatprep.subr.mxu0 0.0
    %3341 = vmatpush1.msra.mxu0 0.0
    %3342 = vmatprep.subr.mxu0 0.0
    %3343 = vmatpush1.msra.mxu0 0.0
    %3344 = vmatprep.subr.mxu0 0.0
    %3345 = vmatpush1.msra.mxu0 0.0
    %3346 = vmatprep.subr.mxu0 0.0
    %3347 = vmatpush1.msra.mxu0 0.0
    %3348 = vmatprep.subr.mxu0 0.0
    %3349 = vmatpush1.msra.mxu0 0.0
    %3350 = vmatprep.subr.mxu0 0.0
    %3351 = vmatpush1.msra.mxu0 0.0
    %3352 = vmatprep.subr.mxu0 0.0
    %3353 = vmatpush1.msra.mxu0 0.0
    %3354 = vmatprep.subr.mxu0 0.0
    %3355 = vmatpush1.msra.mxu0 0.0
    %3356 = vmatprep.subr.mxu0 0.0
    %3357 = vmatpush1.msra.mxu0 0.0
    %3358 = vmatprep.subr.mxu0 0.0
    %3359 = vmatpush1.msra.mxu0 0.0
    %3360 = vmatprep.subr.mxu0 0.0
    %3361 = vmatpush1.msra.mxu0 0.0
    %3362 = vmatprep.subr.mxu0 0.0
    %3363 = vmatpush1.msra.mxu0 0.0
    %3364 = vmatprep.subr.mxu0 0.0
    %3365 = vmatpush1.msra.mxu0 0.0
    %3366 = vmatprep.subr.mxu0 0.0
    %3367 = vmatpush1.msra.mxu0 0.0
    %3368 = vmatprep.subr.mxu0 0.0
    %3369 = vmatpush1.msra.mxu0 0.0
    %3370 = vmatprep.subr.mxu0 0.0
    %3371 = vmatpush1.msra.mxu0 0.0
    %3372 = vmatprep.subr.mxu0 0.0
    %3373 = vmatpush1.msra.mxu0 0.0
    %3374 = vmatprep.subr.mxu0 0.0
    %3375 = vmatpush1.msra.mxu0 0.0
    %3376 = vmatprep.subr.mxu0 0.0
    %3377 = vmatpush1.msra.mxu0 0.0
    %3378 = vmatprep.subr.mxu0 0.0
    %3379 = vmatpush1.msra.mxu0 0.0
    %3380 = vmatprep.subr.mxu0 0.0
    %3381 = vmatpush1.msra.mxu0 0.0
    %3382 = vmatprep.subr.mxu0 0.0
    %3383 = vmatpush1.msra.mxu0 0.0
    %3384 = vmatprep.subr.mxu0 0.0
    %3385 = vmatpush1.msra.mxu0 0.0
    %3386 = vmatprep.subr.mxu0 0.0
    %3387 = vmatpush1.msra.mxu0 0.0
    %3388 = vmatprep.mubr.f32.mxu0 0.0
    %3389 = vmatmul.mubr.f32.gmra.mrb[0].mxu0 %v3313
    %v3390 = vpop.f32.mrb[0].mxu0
    %v3391 = vadd.f32 0.0, %v3390
    %v3392 = vpop.f32.mrb[0].mxu0
    %3393 = vmatprep.mubr.f32.mxu0 0.0
    %3394 = vmatmul.mubr.f32.gmra.mrb[0].mxu0 %v3316
    %v3395 = vpop.f32.mrb[0].mxu0
    %v3396 = vadd.f32 0.0, %v3395
    %v3397 = vpop.f32.mrb[0].mxu0
    %3398 = vmatprep.mubr.f32.mxu0 0.0
    %3399 = vmatmul.mubr.f32.gmra.mrb[0].mxu0 %v3319
    %v3400 = vpop.f32.mrb[0].mxu0
    %v3401 = vadd.f32 0.0, %v3400
    %v3402 = vpop.f32.mrb[0].mxu0
    %3403 = vmatprep.mubr.f32.mxu0 0.0
    %3404 = vmatmul.mubr.f32.gmra.mrb[0].mxu0 %v3322
    %v3405 = vpop.f32.mrb[0].mxu0
    %v3406 = vadd.f32 0.0, %v3405
    %v3407 = vpop.f32.mrb[0].mxu0
    %3408 = vdwg.mxu0
    %3409 = vrot.lane.b32.xlu0 %v2508, 32
    %v3410 = vpop.permute.xlu0 %3409
    %3411 = vrot.lane.b32.xlu0 %v2514, 32
    %v3412 = vpop.permute.xlu0 %3411
    %3413 = vrot.lane.b32.xlu0 %v2520, 32
    %v3414 = vpop.permute.xlu0 %3413
    %3415 = vrot.lane.b32.xlu0 %v2526, 32
    %v3416 = vpop.permute.xlu0 %3415
    %3417 = vrot.lane.b32.xlu0 %v2510, 32
    %v3418 = vpop.permute.xlu0 %3417
    %3419 = vrot.lane.b32.xlu0 %v2516, 32
    %v3420 = vpop.permute.xlu0 %3419
    %3421 = vrot.lane.b32.xlu0 %v2522, 32
    %v3422 = vpop.permute.xlu0 %3421
    %3423 = vrot.lane.b32.xlu0 %v2528, 32
    %v3424 = vpop.permute.xlu0 %3423
    %v3425 = vsel %vm412, %v3410, 0
    %v3427 = vsel %vm412, %v3412, 0
    %v3429 = vsel %vm412, %v3414, 0
    %v3431 = vsel %vm412, %v3416, 0
    %v3433 = vsel %vm412, %v3418, 0
    %v3435 = vsel %vm412, %v3420, 0
    %v3437 = vsel %vm412, %v3422, 0
    %v3439 = vsel %vm412, %v3424, 0
    %3441 = vmatprep.subr.mxu0 0.0
    %3442 = vmatpush1.xpose.msra.mxu0 %v3433
    %3443 = vmatprep.subr.mxu0 0.0
    %3444 = vmatpush1.xpose.msra.mxu0 %v3435
    %3445 = vmatprep.subr.mxu0 0.0
    %3446 = vmatpush1.xpose.msra.mxu0 %v3437
    %3447 = vmatprep.subr.mxu0 0.0
    %3448 = vmatpush1.xpose.msra.mxu0 %v3439
    %3449 = vmatprep.subr.mxu0 0.0
    %3450 = vmatpush1.xpose.msra.mxu0 0.0
    %3451 = vmatprep.subr.mxu0 0.0
    %3452 = vmatpush1.xpose.msra.mxu0 0.0
    %3453 = vmatprep.subr.mxu0 0.0
    %3454 = vmatpush1.xpose.msra.mxu0 0.0
    %3455 = vmatprep.subr.mxu0 0.0
    %3456 = vmatpush1.xpose.msra.mxu0 0.0
    %3457 = vmatprep.subr.mxu0 0.0
    %3458 = vmatpush1.xpose.msra.mxu0 0.0
    %3459 = vmatprep.subr.mxu0 0.0
    %3460 = vmatpush1.xpose.msra.mxu0 0.0
    %3461 = vmatprep.subr.mxu0 0.0
    %3462 = vmatpush1.xpose.msra.mxu0 0.0
    %3463 = vmatprep.subr.mxu0 0.0
    %3464 = vmatpush1.xpose.msra.mxu0 0.0
    %3465 = vmatprep.subr.mxu0 0.0
    %3466 = vmatpush1.xpose.msra.mxu0 0.0
    %3467 = vmatprep.subr.mxu0 0.0
    %3468 = vmatpush1.xpose.msra.mxu0 0.0
    %3469 = vmatprep.subr.mxu0 0.0
    %3470 = vmatpush1.xpose.msra.mxu0 0.0
    %3471 = vmatprep.subr.mxu0 0.0
    %3472 = vmatpush1.xpose.msra.mxu0 0.0
    %3473 = vmatprep.subr.mxu0 0.0
    %3474 = vmatpush1.xpose.msra.mxu0 0.0
    %3475 = vmatprep.subr.mxu0 0.0
    %3476 = vmatpush1.xpose.msra.mxu0 0.0
    %3477 = vmatprep.subr.mxu0 0.0
    %3478 = vmatpush1.xpose.msra.mxu0 0.0
    %3479 = vmatprep.subr.mxu0 0.0
    %3480 = vmatpush1.xpose.msra.mxu0 0.0
    %3481 = vmatprep.subr.mxu0 0.0
    %3482 = vmatpush1.xpose.msra.mxu0 0.0
    %3483 = vmatprep.subr.mxu0 0.0
    %3484 = vmatpush1.xpose.msra.mxu0 0.0
    %3485 = vmatprep.subr.mxu0 0.0
    %3486 = vmatpush1.xpose.msra.mxu0 0.0
    %3487 = vmatprep.subr.mxu0 0.0
    %3488 = vmatpush1.xpose.msra.mxu0 0.0
    %3489 = vmatprep.subr.mxu0 0.0
    %3490 = vmatpush1.xpose.msra.mxu0 0.0
    %3491 = vmatprep.subr.mxu0 0.0
    %3492 = vmatpush1.xpose.msra.mxu0 0.0
    %3493 = vmatprep.subr.mxu0 0.0
    %3494 = vmatpush1.xpose.msra.mxu0 0.0
    %3495 = vmatprep.subr.mxu0 0.0
    %3496 = vmatpush1.xpose.msra.mxu0 0.0
    %3497 = vmatprep.subr.mxu0 0.0
    %3498 = vmatpush1.xpose.msra.mxu0 0.0
    %3499 = vmatprep.subr.mxu0 0.0
    %3500 = vmatpush1.xpose.msra.mxu0 0.0
    %3501 = vmatprep.subr.mxu0 0.0
    %3502 = vmatpush1.xpose.msra.mxu0 0.0
    %3503 = vmatprep.subr.mxu0 0.0
    %3504 = vmatpush1.xpose.msra.mxu0 0.0
    %3505 = vmatprep.mubr.f32.mxu0 0.0
    %3506 = vmatmul.mubr.f32.gmra.mrb[0].mxu0 %v3425
    %v3507 = vpop.f32.mrb[0].mxu0
    %v3508 = vadd.f32 %v102, %v3507
    %v3509 = vpop.f32.mrb[0].mxu0
    %3510 = vmatprep.mubr.f32.mxu0 0.0
    %3511 = vmatmul.mubr.f32.gmra.mrb[0].mxu0 %v3427
    %v3512 = vpop.f32.mrb[0].mxu0
    %v3513 = vadd.f32 %v103, %v3512
    %v3514 = vpop.f32.mrb[0].mxu0
    %3515 = vmatprep.mubr.f32.mxu0 0.0
    %3516 = vmatmul.mubr.f32.gmra.mrb[0].mxu0 %v3429
    %v3517 = vpop.f32.mrb[0].mxu0
    %v3518 = vadd.f32 %v104, %v3517
    %v3519 = vpop.f32.mrb[0].mxu0
    %3520 = vmatprep.mubr.f32.mxu0 0.0
    %3521 = vmatmul.mubr.f32.gmra.mrb[0].mxu0 %v3431
    %v3522 = vpop.f32.mrb[0].mxu0
    %v3523 = vadd.f32 %v105, %v3522
    %v3524 = vpop.f32.mrb[0].mxu0
    %3525 = vdwg.mxu0
    %v3526 = vsel %vm412, %v3508, -inf
    %3527 = vmax.xlane.f32.xlu0 %v3526
    %v3528 = vpop.xlane.xlu0 %3527
    %v3529 = vsel %vm412, %v3513, -inf
    %3530 = vmax.xlane.f32.xlu0 %v3529
    %v3531 = vpop.xlane.xlu0 %3530
    %v3532 = vsel %vm412, %v3518, -inf
    %3533 = vmax.xlane.f32.xlu0 %v3532
    %v3534 = vpop.xlane.xlu0 %3533
    %v3535 = vsel %vm412, %v3523, -inf
    %3536 = vmax.xlane.f32.xlu0 %v3535
    %v3537 = vpop.xlane.xlu0 %3536
    %v3538 = vsub.f32 %v3508, %v3528
    %v3539 = vsub.f32 %v3513, %v3531
    %v3540 = vsub.f32 %v3518, %v3534
    %v3541 = vsub.f32 %v3523, %v3537
    %v3542 = vmul.f32 %v3538, 1.442695
    %v3543 = vpow.pop %v3542
    %v3544 = vmul.f32 %v3539, 1.442695
    %v3545 = vpow.pop %v3544
    %v3546 = vmul.f32 %v3540, 1.442695
    %v3547 = vpow.pop %v3546
    %v3548 = vmul.f32 %v3541, 1.442695
    %v3549 = vpow.pop %v3548
    %v3550 = vsel %vm412, %v3543, 0.0
    %3551 = vadd.xlane.f32.xlu0 %v3550
    %v3552 = vpop.xlane.xlu0 %3551
    %v3553 = vsel %vm412, %v3545, 0.0
    %3554 = vadd.xlane.f32.xlu0 %v3553
    %v3555 = vpop.xlane.xlu0 %3554
    %v3556 = vsel %vm412, %v3547, 0.0
    %3557 = vadd.xlane.f32.xlu0 %v3556
    %v3558 = vpop.xlane.xlu0 %3557
    %v3559 = vsel %vm412, %v3549, 0.0
    %3560 = vadd.xlane.f32.xlu0 %v3559
    %v3561 = vpop.xlane.xlu0 %3560
    %v3562 = vrcp.pop %v3552
    %v3563 = vmul.f32 %v3543, %v3562
    %v3564 = vrcp.pop %v3555
    %v3565 = vmul.f32 %v3545, %v3564
    %v3566 = vrcp.pop %v3558
    %v3567 = vmul.f32 %v3547, %v3566
    %v3568 = vrcp.pop %v3561
    %v3569 = vmul.f32 %v3549, %v3568
    %3570 = vrot.lane.b32.xlu0 %v2597, 32
    %v3571 = vpop.permute.xlu0 %3570
    %3572 = vrot.lane.b32.xlu0 %v2602, 32
    %v3573 = vpop.permute.xlu0 %3572
    %3574 = vrot.lane.b32.xlu0 %v2607, 32
    %v3575 = vpop.permute.xlu0 %3574
    %3576 = vrot.lane.b32.xlu0 %v2612, 32
    %v3577 = vpop.permute.xlu0 %3576
    %v3583 = vsel %vm412, %v3563, 0
    %v3586 = vsel %vm412, %v3565, 0
    %v3589 = vsel %vm412, %v3567, 0
    %v3592 = vsel %vm412, %v3569, 0
    %3594 = vmatprep.subr.mxu0 0.0
    %3595 = vmatpush1.msra.mxu0 %v3571
    %3596 = vmatprep.subr.mxu0 0.0
    %3597 = vmatpush1.msra.mxu0 %v3573
    %3598 = vmatprep.subr.mxu0 0.0
    %3599 = vmatpush1.msra.mxu0 %v3575
    %3600 = vmatprep.subr.mxu0 0.0
    %3601 = vmatpush1.msra.mxu0 %v3577
    %3602 = vmatprep.subr.mxu0 0.0
    %3603 = vmatpush1.msra.mxu0 0.0
    %3604 = vmatprep.subr.mxu0 0.0
    %3605 = vmatpush1.msra.mxu0 0.0
    %3606 = vmatprep.subr.mxu0 0.0
    %3607 = vmatpush1.msra.mxu0 0.0
    %3608 = vmatprep.subr.mxu0 0.0
    %3609 = vmatpush1.msra.mxu0 0.0
    %3610 = vmatprep.subr.mxu0 0.0
    %3611 = vmatpush1.msra.mxu0 0.0
    %3612 = vmatprep.subr.mxu0 0.0
    %3613 = vmatpush1.msra.mxu0 0.0
    %3614 = vmatprep.subr.mxu0 0.0
    %3615 = vmatpush1.msra.mxu0 0.0
    %3616 = vmatprep.subr.mxu0 0.0
    %3617 = vmatpush1.msra.mxu0 0.0
    %3618 = vmatprep.subr.mxu0 0.0
    %3619 = vmatpush1.msra.mxu0 0.0
    %3620 = vmatprep.subr.mxu0 0.0
    %3621 = vmatpush1.msra.mxu0 0.0
    %3622 = vmatprep.subr.mxu0 0.0
    %3623 = vmatpush1.msra.mxu0 0.0
    %3624 = vmatprep.subr.mxu0 0.0
    %3625 = vmatpush1.msra.mxu0 0.0
    %3626 = vmatprep.subr.mxu0 0.0
    %3627 = vmatpush1.msra.mxu0 0.0
    %3628 = vmatprep.subr.mxu0 0.0
    %3629 = vmatpush1.msra.mxu0 0.0
    %3630 = vmatprep.subr.mxu0 0.0
    %3631 = vmatpush1.msra.mxu0 0.0
    %3632 = vmatprep.subr.mxu0 0.0
    %3633 = vmatpush1.msra.mxu0 0.0
    %3634 = vmatprep.subr.mxu0 0.0
    %3635 = vmatpush1.msra.mxu0 0.0
    %3636 = vmatprep.subr.mxu0 0.0
    %3637 = vmatpush1.msra.mxu0 0.0
    %3638 = vmatprep.subr.mxu0 0.0
    %3639 = vmatpush1.msra.mxu0 0.0
    %3640 = vmatprep.subr.mxu0 0.0
    %3641 = vmatpush1.msra.mxu0 0.0
    %3642 = vmatprep.subr.mxu0 0.0
    %3643 = vmatpush1.msra.mxu0 0.0
    %3644 = vmatprep.subr.mxu0 0.0
    %3645 = vmatpush1.msra.mxu0 0.0
    %3646 = vmatprep.subr.mxu0 0.0
    %3647 = vmatpush1.msra.mxu0 0.0
    %3648 = vmatprep.subr.mxu0 0.0
    %3649 = vmatpush1.msra.mxu0 0.0
    %3650 = vmatprep.subr.mxu0 0.0
    %3651 = vmatpush1.msra.mxu0 0.0
    %3652 = vmatprep.subr.mxu0 0.0
    %3653 = vmatpush1.msra.mxu0 0.0
    %3654 = vmatprep.subr.mxu0 0.0
    %3655 = vmatpush1.msra.mxu0 0.0
    %3656 = vmatprep.subr.mxu0 0.0
    %3657 = vmatpush1.msra.mxu0 0.0
    %3658 = vmatprep.mubr.f32.mxu0 0.0
    %3659 = vmatmul.mubr.f32.gmra.mrb[0].mxu0 %v3583
    %v3660 = vpop.f32.mrb[0].mxu0
    %v3661 = vadd.f32 0.0, %v3660
    %v3662 = vpop.f32.mrb[0].mxu0
    %3663 = vmatprep.mubr.f32.mxu0 0.0
    %3664 = vmatmul.mubr.f32.gmra.mrb[0].mxu0 %v3586
    %v3665 = vpop.f32.mrb[0].mxu0
    %v3666 = vadd.f32 0.0, %v3665
    %v3667 = vpop.f32.mrb[0].mxu0
    %3668 = vmatprep.mubr.f32.mxu0 0.0
    %3669 = vmatmul.mubr.f32.gmra.mrb[0].mxu0 %v3589
    %v3670 = vpop.f32.mrb[0].mxu0
    %v3671 = vadd.f32 0.0, %v3670
    %v3672 = vpop.f32.mrb[0].mxu0
    %3673 = vmatprep.mubr.f32.mxu0 0.0
    %3674 = vmatmul.mubr.f32.gmra.mrb[0].mxu0 %v3592
    %v3675 = vpop.f32.mrb[0].mxu0
    %v3676 = vadd.f32 0.0, %v3675
    %v3677 = vpop.f32.mrb[0].mxu0
    %3678 = vdwg.mxu0
    %3683 = vrot.lane.b32.xlu0 %v3121, 32
    %v3684 = vpop.permute.xlu0 %3683
    %3685 = vrot.lane.b32.xlu0 %v3126, 32
    %v3686 = vpop.permute.xlu0 %3685
    %3687 = vrot.lane.b32.xlu0 %v3131, 32
    %v3688 = vpop.permute.xlu0 %3687
    %3689 = vrot.lane.b32.xlu0 %v3136, 32
    %v3690 = vpop.permute.xlu0 %3689
    %3699 = vrot.lane.b32.xlu0 %v3391, 64
    %v3700 = vpop.permute.xlu0 %3699
    %3701 = vrot.lane.b32.xlu0 %v3396, 64
    %v3702 = vpop.permute.xlu0 %3701
    %3703 = vrot.lane.b32.xlu0 %v3401, 64
    %v3704 = vpop.permute.xlu0 %3703
    %3705 = vrot.lane.b32.xlu0 %v3406, 64
    %v3706 = vpop.permute.xlu0 %3705
    %3715 = vrot.lane.b32.xlu0 %v3661, 96
    %v3716 = vpop.permute.xlu0 %3715
    %3717 = vrot.lane.b32.xlu0 %v3666, 96
    %v3718 = vpop.permute.xlu0 %3717
    %3719 = vrot.lane.b32.xlu0 %v3671, 96
    %v3720 = vpop.permute.xlu0 %3719
    %3721 = vrot.lane.b32.xlu0 %v3676, 96
    %v3722 = vpop.permute.xlu0 %3721
    %v3727 = vsel %vm412, %v2847, %v3684
    %v3728 = vsel %vm412, %v2852, %v3686
    %v3729 = vsel %vm412, %v2857, %v3688
    %v3730 = vsel %vm412, %v2862, %v3690
    %v3731 = vsel %vm1529, %v3727, %v3700
    %v3732 = vsel %vm1529, %v3728, %v3702
    %v3733 = vsel %vm1529, %v3729, %v3704
    %v3734 = vsel %vm1529, %v3730, %v3706
    %v3735 = vsel %vm1534, %v3731, %v3716
    %v3736 = vsel %vm1534, %v3732, %v3718
    %v3737 = vsel %vm1534, %v3733, %v3720
    %v3738 = vsel %vm1534, %v3734, %v3722
    %s3739 = scalar_lea.vmem %s6, 128
    %v3740 = vld [vmem:[%s3739] sm:$0xff]
    %v3741 = vld [vmem:[%s3739 + $0x8] sm:$0xff]
    %v3742 = vld [vmem:[%s3739 + $0x10] sm:$0xff]
    %v3743 = vld [vmem:[%s3739 + $0x18] sm:$0xff]
    %v3744 = vld [vmem:[%s3739 + $0x20] sm:$0xff]
    %v3745 = vld [vmem:[%s3739 + $0x28] sm:$0xff]
    %v3746 = vld [vmem:[%s3739 + $0x30] sm:$0xff]
    %v3747 = vld [vmem:[%s3739 + $0x38] sm:$0xff]
    %v3748 = vld [vmem:[%s3739 + $0x40] sm:$0xff]
    %v3749 = vld [vmem:[%s3739 + $0x48] sm:$0xff]
    %v3750 = vld [vmem:[%s3739 + $0x50] sm:$0xff]
    %v3751 = vld [vmem:[%s3739 + $0x58] sm:$0xff]
    %v3752 = vld [vmem:[%s3739 + $0x60] sm:$0xff]
    %v3753 = vld [vmem:[%s3739 + $0x68] sm:$0xff]
    %v3754 = vld [vmem:[%s3739 + $0x70] sm:$0xff]
    %v3755 = vld [vmem:[%s3739 + $0x78] sm:$0xff]
    %s3756 = scalar_lea.vmem %s7, 1
    %v3757 = vld [vmem:[%s3756] sm:$0x1]
    %v3759 = vlaneseq
    %v3760 = vshrl.u32 %v3759, 7
    %v3761 = vsub.s32 0, %v3760
    %v3762 = vrot.slane %v3757, %v3761
    %3764 = vmatprep.subr.mxu0 0.0
    %3765 = vmatpush1.msra.mxu0 %v3740
    %3766 = vmatprep.subr.mxu0 0.0
    %3767 = vmatpush1.msra.mxu0 %v3741
    %3768 = vmatprep.subr.mxu0 0.0
    %3769 = vmatpush1.msra.mxu0 %v3742
    %3770 = vmatprep.subr.mxu0 0.0
    %3771 = vmatpush1.msra.mxu0 %v3743
    %3772 = vmatprep.subr.mxu0 0.0
    %3773 = vmatpush1.msra.mxu0 %v3744
    %3774 = vmatprep.subr.mxu0 0.0
    %3775 = vmatpush1.msra.mxu0 %v3745
    %3776 = vmatprep.subr.mxu0 0.0
    %3777 = vmatpush1.msra.mxu0 %v3746
    %3778 = vmatprep.subr.mxu0 0.0
    %3779 = vmatpush1.msra.mxu0 %v3747
    %3780 = vmatprep.subr.mxu0 0.0
    %3781 = vmatpush1.msra.mxu0 %v3748
    %3782 = vmatprep.subr.mxu0 0.0
    %3783 = vmatpush1.msra.mxu0 %v3749
    %3784 = vmatprep.subr.mxu0 0.0
    %3785 = vmatpush1.msra.mxu0 %v3750
    %3786 = vmatprep.subr.mxu0 0.0
    %3787 = vmatpush1.msra.mxu0 %v3751
    %3788 = vmatprep.subr.mxu0 0.0
    %3789 = vmatpush1.msra.mxu0 %v3752
    %3790 = vmatprep.subr.mxu0 0.0
    %3791 = vmatpush1.msra.mxu0 %v3753
    %3792 = vmatprep.subr.mxu0 0.0
    %3793 = vmatpush1.msra.mxu0 %v3754
    %3794 = vmatprep.subr.mxu0 0.0
    %3795 = vmatpush1.msra.mxu0 %v3755
    %3796 = vmatprep.subr.mxu0 0.0
    %3797 = vmatpush1.msra.mxu0 0.0
    %3798 = vmatprep.subr.mxu0 0.0
    %3799 = vmatpush1.msra.mxu0 0.0
    %3800 = vmatprep.subr.mxu0 0.0
    %3801 = vmatpush1.msra.mxu0 0.0
    %3802 = vmatprep.subr.mxu0 0.0
    %3803 = vmatpush1.msra.mxu0 0.0
    %3804 = vmatprep.subr.mxu0 0.0
    %3805 = vmatpush1.msra.mxu0 0.0
    %3806 = vmatprep.subr.mxu0 0.0
    %3807 = vmatpush1.msra.mxu0 0.0
    %3808 = vmatprep.subr.mxu0 0.0
    %3809 = vmatpush1.msra.mxu0 0.0
    %3810 = vmatprep.subr.mxu0 0.0
    %3811 = vmatpush1.msra.mxu0 0.0
    %3812 = vmatprep.subr.mxu0 0.0
    %3813 = vmatpush1.msra.mxu0 0.0
    %3814 = vmatprep.subr.mxu0 0.0
    %3815 = vmatpush1.msra.mxu0 0.0
    %3816 = vmatprep.subr.mxu0 0.0
    %3817 = vmatpush1.msra.mxu0 0.0
    %3818 = vmatprep.subr.mxu0 0.0
    %3819 = vmatpush1.msra.mxu0 0.0
    %3820 = vmatprep.subr.mxu0 0.0
    %3821 = vmatpush1.msra.mxu0 0.0
    %3822 = vmatprep.subr.mxu0 0.0
    %3823 = vmatpush1.msra.mxu0 0.0
    %3824 = vmatprep.subr.mxu0 0.0
    %3825 = vmatpush1.msra.mxu0 0.0
    %3826 = vmatprep.subr.mxu0 0.0
    %3827 = vmatpush1.msra.mxu0 0.0
    %3828 = vmatprep.mubr.f32.mxu0 0.0
    %3829 = vmatmul.mubr.f32.gmra.mrb[0].mxu0 %v3735
    %v3830 = vpop.f32.mrb[0].mxu0
    %v3831 = vadd.f32 %v3762, %v3830
    %v3832 = vpop.f32.mrb[0].mxu0
    %3833 = vmatprep.mubr.f32.mxu0 0.0
    %3834 = vmatmul.mubr.f32.gmra.mrb[0].mxu0 %v3736
    %v3835 = vpop.f32.mrb[0].mxu0
    %v3836 = vadd.f32 %v3762, %v3835
    %v3837 = vpop.f32.mrb[0].mxu0
    %3838 = vmatprep.mubr.f32.mxu0 0.0
    %3839 = vmatmul.mubr.f32.gmra.mrb[0].mxu0 %v3737
    %v3840 = vpop.f32.mrb[0].mxu0
    %v3841 = vadd.f32 %v3762, %v3840
    %v3842 = vpop.f32.mrb[0].mxu0
    %3843 = vmatprep.mubr.f32.mxu0 0.0
    %3844 = vmatmul.mubr.f32.gmra.mrb[0].mxu0 %v3738
    %v3845 = vpop.f32.mrb[0].mxu0
    %v3846 = vadd.f32 %v3762, %v3845
    %v3847 = vpop.f32.mrb[0].mxu0
    %3848 = vdwg.mxu0
    %v3849 = vadd.f32 %v2302, %v3831
    %v3850 = vadd.f32 %v2303, %v3836
    %v3851 = vadd.f32 %v2304, %v3841
    %v3852 = vadd.f32 %v2305, %v3846
    %s3853 = scalar_lea.vmem %s8, 1
    %v3854 = vld [vmem:[%s3853] sm:$0x1]
    %s3855 = scalar_lea.vmem %s9, 1
    %v3856 = vld [vmem:[%s3855] sm:$0x1]
    %3857 = vadd.xlane.f32.xlu0 %v3849
    %v3858 = vpop.xlane.xlu0 %3857
    %3859 = vadd.xlane.f32.xlu0 %v3850
    %v3860 = vpop.xlane.xlu0 %3859
    %3861 = vadd.xlane.f32.xlu0 %v3851
    %v3862 = vpop.xlane.xlu0 %3861
    %3863 = vadd.xlane.f32.xlu0 %v3852
    %v3864 = vpop.xlane.xlu0 %3863
    %v3865 = vmul.f32 %v3858, %v116
    %v3866 = vmul.f32 %v3860, %v116
    %v3867 = vmul.f32 %v3862, %v116
    %v3868 = vmul.f32 %v3864, %v116
    %v3869 = vsub.f32 %v3849, %v3865
    %v3870 = vsub.f32 %v3850, %v3866
    %v3871 = vsub.f32 %v3851, %v3867
    %v3872 = vsub.f32 %v3852, %v3868
    %v3873 = vmul.f32 %v3869, %v3869
    %v3874 = vmul.f32 %v3870, %v3870
    %v3875 = vmul.f32 %v3871, %v3871
    %v3876 = vmul.f32 %v3872, %v3872
    %3877 = vadd.xlane.f32.xlu0 %v3873
    %v3878 = vpop.xlane.xlu0 %3877
    %3879 = vadd.xlane.f32.xlu0 %v3874
    %v3880 = vpop.xlane.xlu0 %3879
    %3881 = vadd.xlane.f32.xlu0 %v3875
    %v3882 = vpop.xlane.xlu0 %3881
    %3883 = vadd.xlane.f32.xlu0 %v3876
    %v3884 = vpop.xlane.xlu0 %3883
    %v3885 = vmul.f32 %v3878, %v116
    %v3886 = vmul.f32 %v3880, %v116
    %v3887 = vmul.f32 %v3882, %v116
    %v3888 = vmul.f32 %v3884, %v116
    %v3889 = vadd.f32 %v3885, 1e-05
    %v3890 = vadd.f32 %v3886, 1e-05
    %v3891 = vadd.f32 %v3887, 1e-05
    %v3892 = vadd.f32 %v3888, 1e-05
    %v3893 = vrsqrt.pop %v3889
    %v3894 = vrsqrt.pop %v3890
    %v3895 = vrsqrt.pop %v3891
    %v3896 = vrsqrt.pop %v3892
    %v3897 = vmul.f32 %v3869, %v3893
    %v3898 = vmul.f32 %v3870, %v3894
    %v3899 = vmul.f32 %v3871, %v3895
    %v3900 = vmul.f32 %v3872, %v3896
    %v3902 = vlaneseq
    %v3903 = vshrl.u32 %v3902, 7
    %v3904 = vsub.s32 0, %v3903
    %v3905 = vrot.slane %v3854, %v3904
    %v3907 = vmul.f32 %v3897, %v3905
    %v3908 = vmul.f32 %v3898, %v3905
    %v3909 = vmul.f32 %v3899, %v3905
    %v3910 = vmul.f32 %v3900, %v3905
    %v3912 = vlaneseq
    %v3913 = vshrl.u32 %v3912, 7
    %v3914 = vsub.s32 0, %v3913
    %v3915 = vrot.slane %v3856, %v3914
    %v3917 = vadd.f32 %v3907, %v3915
    %v3918 = vadd.f32 %v3908, %v3915
    %v3919 = vadd.f32 %v3909, %v3915
    %v3920 = vadd.f32 %v3910, %v3915
    %s3921 = scalar_lea.vmem [#allocation5], 512
    %v3922 = vld [vmem:[%s3921] sm:$0xff]
    %v3923 = vld [vmem:[%s3921 + $0x8] sm:$0xff]
    %v3924 = vld [vmem:[%s3921 + $0x10] sm:$0xff]
    %v3925 = vld [vmem:[%s3921 + $0x18] sm:$0xff]
    %v3926 = vld [vmem:[%s3921 + $0x20] sm:$0xff]
    %v3927 = vld [vmem:[%s3921 + $0x28] sm:$0xff]
    %v3928 = vld [vmem:[%s3921 + $0x30] sm:$0xff]
    %v3929 = vld [vmem:[%s3921 + $0x38] sm:$0xff]
    %v3930 = vld [vmem:[%s3921 + $0x40] sm:$0xff]
    %v3931 = vld [vmem:[%s3921 + $0x48] sm:$0xff]
    %v3932 = vld [vmem:[%s3921 + $0x50] sm:$0xff]
    %v3933 = vld [vmem:[%s3921 + $0x58] sm:$0xff]
    %v3934 = vld [vmem:[%s3921 + $0x60] sm:$0xff]
    %v3935 = vld [vmem:[%s3921 + $0x68] sm:$0xff]
    %v3936 = vld [vmem:[%s3921 + $0x70] sm:$0xff]
    %v3937 = vld [vmem:[%s3921 + $0x78] sm:$0xff]
    %v3938 = vld [vmem:[%s3921 + $0x80] sm:$0xff]
    %v3939 = vld [vmem:[%s3921 + $0x88] sm:$0xff]
    %v3940 = vld [vmem:[%s3921 + $0x90] sm:$0xff]
    %v3941 = vld [vmem:[%s3921 + $0x98] sm:$0xff]
    %v3942 = vld [vmem:[%s3921 + $0xa0] sm:$0xff]
    %v3943 = vld [vmem:[%s3921 + $0xa8] sm:$0xff]
    %v3944 = vld [vmem:[%s3921 + $0xb0] sm:$0xff]
    %v3945 = vld [vmem:[%s3921 + $0xb8] sm:$0xff]
    %v3946 = vld [vmem:[%s3921 + $0xc0] sm:$0xff]
    %v3947 = vld [vmem:[%s3921 + $0xc8] sm:$0xff]
    %v3948 = vld [vmem:[%s3921 + $0xd0] sm:$0xff]
    %v3949 = vld [vmem:[%s3921 + $0xd8] sm:$0xff]
    %v3950 = vld [vmem:[%s3921 + $0xe0] sm:$0xff]
    %v3951 = vld [vmem:[%s3921 + $0xe8] sm:$0xff]
    %v3952 = vld [vmem:[%s3921 + $0xf0] sm:$0xff]
    %v3953 = vld [vmem:[%s3921 + $0xf8] sm:$0xff]
    %v3954 = vld [vmem:[%s3921 + $0x100] sm:$0xff]
    %v3955 = vld [vmem:[%s3921 + $0x108] sm:$0xff]
    %v3956 = vld [vmem:[%s3921 + $0x110] sm:$0xff]
    %v3957 = vld [vmem:[%s3921 + $0x118] sm:$0xff]
    %v3958 = vld [vmem:[%s3921 + $0x120] sm:$0xff]
    %v3959 = vld [vmem:[%s3921 + $0x128] sm:$0xff]
    %v3960 = vld [vmem:[%s3921 + $0x130] sm:$0xff]
    %v3961 = vld [vmem:[%s3921 + $0x138] sm:$0xff]
    %v3962 = vld [vmem:[%s3921 + $0x140] sm:$0xff]
    %v3963 = vld [vmem:[%s3921 + $0x148] sm:$0xff]
    %v3964 = vld [vmem:[%s3921 + $0x150] sm:$0xff]
    %v3965 = vld [vmem:[%s3921 + $0x158] sm:$0xff]
    %v3966 = vld [vmem:[%s3921 + $0x160] sm:$0xff]
    %v3967 = vld [vmem:[%s3921 + $0x168] sm:$0xff]
    %v3968 = vld [vmem:[%s3921 + $0x170] sm:$0xff]
    %v3969 = vld [vmem:[%s3921 + $0x178] sm:$0xff]
    %v3970 = vld [vmem:[%s3921 + $0x180] sm:$0xff]
    %v3971 = vld [vmem:[%s3921 + $0x188] sm:$0xff]
    %v3972 = vld [vmem:[%s3921 + $0x190] sm:$0xff]
    %v3973 = vld [vmem:[%s3921 + $0x198] sm:$0xff]
    %v3974 = vld [vmem:[%s3921 + $0x1a0] sm:$0xff]
    %v3975 = vld [vmem:[%s3921 + $0x1a8] sm:$0xff]
    %v3976 = vld [vmem:[%s3921 + $0x1b0] sm:$0xff]
    %v3977 = vld [vmem:[%s3921 + $0x1b8] sm:$0xff]
    %v3978 = vld [vmem:[%s3921 + $0x1c0] sm:$0xff]
    %v3979 = vld [vmem:[%s3921 + $0x1c8] sm:$0xff]
    %v3980 = vld [vmem:[%s3921 + $0x1d0] sm:$0xff]
    %v3981 = vld [vmem:[%s3921 + $0x1d8] sm:$0xff]
    %v3982 = vld [vmem:[%s3921 + $0x1e0] sm:$0xff]
    %v3983 = vld [vmem:[%s3921 + $0x1e8] sm:$0xff]
    %v3984 = vld [vmem:[%s3921 + $0x1f0] sm:$0xff]
    %v3985 = vld [vmem:[%s3921 + $0x1f8] sm:$0xff]
    %s3986 = scalar_lea.vmem %s11, 4
    %v3987 = vld [vmem:[%s3986] sm:$0xf]
    %v3989 = vlaneseq
    %v3990 = vshrl.u32 %v3989, 7
    %v3991 = vsub.s32 0, %v3990
    %v3992 = vrot.slane %v3987, %v3991
    %v3993 = vlaneseq
    %v3994 = vshrl.u32 %v3993, 7
    %v3995 = vsub.s32 1, %v3994
    %v3996 = vrot.slane %v3987, %v3995
    %v3997 = vlaneseq
    %v3998 = vshrl.u32 %v3997, 7
    %v3999 = vsub.s32 2, %v3998
    %v4000 = vrot.slane %v3987, %v3999
    %v4001 = vlaneseq
    %v4002 = vshrl.u32 %v4001, 7
    %v4003 = vsub.s32 3, %v4002
    %v4004 = vrot.slane %v3987, %v4003
    %4009 = vmatprep.subr.mxu0 %v3923
    %4010 = vmatpush1.msra.mxu0 %v3922
    %4011 = vmatprep.subr.mxu0 %v3927
    %4012 = vmatpush1.msra.mxu0 %v3926
    %4013 = vmatprep.subr.mxu0 %v3931
    %4014 = vmatpush1.msra.mxu0 %v3930
    %4015 = vmatprep.subr.mxu0 %v3935
    %4016 = vmatpush1.msra.mxu0 %v3934
    %4017 = vmatprep.subr.mxu0 %v3939
    %4018 = vmatpush1.msra.mxu0 %v3938
    %4019 = vmatprep.subr.mxu0 %v3943
    %4020 = vmatpush1.msra.mxu0 %v3942
    %4021 = vmatprep.subr.mxu0 %v3947
    %4022 = vmatpush1.msra.mxu0 %v3946
    %4023 = vmatprep.subr.mxu0 %v3951
    %4024 = vmatpush1.msra.mxu0 %v3950
    %4025 = vmatprep.subr.mxu0 %v3955
    %4026 = vmatpush1.msra.mxu0 %v3954
    %4027 = vmatprep.subr.mxu0 %v3959
    %4028 = vmatpush1.msra.mxu0 %v3958
    %4029 = vmatprep.subr.mxu0 %v3963
    %4030 = vmatpush1.msra.mxu0 %v3962
    %4031 = vmatprep.subr.mxu0 %v3967
    %4032 = vmatpush1.msra.mxu0 %v3966
    %4033 = vmatprep.subr.mxu0 %v3971
    %4034 = vmatpush1.msra.mxu0 %v3970
    %4035 = vmatprep.subr.mxu0 %v3975
    %4036 = vmatpush1.msra.mxu0 %v3974
    %4037 = vmatprep.subr.mxu0 %v3979
    %4038 = vmatpush1.msra.mxu0 %v3978
    %4039 = vmatprep.subr.mxu0 %v3983
    %4040 = vmatpush1.msra.mxu0 %v3982
    %4041 = vmatprep.subr.mxu0 0.0
    %4042 = vmatpush1.msra.mxu0 0.0
    %4043 = vmatprep.subr.mxu0 0.0
    %4044 = vmatpush1.msra.mxu0 0.0
    %4045 = vmatprep.subr.mxu0 0.0
    %4046 = vmatpush1.msra.mxu0 0.0
    %4047 = vmatprep.subr.mxu0 0.0
    %4048 = vmatpush1.msra.mxu0 0.0
    %4049 = vmatprep.subr.mxu0 0.0
    %4050 = vmatpush1.msra.mxu0 0.0
    %4051 = vmatprep.subr.mxu0 0.0
    %4052 = vmatpush1.msra.mxu0 0.0
    %4053 = vmatprep.subr.mxu0 0.0
    %4054 = vmatpush1.msra.mxu0 0.0
    %4055 = vmatprep.subr.mxu0 0.0
    %4056 = vmatpush1.msra.mxu0 0.0
    %4057 = vmatprep.subr.mxu0 0.0
    %4058 = vmatpush1.msra.mxu0 0.0
    %4059 = vmatprep.subr.mxu0 0.0
    %4060 = vmatpush1.msra.mxu0 0.0
    %4061 = vmatprep.subr.mxu0 0.0
    %4062 = vmatpush1.msra.mxu0 0.0
    %4063 = vmatprep.subr.mxu0 0.0
    %4064 = vmatpush1.msra.mxu0 0.0
    %4065 = vmatprep.subr.mxu0 0.0
    %4066 = vmatpush1.msra.mxu0 0.0
    %4067 = vmatprep.subr.mxu0 0.0
    %4068 = vmatpush1.msra.mxu0 0.0
    %4069 = vmatprep.subr.mxu0 0.0
    %4070 = vmatpush1.msra.mxu0 0.0
    %4071 = vmatprep.subr.mxu0 0.0
    %4072 = vmatpush1.msra.mxu0 0.0
    %4073 = vmatprep.mubr.f32.mxu0 0.0
    %4074 = vmatmul.mubr.f32.gmra.mrb[0].mxu0 %v3917
    %v4075 = vpop.f32.mrb[0].mxu0
    %v4076 = vadd.f32 %v3992, %v4075
    %v4077 = vpop.f32.mrb[0].mxu0
    %v4078 = vadd.f32 %v3996, %v4077
    %4079 = vmatprep.mubr.f32.mxu0 0.0
    %4080 = vmatmul.mubr.f32.gmra.mrb[0].mxu0 %v3918
    %v4081 = vpop.f32.mrb[0].mxu0
    %v4082 = vadd.f32 %v3992, %v4081
    %v4083 = vpop.f32.mrb[0].mxu0
    %v4084 = vadd.f32 %v3996, %v4083
    %4085 = vmatprep.mubr.f32.mxu0 0.0
    %4086 = vmatmul.mubr.f32.gmra.mrb[0].mxu0 %v3919
    %v4087 = vpop.f32.mrb[0].mxu0
    %v4088 = vadd.f32 %v3992, %v4087
    %v4089 = vpop.f32.mrb[0].mxu0
    %v4090 = vadd.f32 %v3996, %v4089
    %4091 = vmatprep.mubr.f32.mxu0 0.0
    %4092 = vmatmul.mubr.f32.gmra.mrb[0].mxu0 %v3920
    %v4093 = vpop.f32.mrb[0].mxu0
    %v4094 = vadd.f32 %v3992, %v4093
    %v4095 = vpop.f32.mrb[0].mxu0
    %v4096 = vadd.f32 %v3996, %v4095
    %4097 = vdwg.mxu0
    %4098 = vmatprep.subr.mxu0 %v3925
    %4099 = vmatpush1.msra.mxu0 %v3924
    %4100 = vmatprep.subr.mxu0 %v3929
    %4101 = vmatpush1.msra.mxu0 %v3928
    %4102 = vmatprep.subr.mxu0 %v3933
    %4103 = vmatpush1.msra.mxu0 %v3932
    %4104 = vmatprep.subr.mxu0 %v3937
    %4105 = vmatpush1.msra.mxu0 %v3936
    %4106 = vmatprep.subr.mxu0 %v3941
    %4107 = vmatpush1.msra.mxu0 %v3940
    %4108 = vmatprep.subr.mxu0 %v3945
    %4109 = vmatpush1.msra.mxu0 %v3944
    %4110 = vmatprep.subr.mxu0 %v3949
    %4111 = vmatpush1.msra.mxu0 %v3948
    %4112 = vmatprep.subr.mxu0 %v3953
    %4113 = vmatpush1.msra.mxu0 %v3952
    %4114 = vmatprep.subr.mxu0 %v3957
    %4115 = vmatpush1.msra.mxu0 %v3956
    %4116 = vmatprep.subr.mxu0 %v3961
    %4117 = vmatpush1.msra.mxu0 %v3960
    %4118 = vmatprep.subr.mxu0 %v3965
    %4119 = vmatpush1.msra.mxu0 %v3964
    %4120 = vmatprep.subr.mxu0 %v3969
    %4121 = vmatpush1.msra.mxu0 %v3968
    %4122 = vmatprep.subr.mxu0 %v3973
    %4123 = vmatpush1.msra.mxu0 %v3972
    %4124 = vmatprep.subr.mxu0 %v3977
    %4125 = vmatpush1.msra.mxu0 %v3976
    %4126 = vmatprep.subr.mxu0 %v3981
    %4127 = vmatpush1.msra.mxu0 %v3980
    %4128 = vmatprep.subr.mxu0 %v3985
    %4129 = vmatpush1.msra.mxu0 %v3984
    %4130 = vmatprep.subr.mxu0 0.0
    %4131 = vmatpush1.msra.mxu0 0.0
    %4132 = vmatprep.subr.mxu0 0.0
    %4133 = vmatpush1.msra.mxu0 0.0
    %4134 = vmatprep.subr.mxu0 0.0
    %4135 = vmatpush1.msra.mxu0 0.0
    %4136 = vmatprep.subr.mxu0 0.0
    %4137 = vmatpush1.msra.mxu0 0.0
    %4138 = vmatprep.subr.mxu0 0.0
    %4139 = vmatpush1.msra.mxu0 0.0
    %4140 = vmatprep.subr.mxu0 0.0
    %4141 = vmatpush1.msra.mxu0 0.0
    %4142 = vmatprep.subr.mxu0 0.0
    %4143 = vmatpush1.msra.mxu0 0.0
    %4144 = vmatprep.subr.mxu0 0.0
    %4145 = vmatpush1.msra.mxu0 0.0
    %4146 = vmatprep.subr.mxu0 0.0
    %4147 = vmatpush1.msra.mxu0 0.0
    %4148 = vmatprep.subr.mxu0 0.0
    %4149 = vmatpush1.msra.mxu0 0.0
    %4150 = vmatprep.subr.mxu0 0.0
    %4151 = vmatpush1.msra.mxu0 0.0
    %4152 = vmatprep.subr.mxu0 0.0
    %4153 = vmatpush1.msra.mxu0 0.0
    %4154 = vmatprep.subr.mxu0 0.0
    %4155 = vmatpush1.msra.mxu0 0.0
    %4156 = vmatprep.subr.mxu0 0.0
    %4157 = vmatpush1.msra.mxu0 0.0
    %4158 = vmatprep.subr.mxu0 0.0
    %4159 = vmatpush1.msra.mxu0 0.0
    %4160 = vmatprep.subr.mxu0 0.0
    %4161 = vmatpush1.msra.mxu0 0.0
    %4162 = vmatprep.mubr.f32.mxu0 0.0
    %4163 = vmatmul.mubr.f32.gmra.mrb[0].mxu0 %v3917
    %v4164 = vpop.f32.mrb[0].mxu0
    %v4165 = vadd.f32 %v4000, %v4164
    %v4166 = vpop.f32.mrb[0].mxu0
    %v4167 = vadd.f32 %v4004, %v4166
    %4168 = vmatprep.mubr.f32.mxu0 0.0
    %4169 = vmatmul.mubr.f32.gmra.mrb[0].mxu0 %v3918
    %v4170 = vpop.f32.mrb[0].mxu0
    %v4171 = vadd.f32 %v4000, %v4170
    %v4172 = vpop.f32.mrb[0].mxu0
    %v4173 = vadd.f32 %v4004, %v4172
    %4174 = vmatprep.mubr.f32.mxu0 0.0
    %4175 = vmatmul.mubr.f32.gmra.mrb[0].mxu0 %v3919
    %v4176 = vpop.f32.mrb[0].mxu0
    %v4177 = vadd.f32 %v4000, %v4176
    %v4178 = vpop.f32.mrb[0].mxu0
    %v4179 = vadd.f32 %v4004, %v4178
    %4180 = vmatprep.mubr.f32.mxu0 0.0
    %4181 = vmatmul.mubr.f32.gmra.mrb[0].mxu0 %v3920
    %v4182 = vpop.f32.mrb[0].mxu0
    %v4183 = vadd.f32 %v4000, %v4182
    %v4184 = vpop.f32.mrb[0].mxu0
    %v4185 = vadd.f32 %v4004, %v4184
    %4186 = vdwg.mxu0
    %v4187 = vmul.f32 %v4076, 0.5
    %v4188 = vmul.f32 %v4078, 0.5
    %v4189 = vmul.f32 %v4165, 0.5
    %v4190 = vmul.f32 %v4167, 0.5
    %v4191 = vmul.f32 %v4082, 0.5
    %v4192 = vmul.f32 %v4084, 0.5
    %v4193 = vmul.f32 %v4171, 0.5
    %v4194 = vmul.f32 %v4173, 0.5
    %v4195 = vmul.f32 %v4088, 0.5
    %v4196 = vmul.f32 %v4090, 0.5
    %v4197 = vmul.f32 %v4177, 0.5
    %v4198 = vmul.f32 %v4179, 0.5
    %v4199 = vmul.f32 %v4094, 0.5
    %v4200 = vmul.f32 %v4096, 0.5
    %v4201 = vmul.f32 %v4183, 0.5
    %v4202 = vmul.f32 %v4185, 0.5
    %v4203 = vmul.f32 %v4076, 0.70710677
    %v4204 = vmul.f32 %v4078, 0.70710677
    %v4205 = vmul.f32 %v4165, 0.70710677
    %v4206 = vmul.f32 %v4167, 0.70710677
    %v4207 = vmul.f32 %v4082, 0.70710677
    %v4208 = vmul.f32 %v4084, 0.70710677
    %v4209 = vmul.f32 %v4171, 0.70710677
    %v4210 = vmul.f32 %v4173, 0.70710677
    %v4211 = vmul.f32 %v4088, 0.70710677
    %v4212 = vmul.f32 %v4090, 0.70710677
    %v4213 = vmul.f32 %v4177, 0.70710677
    %v4214 = vmul.f32 %v4179, 0.70710677
    %v4215 = vmul.f32 %v4094, 0.70710677
    %v4216 = vmul.f32 %v4096, 0.70710677
    %v4217 = vmul.f32 %v4183, 0.70710677
    %v4218 = vmul.f32 %v4185, 0.70710677
    %v4219 = verf.f32.pop %v4203
    %v4220 = verf.f32.pop %v4204
    %v4221 = verf.f32.pop %v4205
    %v4222 = verf.f32.pop %v4206
    %v4223 = verf.f32.pop %v4207
    %v4224 = verf.f32.pop %v4208
    %v4225 = verf.f32.pop %v4209
    %v4226 = verf.f32.pop %v4210
    %v4227 = verf.f32.pop %v4211
    %v4228 = verf.f32.pop %v4212
    %v4229 = verf.f32.pop %v4213
    %v4230 = verf.f32.pop %v4214
    %v4231 = verf.f32.pop %v4215
    %v4232 = verf.f32.pop %v4216
    %v4233 = verf.f32.pop %v4217
    %v4234 = verf.f32.pop %v4218
    %v4235 = vadd.f32 %v4219, 1.0
    %v4236 = vadd.f32 %v4220, 1.0
    %v4237 = vadd.f32 %v4221, 1.0
    %v4238 = vadd.f32 %v4222, 1.0
    %v4239 = vadd.f32 %v4223, 1.0
    %v4240 = vadd.f32 %v4224, 1.0
    %v4241 = vadd.f32 %v4225, 1.0
    %v4242 = vadd.f32 %v4226, 1.0
    %v4243 = vadd.f32 %v4227, 1.0
    %v4244 = vadd.f32 %v4228, 1.0
    %v4245 = vadd.f32 %v4229, 1.0
    %v4246 = vadd.f32 %v4230, 1.0
    %v4247 = vadd.f32 %v4231, 1.0
    %v4248 = vadd.f32 %v4232, 1.0
    %v4249 = vadd.f32 %v4233, 1.0
    %v4250 = vadd.f32 %v4234, 1.0
    %v4251 = vmul.f32 %v4187, %v4235
    %v4252 = vmul.f32 %v4188, %v4236
    %v4253 = vmul.f32 %v4189, %v4237
    %v4254 = vmul.f32 %v4190, %v4238
    %v4255 = vmul.f32 %v4191, %v4239
    %v4256 = vmul.f32 %v4192, %v4240
    %v4257 = vmul.f32 %v4193, %v4241
    %v4258 = vmul.f32 %v4194, %v4242
    %v4259 = vmul.f32 %v4195, %v4243
    %v4260 = vmul.f32 %v4196, %v4244
    %v4261 = vmul.f32 %v4197, %v4245
    %v4262 = vmul.f32 %v4198, %v4246
    %v4263 = vmul.f32 %v4199, %v4247
    %v4264 = vmul.f32 %v4200, %v4248
    %v4265 = vmul.f32 %v4201, %v4249
    %v4266 = vmul.f32 %v4202, %v4250
    %s4267 = scalar_lea.vmem [#allocation7], 512
    %v4268 = vld [vmem:[%s4267] sm:$0xff]
    %v4269 = vld [vmem:[%s4267 + $0x8] sm:$0xff]
    %v4270 = vld [vmem:[%s4267 + $0x10] sm:$0xff]
    %v4271 = vld [vmem:[%s4267 + $0x18] sm:$0xff]
    %v4272 = vld [vmem:[%s4267 + $0x20] sm:$0xff]
    %v4273 = vld [vmem:[%s4267 + $0x28] sm:$0xff]
    %v4274 = vld [vmem:[%s4267 + $0x30] sm:$0xff]
    %v4275 = vld [vmem:[%s4267 + $0x38] sm:$0xff]
    %v4276 = vld [vmem:[%s4267 + $0x40] sm:$0xff]
    %v4277 = vld [vmem:[%s4267 + $0x48] sm:$0xff]
    %v4278 = vld [vmem:[%s4267 + $0x50] sm:$0xff]
    %v4279 = vld [vmem:[%s4267 + $0x58] sm:$0xff]
    %v4280 = vld [vmem:[%s4267 + $0x60] sm:$0xff]
    %v4281 = vld [vmem:[%s4267 + $0x68] sm:$0xff]
    %v4282 = vld [vmem:[%s4267 + $0x70] sm:$0xff]
    %v4283 = vld [vmem:[%s4267 + $0x78] sm:$0xff]
    %v4284 = vld [vmem:[%s4267 + $0x80] sm:$0xff]
    %v4285 = vld [vmem:[%s4267 + $0x88] sm:$0xff]
    %v4286 = vld [vmem:[%s4267 + $0x90] sm:$0xff]
    %v4287 = vld [vmem:[%s4267 + $0x98] sm:$0xff]
    %v4288 = vld [vmem:[%s4267 + $0xa0] sm:$0xff]
    %v4289 = vld [vmem:[%s4267 + $0xa8] sm:$0xff]
    %v4290 = vld [vmem:[%s4267 + $0xb0] sm:$0xff]
    %v4291 = vld [vmem:[%s4267 + $0xb8] sm:$0xff]
    %v4292 = vld [vmem:[%s4267 + $0xc0] sm:$0xff]
    %v4293 = vld [vmem:[%s4267 + $0xc8] sm:$0xff]
    %v4294 = vld [vmem:[%s4267 + $0xd0] sm:$0xff]
    %v4295 = vld [vmem:[%s4267 + $0xd8] sm:$0xff]
    %v4296 = vld [vmem:[%s4267 + $0xe0] sm:$0xff]
    %v4297 = vld [vmem:[%s4267 + $0xe8] sm:$0xff]
    %v4298 = vld [vmem:[%s4267 + $0xf0] sm:$0xff]
    %v4299 = vld [vmem:[%s4267 + $0xf8] sm:$0xff]
    %v4300 = vld [vmem:[%s4267 + $0x100] sm:$0xff]
    %v4301 = vld [vmem:[%s4267 + $0x108] sm:$0xff]
    %v4302 = vld [vmem:[%s4267 + $0x110] sm:$0xff]
    %v4303 = vld [vmem:[%s4267 + $0x118] sm:$0xff]
    %v4304 = vld [vmem:[%s4267 + $0x120] sm:$0xff]
    %v4305 = vld [vmem:[%s4267 + $0x128] sm:$0xff]
    %v4306 = vld [vmem:[%s4267 + $0x130] sm:$0xff]
    %v4307 = vld [vmem:[%s4267 + $0x138] sm:$0xff]
    %v4308 = vld [vmem:[%s4267 + $0x140] sm:$0xff]
    %v4309 = vld [vmem:[%s4267 + $0x148] sm:$0xff]
    %v4310 = vld [vmem:[%s4267 + $0x150] sm:$0xff]
    %v4311 = vld [vmem:[%s4267 + $0x158] sm:$0xff]
    %v4312 = vld [vmem:[%s4267 + $0x160] sm:$0xff]
    %v4313 = vld [vmem:[%s4267 + $0x168] sm:$0xff]
    %v4314 = vld [vmem:[%s4267 + $0x170] sm:$0xff]
    %v4315 = vld [vmem:[%s4267 + $0x178] sm:$0xff]
    %v4316 = vld [vmem:[%s4267 + $0x180] sm:$0xff]
    %v4317 = vld [vmem:[%s4267 + $0x188] sm:$0xff]
    %v4318 = vld [vmem:[%s4267 + $0x190] sm:$0xff]
    %v4319 = vld [vmem:[%s4267 + $0x198] sm:$0xff]
    %v4320 = vld [vmem:[%s4267 + $0x1a0] sm:$0xff]
    %v4321 = vld [vmem:[%s4267 + $0x1a8] sm:$0xff]
    %v4322 = vld [vmem:[%s4267 + $0x1b0] sm:$0xff]
    %v4323 = vld [vmem:[%s4267 + $0x1b8] sm:$0xff]
    %v4324 = vld [vmem:[%s4267 + $0x1c0] sm:$0xff]
    %v4325 = vld [vmem:[%s4267 + $0x1c8] sm:$0xff]
    %v4326 = vld [vmem:[%s4267 + $0x1d0] sm:$0xff]
    %v4327 = vld [vmem:[%s4267 + $0x1d8] sm:$0xff]
    %v4328 = vld [vmem:[%s4267 + $0x1e0] sm:$0xff]
    %v4329 = vld [vmem:[%s4267 + $0x1e8] sm:$0xff]
    %v4330 = vld [vmem:[%s4267 + $0x1f0] sm:$0xff]
    %v4331 = vld [vmem:[%s4267 + $0x1f8] sm:$0xff]
    %s4332 = scalar_lea.vmem %s13, 1
    %v4333 = vld [vmem:[%s4332] sm:$0x1]
    %v4335 = vlaneseq
    %v4336 = vshrl.u32 %v4335, 7
    %v4337 = vsub.s32 0, %v4336
    %v4338 = vrot.slane %v4333, %v4337
    %4340 = vmatprep.subr.mxu0 0.0
    %4341 = vmatpush1.msra.mxu0 %v4268
    %4342 = vmatprep.subr.mxu0 0.0
    %4343 = vmatpush1.msra.mxu0 %v4269
    %4344 = vmatprep.subr.mxu0 0.0
    %4345 = vmatpush1.msra.mxu0 %v4270
    %4346 = vmatprep.subr.mxu0 0.0
    %4347 = vmatpush1.msra.mxu0 %v4271
    %4348 = vmatprep.subr.mxu0 0.0
    %4349 = vmatpush1.msra.mxu0 %v4272
    %4350 = vmatprep.subr.mxu0 0.0
    %4351 = vmatpush1.msra.mxu0 %v4273
    %4352 = vmatprep.subr.mxu0 0.0
    %4353 = vmatpush1.msra.mxu0 %v4274
    %4354 = vmatprep.subr.mxu0 0.0
    %4355 = vmatpush1.msra.mxu0 %v4275
    %4356 = vmatprep.subr.mxu0 0.0
    %4357 = vmatpush1.msra.mxu0 %v4276
    %4358 = vmatprep.subr.mxu0 0.0
    %4359 = vmatpush1.msra.mxu0 %v4277
    %4360 = vmatprep.subr.mxu0 0.0
    %4361 = vmatpush1.msra.mxu0 %v4278
    %4362 = vmatprep.subr.mxu0 0.0
    %4363 = vmatpush1.msra.mxu0 %v4279
    %4364 = vmatprep.subr.mxu0 0.0
    %4365 = vmatpush1.msra.mxu0 %v4280
    %4366 = vmatprep.subr.mxu0 0.0
    %4367 = vmatpush1.msra.mxu0 %v4281
    %4368 = vmatprep.subr.mxu0 0.0
    %4369 = vmatpush1.msra.mxu0 %v4282
    %4370 = vmatprep.subr.mxu0 0.0
    %4371 = vmatpush1.msra.mxu0 %v4283
    %4372 = vmatprep.subr.mxu0 0.0
    %4373 = vmatpush1.msra.mxu0 %v4284
    %4374 = vmatprep.subr.mxu0 0.0
    %4375 = vmatpush1.msra.mxu0 %v4285
    %4376 = vmatprep.subr.mxu0 0.0
    %4377 = vmatpush1.msra.mxu0 %v4286
    %4378 = vmatprep.subr.mxu0 0.0
    %4379 = vmatpush1.msra.mxu0 %v4287
    %4380 = vmatprep.subr.mxu0 0.0
    %4381 = vmatpush1.msra.mxu0 %v4288
    %4382 = vmatprep.subr.mxu0 0.0
    %4383 = vmatpush1.msra.mxu0 %v4289
    %4384 = vmatprep.subr.mxu0 0.0
    %4385 = vmatpush1.msra.mxu0 %v4290
    %4386 = vmatprep.subr.mxu0 0.0
    %4387 = vmatpush1.msra.mxu0 %v4291
    %4388 = vmatprep.subr.mxu0 0.0
    %4389 = vmatpush1.msra.mxu0 %v4292
    %4390 = vmatprep.subr.mxu0 0.0
    %4391 = vmatpush1.msra.mxu0 %v4293
    %4392 = vmatprep.subr.mxu0 0.0
    %4393 = vmatpush1.msra.mxu0 %v4294
    %4394 = vmatprep.subr.mxu0 0.0
    %4395 = vmatpush1.msra.mxu0 %v4295
    %4396 = vmatprep.subr.mxu0 0.0
    %4397 = vmatpush1.msra.mxu0 %v4296
    %4398 = vmatprep.subr.mxu0 0.0
    %4399 = vmatpush1.msra.mxu0 %v4297
    %4400 = vmatprep.subr.mxu0 0.0
    %4401 = vmatpush1.msra.mxu0 %v4298
    %4402 = vmatprep.subr.mxu0 0.0
    %4403 = vmatpush1.msra.mxu0 %v4299
    %4404 = vmatprep.mubr.f32.mxu0 %v4252
    %4405 = vmatmul.mubr.f32.gmra.mrb[0].mxu0 %v4251
    %v4406 = vpop.f32.mrb[0].mxu0
    %v4407 = vadd.f32 %v4338, %v4406
    %v4408 = vpop.f32.mrb[0].mxu0
    %4409 = vmatprep.mubr.f32.mxu0 %v4256
    %4410 = vmatmul.mubr.f32.gmra.mrb[0].mxu0 %v4255
    %v4411 = vpop.f32.mrb[0].mxu0
    %v4412 = vadd.f32 %v4338, %v4411
    %v4413 = vpop.f32.mrb[0].mxu0
    %4414 = vmatprep.mubr.f32.mxu0 %v4260
    %4415 = vmatmul.mubr.f32.gmra.mrb[0].mxu0 %v4259
    %v4416 = vpop.f32.mrb[0].mxu0
    %v4417 = vadd.f32 %v4338, %v4416
    %v4418 = vpop.f32.mrb[0].mxu0
    %4419 = vmatprep.mubr.f32.mxu0 %v4264
    %4420 = vmatmul.mubr.f32.gmra.mrb[0].mxu0 %v4263
    %v4421 = vpop.f32.mrb[0].mxu0
    %v4422 = vadd.f32 %v4338, %v4421
    %v4423 = vpop.f32.mrb[0].mxu0
    %4424 = vdwg.mxu0
    %4425 = vmatprep.subr.mxu0 0.0
    %4426 = vmatpush1.msra.mxu0 %v4300
    %4427 = vmatprep.subr.mxu0 0.0
    %4428 = vmatpush1.msra.mxu0 %v4301
    %4429 = vmatprep.subr.mxu0 0.0
    %4430 = vmatpush1.msra.mxu0 %v4302
    %4431 = vmatprep.subr.mxu0 0.0
    %4432 = vmatpush1.msra.mxu0 %v4303
    %4433 = vmatprep.subr.mxu0 0.0
    %4434 = vmatpush1.msra.mxu0 %v4304
    %4435 = vmatprep.subr.mxu0 0.0
    %4436 = vmatpush1.msra.mxu0 %v4305
    %4437 = vmatprep.subr.mxu0 0.0
    %4438 = vmatpush1.msra.mxu0 %v4306
    %4439 = vmatprep.subr.mxu0 0.0
    %4440 = vmatpush1.msra.mxu0 %v4307
    %4441 = vmatprep.subr.mxu0 0.0
    %4442 = vmatpush1.msra.mxu0 %v4308
    %4443 = vmatprep.subr.mxu0 0.0
    %4444 = vmatpush1.msra.mxu0 %v4309
    %4445 = vmatprep.subr.mxu0 0.0
    %4446 = vmatpush1.msra.mxu0 %v4310
    %4447 = vmatprep.subr.mxu0 0.0
    %4448 = vmatpush1.msra.mxu0 %v4311
    %4449 = vmatprep.subr.mxu0 0.0
    %4450 = vmatpush1.msra.mxu0 %v4312
    %4451 = vmatprep.subr.mxu0 0.0
    %4452 = vmatpush1.msra.mxu0 %v4313
    %4453 = vmatprep.subr.mxu0 0.0
    %4454 = vmatpush1.msra.mxu0 %v4314
    %4455 = vmatprep.subr.mxu0 0.0
    %4456 = vmatpush1.msra.mxu0 %v4315
    %4457 = vmatprep.subr.mxu0 0.0
    %4458 = vmatpush1.msra.mxu0 %v4316
    %4459 = vmatprep.subr.mxu0 0.0
    %4460 = vmatpush1.msra.mxu0 %v4317
    %4461 = vmatprep.subr.mxu0 0.0
    %4462 = vmatpush1.msra.mxu0 %v4318
    %4463 = vmatprep.subr.mxu0 0.0
    %4464 = vmatpush1.msra.mxu0 %v4319
    %4465 = vmatprep.subr.mxu0 0.0
    %4466 = vmatpush1.msra.mxu0 %v4320
    %4467 = vmatprep.subr.mxu0 0.0
    %4468 = vmatpush1.msra.mxu0 %v4321
    %4469 = vmatprep.subr.mxu0 0.0
    %4470 = vmatpush1.msra.mxu0 %v4322
    %4471 = vmatprep.subr.mxu0 0.0
    %4472 = vmatpush1.msra.mxu0 %v4323
    %4473 = vmatprep.subr.mxu0 0.0
    %4474 = vmatpush1.msra.mxu0 %v4324
    %4475 = vmatprep.subr.mxu0 0.0
    %4476 = vmatpush1.msra.mxu0 %v4325
    %4477 = vmatprep.subr.mxu0 0.0
    %4478 = vmatpush1.msra.mxu0 %v4326
    %4479 = vmatprep.subr.mxu0 0.0
    %4480 = vmatpush1.msra.mxu0 %v4327
    %4481 = vmatprep.subr.mxu0 0.0
    %4482 = vmatpush1.msra.mxu0 %v4328
    %4483 = vmatprep.subr.mxu0 0.0
    %4484 = vmatpush1.msra.mxu0 %v4329
    %4485 = vmatprep.subr.mxu0 0.0
    %4486 = vmatpush1.msra.mxu0 %v4330
    %4487 = vmatprep.subr.mxu0 0.0
    %4488 = vmatpush1.msra.mxu0 %v4331
    %4489 = vmatprep.mubr.f32.mxu0 %v4254
    %4490 = vmatmul.mubr.f32.gmra.mrb[0].mxu0 %v4253
    %v4491 = vpop.f32.mrb[0].mxu0
    %v4492 = vadd.f32 %v4407, %v4491
    %v4493 = vpop.f32.mrb[0].mxu0
    %4494 = vmatprep.mubr.f32.mxu0 %v4258
    %4495 = vmatmul.mubr.f32.gmra.mrb[0].mxu0 %v4257
    %v4496 = vpop.f32.mrb[0].mxu0
    %v4497 = vadd.f32 %v4412, %v4496
    %v4498 = vpop.f32.mrb[0].mxu0
    %4499 = vmatprep.mubr.f32.mxu0 %v4262
    %4500 = vmatmul.mubr.f32.gmra.mrb[0].mxu0 %v4261
    %v4501 = vpop.f32.mrb[0].mxu0
    %v4502 = vadd.f32 %v4417, %v4501
    %v4503 = vpop.f32.mrb[0].mxu0
    %4504 = vmatprep.mubr.f32.mxu0 %v4266
    %4505 = vmatmul.mubr.f32.gmra.mrb[0].mxu0 %v4265
    %v4506 = vpop.f32.mrb[0].mxu0
    %v4507 = vadd.f32 %v4422, %v4506
    %v4508 = vpop.f32.mrb[0].mxu0
    %4509 = vdwg.mxu0
    %v4510 = vadd.f32 %v3849, %v4492
    %v4511 = vadd.f32 %v3850, %v4497
    %v4512 = vadd.f32 %v3851, %v4502
    %v4513 = vadd.f32 %v3852, %v4507
    %v4514 = vld [vmem:[%s14] sm:$0x1]
    %v4515 = vld [vmem:[%s15] sm:$0x1]
    %4516 = vadd.xlane.f32.xlu0 %v4510
    %v4517 = vpop.xlane.xlu0 %4516
    %4518 = vadd.xlane.f32.xlu0 %v4511
    %v4519 = vpop.xlane.xlu0 %4518
    %4520 = vadd.xlane.f32.xlu0 %v4512
    %v4521 = vpop.xlane.xlu0 %4520
    %4522 = vadd.xlane.f32.xlu0 %v4513
    %v4523 = vpop.xlane.xlu0 %4522
    %v4524 = vmul.f32 %v4517, %v116
    %v4525 = vmul.f32 %v4519, %v116
    %v4526 = vmul.f32 %v4521, %v116
    %v4527 = vmul.f32 %v4523, %v116
    %v4528 = vsub.f32 %v4510, %v4524
    %v4529 = vsub.f32 %v4511, %v4525
    %v4530 = vsub.f32 %v4512, %v4526
    %v4531 = vsub.f32 %v4513, %v4527
    %v4532 = vmul.f32 %v4528, %v4528
    %v4533 = vmul.f32 %v4529, %v4529
    %v4534 = vmul.f32 %v4530, %v4530
    %v4535 = vmul.f32 %v4531, %v4531
    %4536 = vadd.xlane.f32.xlu0 %v4532
    %v4537 = vpop.xlane.xlu0 %4536
    %4538 = vadd.xlane.f32.xlu0 %v4533
    %v4539 = vpop.xlane.xlu0 %4538
    %4540 = vadd.xlane.f32.xlu0 %v4534
    %v4541 = vpop.xlane.xlu0 %4540
    %4542 = vadd.xlane.f32.xlu0 %v4535
    %v4543 = vpop.xlane.xlu0 %4542
    %v4544 = vmul.f32 %v4537, %v116
    %v4545 = vmul.f32 %v4539, %v116
    %v4546 = vmul.f32 %v4541, %v116
    %v4547 = vmul.f32 %v4543, %v116
    %v4548 = vadd.f32 %v4544, 1e-05
    %v4549 = vadd.f32 %v4545, 1e-05
    %v4550 = vadd.f32 %v4546, 1e-05
    %v4551 = vadd.f32 %v4547, 1e-05
    %v4552 = vrsqrt.pop %v4548
    %v4553 = vrsqrt.pop %v4549
    %v4554 = vrsqrt.pop %v4550
    %v4555 = vrsqrt.pop %v4551
    %v4556 = vmul.f32 %v4528, %v4552
    %v4557 = vmul.f32 %v4529, %v4553
    %v4558 = vmul.f32 %v4530, %v4554
    %v4559 = vmul.f32 %v4531, %v4555
    %v4561 = vlaneseq
    %v4562 = vshrl.u32 %v4561, 7
    %v4563 = vsub.s32 0, %v4562
    %v4564 = vrot.slane %v4514, %v4563
    %v4566 = vmul.f32 %v4556, %v4564
    %v4567 = vmul.f32 %v4557, %v4564
    %v4568 = vmul.f32 %v4558, %v4564
    %v4569 = vmul.f32 %v4559, %v4564
    %v4571 = vlaneseq
    %v4572 = vshrl.u32 %v4571, 7
    %v4573 = vsub.s32 0, %v4572
    %v4574 = vrot.slane %v4515, %v4573
    %v4576 = vadd.f32 %v4566, %v4574
    %v4577 = vadd.f32 %v4567, %v4574
    %v4578 = vadd.f32 %v4568, %v4574
    %v4579 = vadd.f32 %v4569, %v4574
    %v4580 = vld [vmem:[%s16] sm:$0xff]
    %v4581 = vld [vmem:[%s16 + $0x8] sm:$0xff]
    %v4582 = vld [vmem:[%s16 + $0x10] sm:$0xff]
    %v4583 = vld [vmem:[%s16 + $0x18] sm:$0xff]
    %v4584 = vld [vmem:[%s16 + $0x20] sm:$0xff]
    %v4585 = vld [vmem:[%s16 + $0x28] sm:$0xff]
    %v4586 = vld [vmem:[%s16 + $0x30] sm:$0xff]
    %v4587 = vld [vmem:[%s16 + $0x38] sm:$0xff]
    %v4588 = vld [vmem:[%s16 + $0x40] sm:$0xff]
    %v4589 = vld [vmem:[%s16 + $0x48] sm:$0xff]
    %v4590 = vld [vmem:[%s16 + $0x50] sm:$0xff]
    %v4591 = vld [vmem:[%s16 + $0x58] sm:$0xff]
    %v4592 = vld [vmem:[%s16 + $0x60] sm:$0xff]
    %v4593 = vld [vmem:[%s16 + $0x68] sm:$0xff]
    %v4594 = vld [vmem:[%s16 + $0x70] sm:$0xff]
    %v4595 = vld [vmem:[%s16 + $0x78] sm:$0xff]
    %v4596 = vld [vmem:[%s16 + $0x80] sm:$0xff]
    %v4597 = vld [vmem:[%s16 + $0x88] sm:$0xff]
    %v4598 = vld [vmem:[%s16 + $0x90] sm:$0xff]
    %v4599 = vld [vmem:[%s16 + $0x98] sm:$0xff]
    %v4600 = vld [vmem:[%s16 + $0xa0] sm:$0xff]
    %v4601 = vld [vmem:[%s16 + $0xa8] sm:$0xff]
    %v4602 = vld [vmem:[%s16 + $0xb0] sm:$0xff]
    %v4603 = vld [vmem:[%s16 + $0xb8] sm:$0xff]
    %v4604 = vld [vmem:[%s16 + $0xc0] sm:$0xff]
    %v4605 = vld [vmem:[%s16 + $0xc8] sm:$0xff]
    %v4606 = vld [vmem:[%s16 + $0xd0] sm:$0xff]
    %v4607 = vld [vmem:[%s16 + $0xd8] sm:$0xff]
    %v4608 = vld [vmem:[%s16 + $0xe0] sm:$0xff]
    %v4609 = vld [vmem:[%s16 + $0xe8] sm:$0xff]
    %v4610 = vld [vmem:[%s16 + $0xf0] sm:$0xff]
    %v4611 = vld [vmem:[%s16 + $0xf8] sm:$0xff]
    %4612 = vmatprep.subr.mxu0 %v4581
    %4613 = vmatpush1.msra.mxu0 %v4580
    %4614 = vmatprep.subr.mxu0 %v4583
    %4615 = vmatpush1.msra.mxu0 %v4582
    %4616 = vmatprep.subr.mxu0 %v4585
    %4617 = vmatpush1.msra.mxu0 %v4584
    %4618 = vmatprep.subr.mxu0 %v4587
    %4619 = vmatpush1.msra.mxu0 %v4586
    %4620 = vmatprep.subr.mxu0 %v4589
    %4621 = vmatpush1.msra.mxu0 %v4588
    %4622 = vmatprep.subr.mxu0 %v4591
    %4623 = vmatpush1.msra.mxu0 %v4590
    %4624 = vmatprep.subr.mxu0 %v4593
    %4625 = vmatpush1.msra.mxu0 %v4592
    %4626 = vmatprep.subr.mxu0 %v4595
    %4627 = vmatpush1.msra.mxu0 %v4594
    %4628 = vmatprep.subr.mxu0 %v4597
    %4629 = vmatpush1.msra.mxu0 %v4596
    %4630 = vmatprep.subr.mxu0 %v4599
    %4631 = vmatpush1.msra.mxu0 %v4598
    %4632 = vmatprep.subr.mxu0 %v4601
    %4633 = vmatpush1.msra.mxu0 %v4600
    %4634 = vmatprep.subr.mxu0 %v4603
    %4635 = vmatpush1.msra.mxu0 %v4602
    %4636 = vmatprep.subr.mxu0 %v4605
    %4637 = vmatpush1.msra.mxu0 %v4604
    %4638 = vmatprep.subr.mxu0 %v4607
    %4639 = vmatpush1.msra.mxu0 %v4606
    %4640 = vmatprep.subr.mxu0 %v4609
    %4641 = vmatpush1.msra.mxu0 %v4608
    %4642 = vmatprep.subr.mxu0 %v4611
    %4643 = vmatpush1.msra.mxu0 %v4610
    %4644 = vmatprep.subr.mxu0 0.0
    %4645 = vmatpush1.msra.mxu0 0.0
    %4646 = vmatprep.subr.mxu0 0.0
    %4647 = vmatpush1.msra.mxu0 0.0
    %4648 = vmatprep.subr.mxu0 0.0
    %4649 = vmatpush1.msra.mxu0 0.0
    %4650 = vmatprep.subr.mxu0 0.0
    %4651 = vmatpush1.msra.mxu0 0.0
    %4652 = vmatprep.subr.mxu0 0.0
    %4653 = vmatpush1.msra.mxu0 0.0
    %4654 = vmatprep.subr.mxu0 0.0
    %4655 = vmatpush1.msra.mxu0 0.0
    %4656 = vmatprep.subr.mxu0 0.0
    %4657 = vmatpush1.msra.mxu0 0.0
    %4658 = vmatprep.subr.mxu0 0.0
    %4659 = vmatpush1.msra.mxu0 0.0
    %4660 = vmatprep.subr.mxu0 0.0
    %4661 = vmatpush1.msra.mxu0 0.0
    %4662 = vmatprep.subr.mxu0 0.0
    %4663 = vmatpush1.msra.mxu0 0.0
    %4664 = vmatprep.subr.mxu0 0.0
    %4665 = vmatpush1.msra.mxu0 0.0
    %4666 = vmatprep.subr.mxu0 0.0
    %4667 = vmatpush1.msra.mxu0 0.0
    %4668 = vmatprep.subr.mxu0 0.0
    %4669 = vmatpush1.msra.mxu0 0.0
    %4670 = vmatprep.subr.mxu0 0.0
    %4671 = vmatpush1.msra.mxu0 0.0
    %4672 = vmatprep.subr.mxu0 0.0
    %4673 = vmatpush1.msra.mxu0 0.0
    %4674 = vmatprep.subr.mxu0 0.0
    %4675 = vmatpush1.msra.mxu0 0.0
    %4676 = vmatprep.mubr.f32.mxu0 0.0
    %4677 = vmatmul.mubr.f32.gmra.mrb[0].mxu0 %v4576
    %v4678 = vpop.f32.mrb[0].mxu0
    %v4679 = vadd.f32 0.0, %v4678
    %v4680 = vpop.f32.mrb[0].mxu0
    %v4681 = vadd.f32 0.0, %v4680
    %4682 = vmatprep.mubr.f32.mxu0 0.0
    %4683 = vmatmul.mubr.f32.gmra.mrb[0].mxu0 %v4577
    %v4684 = vpop.f32.mrb[0].mxu0
    %v4685 = vadd.f32 0.0, %v4684
    %v4686 = vpop.f32.mrb[0].mxu0
    %v4687 = vadd.f32 0.0, %v4686
    %4688 = vmatprep.mubr.f32.mxu0 0.0
    %4689 = vmatmul.mubr.f32.gmra.mrb[0].mxu0 %v4578
    %v4690 = vpop.f32.mrb[0].mxu0
    %v4691 = vadd.f32 0.0, %v4690
    %v4692 = vpop.f32.mrb[0].mxu0
    %v4693 = vadd.f32 0.0, %v4692
    %4694 = vmatprep.mubr.f32.mxu0 0.0
    %4695 = vmatmul.mubr.f32.gmra.mrb[0].mxu0 %v4579
    %v4696 = vpop.f32.mrb[0].mxu0
    %v4697 = vadd.f32 0.0, %v4696
    %v4698 = vpop.f32.mrb[0].mxu0
    %v4699 = vadd.f32 0.0, %v4698
    %4700 = vdwg.mxu0
    %4701 = vst [vmem:[#allocation8] sm:$0xff] %v4679
    %4702 = vst [vmem:[#allocation8 + $0x8] sm:$0xff] %v4681
    %4703 = vst [vmem:[#allocation8 + $0x10] sm:$0xff] %v4685
    %4704 = vst [vmem:[#allocation8 + $0x18] sm:$0xff] %v4687
    %4705 = vst [vmem:[#allocation8 + $0x20] sm:$0xff] %v4691
    %4706 = vst [vmem:[#allocation8 + $0x28] sm:$0xff] %v4693
    %4707 = vst [vmem:[#allocation8 + $0x30] sm:$0xff] %v4697
    %4708 = vst [vmem:[#allocation8 + $0x38] sm:$0xff] %v4699
    // Predicated region
    $region82: #{simple_transformer_forward.1} parent=1 // pred_check
      _
    $region83: #{simple_transformer_forward.1} parent=1 // pred_check_branch
      %4710 = sbr.rel (0) target = $region85
    $region84: #{simple_transformer_forward.1} parent=1 // pred_region
      %s4712 = ssub.s32 1024, 1024
      %4713 = vsyncadd [#allocation4], %s4712
      %s4714 = sshll.u32 [#allocation8], 4
      %s4715 = int_to_ptr.vmem [resolvable:$true] %s4714
      %4720 = dma.vmem_to_hbm [thread:$0]  %s4715, 1024, %s17, [#allocation4], 256, 256, 16
    $region85: #{simple_transformer_forward.1} parent=1 // pred_fallthru
      _
    // Predicated region
    $region86: #{simple_transformer_forward.1} parent=1 // pred_check
      _
    $region87: #{simple_transformer_forward.1} parent=1 // pred_check_branch
      %4722 = sbr.rel (0) target = $region89
    $region88: #{simple_transformer_forward.1} parent=1 // pred_region
      %4723 = dma.done [#allocation4], 1024
    $region89: #{simple_transformer_forward.1} parent=1 // pred_fallthru
      _
    %4724 = vsyncpa [#allocation3], 1
    %4725 = vsyncpa [#allocation6], 1
    %4726 = vsyncpa [#allocation4], 1

</llo_original>
